<compile_context>
chip_gen: v7x
topology: tpu7x:2x2x1
jax: 0.10.0
libtpu: 0.0.40
codegen_flags: <defaults>
</compile_context>

<pallas_src>
import jax
import jax.numpy as jnp
from jax.experimental import pallas as pl
from jax.experimental.pallas import tpu as pltpu

# Model dims (match the PyTorch __init__)
TICKER_DIM, SECTOR_DIM, INDUSTRY_DIM = 30, 10, 15
H1, H2, H3 = 256, 384, 512
BN_EPS = 1e-5


def _sigmoid(x):
    # exact identity; tanh goes to the EUP slot (no VPU divide on the chain)
    return 0.5 * jnp.tanh(0.5 * x) + 0.5


def _lstm_step(x, w_ref, b_ref, hidden):
    # single time step, h0 = c0 = 0  =>  W_hh contributes 0 and c = i * g.
    # Weights are pre-sliced on the host to the [i, g, o] gate blocks (3H).
    gates = jnp.dot(x.astype(jnp.bfloat16), w_ref[...],
                    preferred_element_type=jnp.float32) + b_ref[...]
    i = _sigmoid(gates[:, 0 * hidden:1 * hidden])
    g = jnp.tanh(gates[:, 1 * hidden:2 * hidden])
    o = _sigmoid(gates[:, 2 * hidden:3 * hidden])
    return o * jnp.tanh(i * g)


def _fc_relu(x, w_ref, b_ref):
    # fc with eval-mode BN already folded into (w, b) on the host
    y = jnp.dot(x.astype(jnp.bfloat16), w_ref[...],
                preferred_element_type=jnp.float32) + b_ref[...]
    return jnp.maximum(y, 0.0)


def lstm_mlp_kernel(x_ref,
                    w1_ref, b1_ref, w2_ref, b2_ref, w3_ref, b3_ref,
                    fw1_ref, fb1_ref, fw2_ref, fb2_ref,
                    fw3_ref, fb3_ref, fw4_ref, fb4_ref,
                    fw5_ref, fb5_ref,
                    out_ref):
    x = x_ref[...]
    # three stacked single-step LSTMs
    h = _lstm_step(x, w1_ref, b1_ref, H1)
    h = _lstm_step(h, w2_ref, b2_ref, H2)
    h = _lstm_step(h, w3_ref, b3_ref, H3)
    # fc1..fc4 with folded BN + ReLU
    y = _fc_relu(h, fw1_ref, fb1_ref)
    y = _fc_relu(y, fw2_ref, fb2_ref)
    y = _fc_relu(y, fw3_ref, fb3_ref)
    y = _fc_relu(y, fw4_ref, fb4_ref)
    # fc5 head (64 -> 1): VPU multiply + lane reduction, no N=1 MXU matmul
    out_ref[...] = jnp.sum(y * fw5_ref[...], axis=-1, keepdims=True) + fb5_ref[...]


def build_input(embs, X, Xt, Xs, Xi):
    # embedding gathers + concat (glue, plain JAX)
    emb_t, emb_s, emb_i = embs
    e = jnp.concatenate([emb_t[Xt], emb_s[Xs], emb_i[Xi]], axis=1)
    return jnp.concatenate([X, e], axis=1).astype(jnp.float32)


def forward(embs, kernel_args, X, Xt, Xs, Xi):
    x_in = build_input(embs, X, Xt, Xs, Xi)
    B, d_in = x_in.shape

    # batch tile: 128 rows (full MXU occupancy on v5e, good on v6e/v7x too),
    # or the smallest multiple of 8 covering B when the batch is tiny.
    TB = 128 if B >= 128 else max(8, ((B + 7) // 8) * 8)
    B_pad = ((B + TB - 1) // TB) * TB
    if B_pad != B:
        x_in = jnp.pad(x_in, ((0, B_pad - B), (0, 0)))
    grid = (B_pad // TB,)

    # weights: whole-array blocks with a constant index_map -> VMEM-resident
    # across all batch tiles (their DMA is amortized over the grid).
    w_specs = [pl.BlockSpec(a.shape, lambda i: (0, 0)) for a in kernel_args]

    out = pl.pallas_call(
        lstm_mlp_kernel,
        out_shape=jax.ShapeDtypeStruct((B_pad, 1), jnp.float32),
        grid=grid,
        in_specs=[pl.BlockSpec((TB, d_in), lambda i: (i, 0))] + w_specs,
        out_specs=pl.BlockSpec((TB, 1), lambda i: (i, 0)),
        compiler_params=pltpu.CompilerParams(
            dimension_semantics=("parallel",),
            vmem_limit_bytes=24 << 20,
        ),
    )(x_in, *kernel_args)
    return out[:B]


def reference(embs, kernel_args, X, Xt, Xs, Xi):
    # pure-JAX reference of the same math (same bf16 weights, f32 accum)
    x = build_input(embs, X, Xt, Xs, Xi)
    (w1, b1, w2, b2, w3, b3,
     fw1, fb1, fw2, fb2, fw3, fb3, fw4, fb4, fw5, fb5) = kernel_args

    def lstm(x, w, b, h):
        g = jnp.dot(x.astype(jnp.bfloat16), w,
                    preferred_element_type=jnp.float32) + b
        i = jax.nn.sigmoid(g[:, :h])
        gg = jnp.tanh(g[:, h:2 * h])
        o = jax.nn.sigmoid(g[:, 2 * h:3 * h])
        return o * jnp.tanh(i * gg)

    def fcrelu(x, w, b):
        y = jnp.dot(x.astype(jnp.bfloat16), w,
                    preferred_element_type=jnp.float32) + b
        return jnp.maximum(y, 0.0)

    h = lstm(x, w1, b1, H1)
    h = lstm(h, w2, b2, H2)
    h = lstm(h, w3, b3, H3)
    y = fcrelu(h, fw1, fb1)
    y = fcrelu(y, fw2, fb2)
    y = fcrelu(y, fw3, fb3)
    y = fcrelu(y, fw4, fb4)
    return jnp.sum(y * fw5, axis=-1, keepdims=True) + fb5


def init_params(key, num_tickers, num_sectors, num_industries, num_features):
    d_in = num_features + TICKER_DIM + SECTOR_DIM + INDUSTRY_DIM
    keys = iter(jax.random.split(key, 32))

    def rnd(shape, scale=0.05):
        return jax.random.normal(next(keys), shape, jnp.float32) * scale

    emb_t = rnd((num_tickers, TICKER_DIM), 1.0)
    emb_s = rnd((num_sectors, SECTOR_DIM), 1.0)
    emb_i = rnd((num_industries, INDUSTRY_DIM), 1.0)

    def lstm_params(in_dim, hidden):
        # PyTorch layouts: w_ih (4H, in), gate order [i, f, g, o].
        w_ih = rnd((4 * hidden, in_dim))
        b = rnd((4 * hidden,)) + rnd((4 * hidden,))   # b_ih + b_hh
        # drop the forget gate (dead: c0 = 0, seq_len = 1) -> keep [i, g, o]
        w_keep = jnp.concatenate(
            [w_ih[0:hidden], w_ih[2 * hidden:4 * hidden]], axis=0)
        b_keep = jnp.concatenate([b[0:hidden], b[2 * hidden:4 * hidden]])
        return (jnp.transpose(w_keep).astype(jnp.bfloat16),
                b_keep.reshape(1, 3 * hidden))

    w1, b1 = lstm_params(d_in, H1)
    w2, b2 = lstm_params(H1, H2)
    w3, b3 = lstm_params(H2, H3)

    def fc_bn_params(in_dim, out_dim):
        w = rnd((out_dim, in_dim))                    # PyTorch layout (out, in)
        b = rnd((out_dim,))
        # eval-mode BN fold (fresh PyTorch stats: gamma=1, beta=0, mean=0, var=1)
        gamma = jnp.ones((out_dim,), jnp.float32)
        beta = jnp.zeros((out_dim,), jnp.float32)
        mean = jnp.zeros((out_dim,), jnp.float32)
        var = jnp.ones((out_dim,), jnp.float32)
        scale = gamma * jax.lax.rsqrt(var + BN_EPS)
        w = w * scale[:, None]
        b = (b - mean) * scale + beta
        return jnp.transpose(w).astype(jnp.bfloat16), b.reshape(1, out_dim)

    fw1, fb1 = fc_bn_params(512, 512)
    fw2, fb2 = fc_bn_params(512, 256)
    fw3, fb3 = fc_bn_params(256, 128)
    fw4, fb4 = fc_bn_params(128, 64)

    # fc5 head (64 -> 1): keep as an f32 broadcast row for the VPU reduction
    fw5 = rnd((1, 64))
    fb5 = rnd((1,)).reshape(1, 1)

    kernel_args = (w1, b1, w2, b2, w3, b3,
                   fw1, fb1, fw2, fb2, fw3, fb3, fw4, fb4,
                   fw5, fb5)
    return (emb_t, emb_s, emb_i), kernel_args


if __name__ == "__main__":
    B = 8
    num_tickers, num_sectors, num_industries, num_features = 20, 5, 10, 9

    key = jax.random.PRNGKey(0)
    k_param, k_x, k_t, k_s, k_i = jax.random.split(key, 5)

    embs, kernel_args = init_params(k_param, num_tickers, num_sectors,
                                    num_industries, num_features)

    X = jax.random.normal(k_x, (B, num_features), jnp.float32)
    Xt = jax.random.randint(k_t, (B,), 0, num_tickers)
    Xs = jax.random.randint(k_s, (B,), 0, num_sectors)
    Xi = jax.random.randint(k_i, (B,), 0, num_industries)

    out = forward(embs, kernel_args, X, Xt, Xs, Xi)
    out = jax.block_until_ready(out)
    assert out.shape == (B, 1), out.shape

    ref = reference(embs, kernel_args, X, Xt, Xs, Xi)
    assert jnp.allclose(out, ref, atol=2e-3, rtol=2e-3), (out, ref)

    print("KERNEL_OK")
</pallas_src>

<mosaic_0001>
module attributes {stable_mosaic.version = 11 : i64} {
  func.func @lstm_mlp_kernel(%arg0: i32, %arg1: memref<8x64xf32, #tpu.memory_space<vmem>>, %arg2: memref<64x768xbf16, #tpu.memory_space<vmem>>, %arg3: memref<1x768xf32, #tpu.memory_space<vmem>>, %arg4: memref<256x1152xbf16, #tpu.memory_space<vmem>>, %arg5: memref<1x1152xf32, #tpu.memory_space<vmem>>, %arg6: memref<384x1536xbf16, #tpu.memory_space<vmem>>, %arg7: memref<1x1536xf32, #tpu.memory_space<vmem>>, %arg8: memref<512x512xbf16, #tpu.memory_space<vmem>>, %arg9: memref<1x512xf32, #tpu.memory_space<vmem>>, %arg10: memref<512x256xbf16, #tpu.memory_space<vmem>>, %arg11: memref<1x256xf32, #tpu.memory_space<vmem>>, %arg12: memref<256x128xbf16, #tpu.memory_space<vmem>>, %arg13: memref<1x128xf32, #tpu.memory_space<vmem>>, %arg14: memref<128x64xbf16, #tpu.memory_space<vmem>>, %arg15: memref<1x64xf32, #tpu.memory_space<vmem>>, %arg16: memref<1x64xf32, #tpu.memory_space<vmem>>, %arg17: memref<1x1xf32, #tpu.memory_space<vmem>>, %arg18: memref<8x1xf32, #tpu.memory_space<vmem>>) attributes {dimension_semantics = [#tpu.dimension_semantics<parallel>], iteration_bounds = array<i64: 1>, scalar_prefetch = 0 : i64, scratch_operands = 0 : i64, tpu.core_type = #tpu.core_type<tc>, window_params = [{transform_indices = @transform_0, window_bounds = array<i64: 8, 64>}, {pipeline_mode = #tpu.pipeline_mode<synchronous>, transform_indices = @transform_1, window_bounds = array<i64: 64, 768>}, {pipeline_mode = #tpu.pipeline_mode<synchronous>, transform_indices = @transform_2, window_bounds = array<i64: 1, 768>}, {pipeline_mode = #tpu.pipeline_mode<synchronous>, transform_indices = @transform_3, window_bounds = array<i64: 256, 1152>}, {pipeline_mode = #tpu.pipeline_mode<synchronous>, transform_indices = @transform_4, window_bounds = array<i64: 1, 1152>}, {pipeline_mode = #tpu.pipeline_mode<synchronous>, transform_indices = @transform_5, window_bounds = array<i64: 384, 1536>}, {pipeline_mode = #tpu.pipeline_mode<synchronous>, transform_indices = @transform_6, window_bounds = array<i64: 1, 1536>}, {pipeline_mode = #tpu.pipeline_mode<synchronous>, transform_indices = @transform_7, window_bounds = array<i64: 512, 512>}, {pipeline_mode = #tpu.pipeline_mode<synchronous>, transform_indices = @transform_8, window_bounds = array<i64: 1, 512>}, {pipeline_mode = #tpu.pipeline_mode<synchronous>, transform_indices = @transform_9, window_bounds = array<i64: 512, 256>}, {pipeline_mode = #tpu.pipeline_mode<synchronous>, transform_indices = @transform_10, window_bounds = array<i64: 1, 256>}, {pipeline_mode = #tpu.pipeline_mode<synchronous>, transform_indices = @transform_11, window_bounds = array<i64: 256, 128>}, {pipeline_mode = #tpu.pipeline_mode<synchronous>, transform_indices = @transform_12, window_bounds = array<i64: 1, 128>}, {pipeline_mode = #tpu.pipeline_mode<synchronous>, transform_indices = @transform_13, window_bounds = array<i64: 128, 64>}, {pipeline_mode = #tpu.pipeline_mode<synchronous>, transform_indices = @transform_14, window_bounds = array<i64: 1, 64>}, {pipeline_mode = #tpu.pipeline_mode<synchronous>, transform_indices = @transform_15, window_bounds = array<i64: 1, 64>}, {pipeline_mode = #tpu.pipeline_mode<synchronous>, transform_indices = @transform_16, window_bounds = array<i64: 1, 1>}, {transform_indices = @transform_17, window_bounds = array<i64: 8, 1>}]} {
    %c0 = arith.constant 0 : index
    %c0_0 = arith.constant 0 : index
    %0 = vector.load %arg1[%c0, %c0_0] : memref<8x64xf32, #tpu.memory_space<vmem>>, vector<8x64xf32>
    %1 = arith.truncf %0 : vector<8x64xf32> to vector<8x64xbf16>
    %c0_1 = arith.constant 0 : index
    %c0_2 = arith.constant 0 : index
    %2 = vector.load %arg2[%c0_1, %c0_2] : memref<64x768xbf16, #tpu.memory_space<vmem>>, vector<64x768xbf16>
    %cst = arith.constant dense<0.000000e+00> : vector<8x768xf32>
    %3 = tpu.matmul %1, %2, %cst {dimension_numbers = #tpu.dot_dimension_numbers<[1], [0], [0], [1], [0, 0, 1, 1], [], []>} : vector<8x64xbf16>, vector<64x768xbf16>, vector<8x768xf32> -> vector<8x768xf32>
    %c0_3 = arith.constant 0 : index
    %c0_4 = arith.constant 0 : index
    %4 = vector.load %arg3[%c0_3, %c0_4] : memref<1x768xf32, #tpu.memory_space<vmem>>, vector<1x768xf32>
    %5 = vector.broadcast %4 : vector<1x768xf32> to vector<8x768xf32>
    %6 = arith.addf %3, %5 : vector<8x768xf32>
    %7 = vector.extract_strided_slice %6 {offsets = [0, 0], sizes = [8, 256], strides = [1, 1]} : vector<8x768xf32> to vector<8x256xf32>
    %cst_5 = arith.constant 5.000000e-01 : f32
    %8 = vector.broadcast %cst_5 : f32 to vector<8x256xf32>
    %9 = arith.mulf %8, %7 : vector<8x256xf32>
    %10 = math.tanh %9 : vector<8x256xf32>
    %cst_6 = arith.constant 5.000000e-01 : f32
    %11 = vector.broadcast %cst_6 : f32 to vector<8x256xf32>
    %12 = arith.mulf %11, %10 : vector<8x256xf32>
    %cst_7 = arith.constant 5.000000e-01 : f32
    %13 = vector.broadcast %cst_7 : f32 to vector<8x256xf32>
    %14 = arith.addf %12, %13 : vector<8x256xf32>
    %15 = vector.extract_strided_slice %6 {offsets = [0, 256], sizes = [8, 256], strides = [1, 1]} : vector<8x768xf32> to vector<8x256xf32>
    %16 = math.tanh %15 : vector<8x256xf32>
    %17 = vector.extract_strided_slice %6 {offsets = [0, 512], sizes = [8, 256], strides = [1, 1]} : vector<8x768xf32> to vector<8x256xf32>
    %cst_8 = arith.constant 5.000000e-01 : f32
    %18 = vector.broadcast %cst_8 : f32 to vector<8x256xf32>
    %19 = arith.mulf %18, %17 : vector<8x256xf32>
    %20 = math.tanh %19 : vector<8x256xf32>
    %cst_9 = arith.constant 5.000000e-01 : f32
    %21 = vector.broadcast %cst_9 : f32 to vector<8x256xf32>
    %22 = arith.mulf %21, %20 : vector<8x256xf32>
    %cst_10 = arith.constant 5.000000e-01 : f32
    %23 = vector.broadcast %cst_10 : f32 to vector<8x256xf32>
    %24 = arith.addf %22, %23 : vector<8x256xf32>
    %25 = arith.mulf %14, %16 : vector<8x256xf32>
    %26 = math.tanh %25 : vector<8x256xf32>
    %27 = arith.mulf %24, %26 : vector<8x256xf32>
    %28 = arith.truncf %27 : vector<8x256xf32> to vector<8x256xbf16>
    %c0_11 = arith.constant 0 : index
    %c0_12 = arith.constant 0 : index
    %29 = vector.load %arg4[%c0_11, %c0_12] : memref<256x1152xbf16, #tpu.memory_space<vmem>>, vector<256x1152xbf16>
    %cst_13 = arith.constant dense<0.000000e+00> : vector<8x1152xf32>
    %30 = tpu.matmul %28, %29, %cst_13 {dimension_numbers = #tpu.dot_dimension_numbers<[1], [0], [0], [1], [0, 0, 1, 1], [], []>} : vector<8x256xbf16>, vector<256x1152xbf16>, vector<8x1152xf32> -> vector<8x1152xf32>
    %c0_14 = arith.constant 0 : index
    %c0_15 = arith.constant 0 : index
    %31 = vector.load %arg5[%c0_14, %c0_15] : memref<1x1152xf32, #tpu.memory_space<vmem>>, vector<1x1152xf32>
    %32 = vector.broadcast %31 : vector<1x1152xf32> to vector<8x1152xf32>
    %33 = arith.addf %30, %32 : vector<8x1152xf32>
    %34 = vector.extract_strided_slice %33 {offsets = [0, 0], sizes = [8, 384], strides = [1, 1]} : vector<8x1152xf32> to vector<8x384xf32>
    %cst_16 = arith.constant 5.000000e-01 : f32
    %35 = vector.broadcast %cst_16 : f32 to vector<8x384xf32>
    %36 = arith.mulf %35, %34 : vector<8x384xf32>
    %37 = math.tanh %36 : vector<8x384xf32>
    %cst_17 = arith.constant 5.000000e-01 : f32
    %38 = vector.broadcast %cst_17 : f32 to vector<8x384xf32>
    %39 = arith.mulf %38, %37 : vector<8x384xf32>
    %cst_18 = arith.constant 5.000000e-01 : f32
    %40 = vector.broadcast %cst_18 : f32 to vector<8x384xf32>
    %41 = arith.addf %39, %40 : vector<8x384xf32>
    %42 = vector.extract_strided_slice %33 {offsets = [0, 384], sizes = [8, 384], strides = [1, 1]} : vector<8x1152xf32> to vector<8x384xf32>
    %43 = math.tanh %42 : vector<8x384xf32>
    %44 = vector.extract_strided_slice %33 {offsets = [0, 768], sizes = [8, 384], strides = [1, 1]} : vector<8x1152xf32> to vector<8x384xf32>
    %cst_19 = arith.constant 5.000000e-01 : f32
    %45 = vector.broadcast %cst_19 : f32 to vector<8x384xf32>
    %46 = arith.mulf %45, %44 : vector<8x384xf32>
    %47 = math.tanh %46 : vector<8x384xf32>
    %cst_20 = arith.constant 5.000000e-01 : f32
    %48 = vector.broadcast %cst_20 : f32 to vector<8x384xf32>
    %49 = arith.mulf %48, %47 : vector<8x384xf32>
    %cst_21 = arith.constant 5.000000e-01 : f32
    %50 = vector.broadcast %cst_21 : f32 to vector<8x384xf32>
    %51 = arith.addf %49, %50 : vector<8x384xf32>
    %52 = arith.mulf %41, %43 : vector<8x384xf32>
    %53 = math.tanh %52 : vector<8x384xf32>
    %54 = arith.mulf %51, %53 : vector<8x384xf32>
    %55 = arith.truncf %54 : vector<8x384xf32> to vector<8x384xbf16>
    %c0_22 = arith.constant 0 : index
    %c0_23 = arith.constant 0 : index
    %56 = vector.load %arg6[%c0_22, %c0_23] : memref<384x1536xbf16, #tpu.memory_space<vmem>>, vector<384x1536xbf16>
    %cst_24 = arith.constant dense<0.000000e+00> : vector<8x1536xf32>
    %57 = tpu.matmul %55, %56, %cst_24 {dimension_numbers = #tpu.dot_dimension_numbers<[1], [0], [0], [1], [0, 0, 1, 1], [], []>} : vector<8x384xbf16>, vector<384x1536xbf16>, vector<8x1536xf32> -> vector<8x1536xf32>
    %c0_25 = arith.constant 0 : index
    %c0_26 = arith.constant 0 : index
    %58 = vector.load %arg7[%c0_25, %c0_26] : memref<1x1536xf32, #tpu.memory_space<vmem>>, vector<1x1536xf32>
    %59 = vector.broadcast %58 : vector<1x1536xf32> to vector<8x1536xf32>
    %60 = arith.addf %57, %59 : vector<8x1536xf32>
    %61 = vector.extract_strided_slice %60 {offsets = [0, 0], sizes = [8, 512], strides = [1, 1]} : vector<8x1536xf32> to vector<8x512xf32>
    %cst_27 = arith.constant 5.000000e-01 : f32
    %62 = vector.broadcast %cst_27 : f32 to vector<8x512xf32>
    %63 = arith.mulf %62, %61 : vector<8x512xf32>
    %64 = math.tanh %63 : vector<8x512xf32>
    %cst_28 = arith.constant 5.000000e-01 : f32
    %65 = vector.broadcast %cst_28 : f32 to vector<8x512xf32>
    %66 = arith.mulf %65, %64 : vector<8x512xf32>
    %cst_29 = arith.constant 5.000000e-01 : f32
    %67 = vector.broadcast %cst_29 : f32 to vector<8x512xf32>
    %68 = arith.addf %66, %67 : vector<8x512xf32>
    %69 = vector.extract_strided_slice %60 {offsets = [0, 512], sizes = [8, 512], strides = [1, 1]} : vector<8x1536xf32> to vector<8x512xf32>
    %70 = math.tanh %69 : vector<8x512xf32>
    %71 = vector.extract_strided_slice %60 {offsets = [0, 1024], sizes = [8, 512], strides = [1, 1]} : vector<8x1536xf32> to vector<8x512xf32>
    %cst_30 = arith.constant 5.000000e-01 : f32
    %72 = vector.broadcast %cst_30 : f32 to vector<8x512xf32>
    %73 = arith.mulf %72, %71 : vector<8x512xf32>
    %74 = math.tanh %73 : vector<8x512xf32>
    %cst_31 = arith.constant 5.000000e-01 : f32
    %75 = vector.broadcast %cst_31 : f32 to vector<8x512xf32>
    %76 = arith.mulf %75, %74 : vector<8x512xf32>
    %cst_32 = arith.constant 5.000000e-01 : f32
    %77 = vector.broadcast %cst_32 : f32 to vector<8x512xf32>
    %78 = arith.addf %76, %77 : vector<8x512xf32>
    %79 = arith.mulf %68, %70 : vector<8x512xf32>
    %80 = math.tanh %79 : vector<8x512xf32>
    %81 = arith.mulf %78, %80 : vector<8x512xf32>
    %82 = arith.truncf %81 : vector<8x512xf32> to vector<8x512xbf16>
    %c0_33 = arith.constant 0 : index
    %c0_34 = arith.constant 0 : index
    %83 = vector.load %arg8[%c0_33, %c0_34] : memref<512x512xbf16, #tpu.memory_space<vmem>>, vector<512x512xbf16>
    %cst_35 = arith.constant dense<0.000000e+00> : vector<8x512xf32>
    %84 = tpu.matmul %82, %83, %cst_35 {dimension_numbers = #tpu.dot_dimension_numbers<[1], [0], [0], [1], [0, 0, 1, 1], [], []>} : vector<8x512xbf16>, vector<512x512xbf16>, vector<8x512xf32> -> vector<8x512xf32>
    %c0_36 = arith.constant 0 : index
    %c0_37 = arith.constant 0 : index
    %85 = vector.load %arg9[%c0_36, %c0_37] : memref<1x512xf32, #tpu.memory_space<vmem>>, vector<1x512xf32>
    %86 = vector.broadcast %85 : vector<1x512xf32> to vector<8x512xf32>
    %87 = arith.addf %84, %86 : vector<8x512xf32>
    %cst_38 = arith.constant 0.000000e+00 : f32
    %88 = vector.broadcast %cst_38 : f32 to vector<8x512xf32>
    %89 = arith.maximumf %87, %88 : vector<8x512xf32>
    %90 = arith.truncf %89 : vector<8x512xf32> to vector<8x512xbf16>
    %c0_39 = arith.constant 0 : index
    %c0_40 = arith.constant 0 : index
    %91 = vector.load %arg10[%c0_39, %c0_40] : memref<512x256xbf16, #tpu.memory_space<vmem>>, vector<512x256xbf16>
    %cst_41 = arith.constant dense<0.000000e+00> : vector<8x256xf32>
    %92 = tpu.matmul %90, %91, %cst_41 {dimension_numbers = #tpu.dot_dimension_numbers<[1], [0], [0], [1], [0, 0, 1, 1], [], []>} : vector<8x512xbf16>, vector<512x256xbf16>, vector<8x256xf32> -> vector<8x256xf32>
    %c0_42 = arith.constant 0 : index
    %c0_43 = arith.constant 0 : index
    %93 = vector.load %arg11[%c0_42, %c0_43] : memref<1x256xf32, #tpu.memory_space<vmem>>, vector<1x256xf32>
    %94 = vector.broadcast %93 : vector<1x256xf32> to vector<8x256xf32>
    %95 = arith.addf %92, %94 : vector<8x256xf32>
    %cst_44 = arith.constant 0.000000e+00 : f32
    %96 = vector.broadcast %cst_44 : f32 to vector<8x256xf32>
    %97 = arith.maximumf %95, %96 : vector<8x256xf32>
    %98 = arith.truncf %97 : vector<8x256xf32> to vector<8x256xbf16>
    %c0_45 = arith.constant 0 : index
    %c0_46 = arith.constant 0 : index
    %99 = vector.load %arg12[%c0_45, %c0_46] : memref<256x128xbf16, #tpu.memory_space<vmem>>, vector<256x128xbf16>
    %cst_47 = arith.constant dense<0.000000e+00> : vector<8x128xf32>
    %100 = tpu.matmul %98, %99, %cst_47 {dimension_numbers = #tpu.dot_dimension_numbers<[1], [0], [0], [1], [0, 0, 1, 1], [], []>} : vector<8x256xbf16>, vector<256x128xbf16>, vector<8x128xf32> -> vector<8x128xf32>
    %c0_48 = arith.constant 0 : index
    %c0_49 = arith.constant 0 : index
    %101 = vector.load %arg13[%c0_48, %c0_49] : memref<1x128xf32, #tpu.memory_space<vmem>>, vector<1x128xf32>
    %102 = vector.broadcast %101 : vector<1x128xf32> to vector<8x128xf32>
    %103 = arith.addf %100, %102 : vector<8x128xf32>
    %cst_50 = arith.constant 0.000000e+00 : f32
    %104 = vector.broadcast %cst_50 : f32 to vector<8x128xf32>
    %105 = arith.maximumf %103, %104 : vector<8x128xf32>
    %106 = arith.truncf %105 : vector<8x128xf32> to vector<8x128xbf16>
    %c0_51 = arith.constant 0 : index
    %c0_52 = arith.constant 0 : index
    %107 = vector.load %arg14[%c0_51, %c0_52] : memref<128x64xbf16, #tpu.memory_space<vmem>>, vector<128x64xbf16>
    %cst_53 = arith.constant dense<0.000000e+00> : vector<8x64xf32>
    %108 = tpu.matmul %106, %107, %cst_53 {dimension_numbers = #tpu.dot_dimension_numbers<[1], [0], [0], [1], [0, 0, 1, 1], [], []>} : vector<8x128xbf16>, vector<128x64xbf16>, vector<8x64xf32> -> vector<8x64xf32>
    %c0_54 = arith.constant 0 : index
    %c0_55 = arith.constant 0 : index
    %109 = vector.load %arg15[%c0_54, %c0_55] : memref<1x64xf32, #tpu.memory_space<vmem>>, vector<1x64xf32>
    %110 = vector.broadcast %109 : vector<1x64xf32> to vector<8x64xf32>
    %111 = arith.addf %108, %110 : vector<8x64xf32>
    %cst_56 = arith.constant 0.000000e+00 : f32
    %112 = vector.broadcast %cst_56 : f32 to vector<8x64xf32>
    %113 = arith.maximumf %111, %112 : vector<8x64xf32>
    %c0_57 = arith.constant 0 : index
    %c0_58 = arith.constant 0 : index
    %114 = vector.load %arg16[%c0_57, %c0_58] : memref<1x64xf32, #tpu.memory_space<vmem>>, vector<1x64xf32>
    %115 = vector.broadcast %114 : vector<1x64xf32> to vector<8x64xf32>
    %116 = arith.mulf %113, %115 : vector<8x64xf32>
    %cst_59 = arith.constant dense<0.000000e+00> : vector<8xf32>
    %117 = vector.multi_reduction <add>, %116, %cst_59 [1] : vector<8x64xf32> to vector<8xf32>
    %118 = vector.shape_cast %117 : vector<8xf32> to vector<8x1xf32>
    %c0_60 = arith.constant 0 : index
    %c0_61 = arith.constant 0 : index
    %119 = vector.load %arg17[%c0_60, %c0_61] : memref<1x1xf32, #tpu.memory_space<vmem>>, vector<1x1xf32>
    %120 = vector.broadcast %119 : vector<1x1xf32> to vector<8x1xf32>
    %121 = arith.addf %118, %120 : vector<8x1xf32>
    %c0_62 = arith.constant 0 : index
    %c0_63 = arith.constant 0 : index
    %122 = vector.load %arg18[%c0_62, %c0_63] : memref<8x1xf32, #tpu.memory_space<vmem>>, vector<8x1xf32>
    tpu.vector_store %arg18[%c0_62, %c0_63], %121 {strides = array<i32>} : memref<8x1xf32, #tpu.memory_space<vmem>>, vector<8x1xf32>,
    return
  }
  func.func @transform_0(%arg0: i32) -> (i32, i32) {
    %c0_i32 = arith.constant 0 : i32
    %c0_i32_0 = arith.constant 0 : i32
    return %arg0, %c0_i32 : i32, i32
  }
  func.func @transform_1(%arg0: i32) -> (i32, i32) {
    %c0_i32 = arith.constant 0 : i32
    %c0_i32_0 = arith.constant 0 : i32
    %c0_i32_1 = arith.constant 0 : i32
    return %c0_i32, %c0_i32_0 : i32, i32
  }
  func.func @transform_2(%arg0: i32) -> (i32, i32) {
    %c0_i32 = arith.constant 0 : i32
    %c0_i32_0 = arith.constant 0 : i32
    %c0_i32_1 = arith.constant 0 : i32
    return %c0_i32, %c0_i32_0 : i32, i32
  }
  func.func @transform_3(%arg0: i32) -> (i32, i32) {
    %c0_i32 = arith.constant 0 : i32
    %c0_i32_0 = arith.constant 0 : i32
    %c0_i32_1 = arith.constant 0 : i32
    return %c0_i32, %c0_i32_0 : i32, i32
  }
  func.func @transform_4(%arg0: i32) -> (i32, i32) {
    %c0_i32 = arith.constant 0 : i32
    %c0_i32_0 = arith.constant 0 : i32
    %c0_i32_1 = arith.constant 0 : i32
    return %c0_i32, %c0_i32_0 : i32, i32
  }
  func.func @transform_5(%arg0: i32) -> (i32, i32) {
    %c0_i32 = arith.constant 0 : i32
    %c0_i32_0 = arith.constant 0 : i32
    %c0_i32_1 = arith.constant 0 : i32
    return %c0_i32, %c0_i32_0 : i32, i32
  }
  func.func @transform_6(%arg0: i32) -> (i32, i32) {
    %c0_i32 = arith.constant 0 : i32
    %c0_i32_0 = arith.constant 0 : i32
    %c0_i32_1 = arith.constant 0 : i32
    return %c0_i32, %c0_i32_0 : i32, i32
  }
  func.func @transform_7(%arg0: i32) -> (i32, i32) {
    %c0_i32 = arith.constant 0 : i32
    %c0_i32_0 = arith.constant 0 : i32
    %c0_i32_1 = arith.constant 0 : i32
    return %c0_i32, %c0_i32_0 : i32, i32
  }
  func.func @transform_8(%arg0: i32) -> (i32, i32) {
    %c0_i32 = arith.constant 0 : i32
    %c0_i32_0 = arith.constant 0 : i32
    %c0_i32_1 = arith.constant 0 : i32
    return %c0_i32, %c0_i32_0 : i32, i32
  }
  func.func @transform_9(%arg0: i32) -> (i32, i32) {
    %c0_i32 = arith.constant 0 : i32
    %c0_i32_0 = arith.constant 0 : i32
    %c0_i32_1 = arith.constant 0 : i32
    return %c0_i32, %c0_i32_0 : i32, i32
  }
  func.func @transform_10(%arg0: i32) -> (i32, i32) {
    %c0_i32 = arith.constant 0 : i32
    %c0_i32_0 = arith.constant 0 : i32
    %c0_i32_1 = arith.constant 0 : i32
    return %c0_i32, %c0_i32_0 : i32, i32
  }
  func.func @transform_11(%arg0: i32) -> (i32, i32) {
    %c0_i32 = arith.constant 0 : i32
    %c0_i32_0 = arith.constant 0 : i32
    %c0_i32_1 = arith.constant 0 : i32
    return %c0_i32, %c0_i32_0 : i32, i32
  }
  func.func @transform_12(%arg0: i32) -> (i32, i32) {
    %c0_i32 = arith.constant 0 : i32
    %c0_i32_0 = arith.constant 0 : i32
    %c0_i32_1 = arith.constant 0 : i32
    return %c0_i32, %c0_i32_0 : i32, i32
  }
  func.func @transform_13(%arg0: i32) -> (i32, i32) {
    %c0_i32 = arith.constant 0 : i32
    %c0_i32_0 = arith.constant 0 : i32
    %c0_i32_1 = arith.constant 0 : i32
    return %c0_i32, %c0_i32_0 : i32, i32
  }
  func.func @transform_14(%arg0: i32) -> (i32, i32) {
    %c0_i32 = arith.constant 0 : i32
    %c0_i32_0 = arith.constant 0 : i32
    %c0_i32_1 = arith.constant 0 : i32
    return %c0_i32, %c0_i32_0 : i32, i32
  }
  func.func @transform_15(%arg0: i32) -> (i32, i32) {
    %c0_i32 = arith.constant 0 : i32
    %c0_i32_0 = arith.constant 0 : i32
    %c0_i32_1 = arith.constant 0 : i32
    return %c0_i32, %c0_i32_0 : i32, i32
  }
  func.func @transform_16(%arg0: i32) -> (i32, i32) {
    %c0_i32 = arith.constant 0 : i32
    %c0_i32_0 = arith.constant 0 : i32
    %c0_i32_1 = arith.constant 0 : i32
    return %c0_i32, %c0_i32_0 : i32, i32
  }
  func.func @transform_17(%arg0: i32) -> (i32, i32) {
    %c0_i32 = arith.constant 0 : i32
    %c0_i32_0 = arith.constant 0 : i32
    return %arg0, %c0_i32 : i32, i32
  }
}

</mosaic_0001>

<llo_original>
// kernel: tpu_custom_call.1
$region0: #{tpu_custom_call.1}
  #allocation0 [shape = 'u32[]', space=smem, size = 0x4, offset = 0x4, fixed_abs, tag = 'smem constant byte address 0x4 - core index']
  #allocation1 [shape = 'u32[144,128]{1,0:T(1,128)}', space=vmem, size = 0x12000, scoped, tag = 'internal scratch']
  #allocation2 [shape = 'f32[1,1]{1,0:T(1,128)S(1)}', space=vmem, size = 0x200, scoped, tag = 'scoped memory for tpu_custom_call.1']
  %s0 = inlined_call_operand.hbm [shape: f32[8,64], index: 0, kind: input, shape index: {}]
  %s1 = inlined_call_operand.hbm [shape: bf16[64,768], index: 1, kind: input, shape index: {}]
  %s2 = inlined_call_operand.hbm [shape: f32[1,768], index: 2, kind: input, shape index: {}]
  %s3 = inlined_call_operand.hbm [shape: bf16[256,1152], index: 3, kind: input, shape index: {}]
  %s4 = inlined_call_operand.hbm [shape: f32[1,1152], index: 4, kind: input, shape index: {}]
  %s5 = inlined_call_operand.hbm [shape: bf16[384,1536], index: 5, kind: input, shape index: {}]
  %s6 = inlined_call_operand.hbm [shape: f32[1,1536], index: 6, kind: input, shape index: {}]
  %s7 = inlined_call_operand.hbm [shape: bf16[512,512], index: 7, kind: input, shape index: {}]
  %s8 = inlined_call_operand.hbm [shape: f32[1,512], index: 8, kind: input, shape index: {}]
  %s9 = inlined_call_operand.hbm [shape: bf16[512,256], index: 9, kind: input, shape index: {}]
  %s10 = inlined_call_operand.hbm [shape: f32[1,256], index: 10, kind: input, shape index: {}]
  %s11 = inlined_call_operand.hbm [shape: bf16[256,128], index: 11, kind: input, shape index: {}]
  %s12 = inlined_call_operand.hbm [shape: f32[1,128], index: 12, kind: input, shape index: {}]
  %s13 = inlined_call_operand.vmem [shape: bf16[128,64], index: 13, kind: input, shape index: {}]
  %s14 = inlined_call_operand.hbm [shape: f32[1,64], index: 14, kind: input, shape index: {}]
  %s15 = inlined_call_operand.hbm [shape: f32[1,64], index: 15, kind: input, shape index: {}]
  %s16 = inlined_call_operand.<no memory space> [shape: f32[1,1], index: 16, kind: input, shape index: {}]
  %s17 = inlined_call_operand.vmem [shape: f32[8,1], index: 17, kind: output, shape index: {}]
  %s18 = sld [smem:[#allocation0]]
  $region138: #{tpu_custom_call.1} parent=0
    _
  %s20 = ssub.s32 1, %s18
  %s21 = scalar_select 0, %s20, %s18
  %v22 = vstv %s16
  %23 = vst [vmem:[#allocation2] sm:$0x1] %v22
  $region1: #{tpu_custom_call.1} parent=0
    #allocation3 [shape = 'u8[4096]{0}', space=vmem, size = 0x1000, scoped, tag = 'input window, operand 0, single buffered']
    #allocation4 [shape = 's32[1]{0}', space=sflag, size = 0x4, scoped, tag = 'scoped memory for tpu_custom_call.1']
    #allocation5 [shape = 'u8[98304]{0}', space=vmem, size = 0x18000, scoped, tag = 'input window, operand 1, single buffered']
    #allocation6 [shape = 's32[1]{0}', space=sflag, size = 0x4, scoped, tag = 'scoped memory for tpu_custom_call.1']
    #allocation7 [shape = 'u8[3072]{0}', space=vmem, size = 0xc00, scoped, tag = 'input window, operand 2, single buffered']
    #allocation8 [shape = 'u8[589824]{0}', space=vmem, size = 0x90000, scoped, tag = 'input window, operand 3, single buffered']
    #allocation9 [shape = 's32[1]{0}', space=sflag, size = 0x4, scoped, tag = 'scoped memory for tpu_custom_call.1']
    #allocation10 [shape = 'u8[4608]{0}', space=vmem, size = 0x1400, scoped, tag = 'input window, operand 4, single buffered']
    #allocation11 [shape = 'u8[1179648]{0}', space=vmem, size = 0x120000, scoped, tag = 'input window, operand 5, single buffered']
    #allocation12 [shape = 's32[1]{0}', space=sflag, size = 0x4, scoped, tag = 'scoped memory for tpu_custom_call.1']
    #allocation13 [shape = 'u8[6144]{0}', space=vmem, size = 0x1800, scoped, tag = 'input window, operand 6, single buffered']
    #allocation14 [shape = 'u8[524288]{0}', space=vmem, size = 0x80000, scoped, tag = 'input window, operand 7, single buffered']
    #allocation15 [shape = 's32[1]{0}', space=sflag, size = 0x4, scoped, tag = 'scoped memory for tpu_custom_call.1']
    #allocation16 [shape = 'u8[2048]{0}', space=vmem, size = 0x800, scoped, tag = 'input window, operand 8, single buffered']
    #allocation17 [shape = 'u8[262144]{0}', space=vmem, size = 0x40000, scoped, tag = 'input window, operand 9, single buffered']
    #allocation18 [shape = 's32[1]{0}', space=sflag, size = 0x4, scoped, tag = 'scoped memory for tpu_custom_call.1']
    #allocation19 [shape = 'u8[1024]{0}', space=vmem, size = 0x400, scoped, tag = 'input window, operand 10, single buffered']
    #allocation20 [shape = 'u8[65536]{0}', space=vmem, size = 0x10000, scoped, tag = 'input window, operand 11, single buffered']
    #allocation21 [shape = 's32[1]{0}', space=sflag, size = 0x4, scoped, tag = 'scoped memory for tpu_custom_call.1']
    #allocation22 [shape = 'u8[512]{0}', space=vmem, size = 0x400, scoped, tag = 'input window, operand 12, single buffered']
    #allocation23 [shape = 'u8[512]{0}', space=vmem, size = 0x400, scoped, tag = 'input window, operand 14, single buffered']
    #allocation24 [shape = 's32[1]{0}', space=sflag, size = 0x4, scoped, tag = 'scoped memory for tpu_custom_call.1']
    #allocation25 [shape = 'u8[512]{0}', space=vmem, size = 0x400, scoped, tag = 'input window, operand 15, single buffered']
    %24 = vsyncpa [#allocation4], 0
    %25 = vsyncpa [#allocation6], 0
    %26 = vsyncpa [#allocation9], 0
    %27 = vsyncpa [#allocation12], 0
    %28 = vsyncpa [#allocation15], 0
    %29 = vsyncpa [#allocation18], 0
    %30 = vsyncpa [#allocation21], 0
    %31 = vsyncpa [#allocation24], 0
    // Predicated region
    $region2: #{tpu_custom_call.1} parent=1 // pred_check
      _
    $region3: #{tpu_custom_call.1} parent=1 // pred_check_branch
      %33 = sbr.rel (0) target = $region5
    $region4: #{tpu_custom_call.1} parent=1 // pred_region
      %s35 = ssub.s32 128, 128
      %36 = vsyncadd [#allocation4], %s35
      %s38 = sshll.u32 [#allocation3], 4
      %s39 = int_to_ptr.vmem [resolvable:$true] %s38
      %41 = dma.hbm_to_vmem [thread:$0]  %s0, 128, %s39, [#allocation4]
    $region5: #{tpu_custom_call.1} parent=1 // pred_fallthru
      _
    // Predicated region
    $region6: #{tpu_custom_call.1} parent=1 // pred_check
      _
    $region7: #{tpu_custom_call.1} parent=1 // pred_check_branch
      %43 = sbr.rel (0) target = $region9
    $region8: #{tpu_custom_call.1} parent=1 // pred_region
      %s45 = ssub.s32 3072, 3072
      %46 = vsyncadd [#allocation6], %s45
      %s47 = sshll.u32 [#allocation5], 4
      %s48 = int_to_ptr.vmem [resolvable:$true] %s47
      %53 = dma.hbm_to_vmem [thread:$0]  %s1, 3072, %s48, [#allocation6], 384, 384, 24
    $region9: #{tpu_custom_call.1} parent=1 // pred_fallthru
      _
    // Predicated region
    $region10: #{tpu_custom_call.1} parent=1 // pred_check
      _
    $region11: #{tpu_custom_call.1} parent=1 // pred_check_branch
      %55 = sbr.rel (0) target = $region13
    $region12: #{tpu_custom_call.1} parent=1 // pred_region
      %s57 = ssub.s32 96, 96
      %58 = vsyncadd [#allocation6], %s57
      %s60 = sshll.u32 [#allocation7], 4
      %s61 = int_to_ptr.vmem [resolvable:$true] %s60
      %63 = dma.hbm_to_vmem [thread:$0]  %s2, 96, %s61, [#allocation6]
    $region13: #{tpu_custom_call.1} parent=1 // pred_fallthru
      _
    // Predicated region
    $region14: #{tpu_custom_call.1} parent=1 // pred_check
      _
    $region15: #{tpu_custom_call.1} parent=1 // pred_check_branch
      %65 = sbr.rel (0) target = $region17
    $region16: #{tpu_custom_call.1} parent=1 // pred_region
      %s67 = ssub.s32 18432, 18432
      %68 = vsyncadd [#allocation9], %s67
      %s69 = sshll.u32 [#allocation8], 4
      %s70 = int_to_ptr.vmem [resolvable:$true] %s69
      %75 = dma.hbm_to_vmem [thread:$0]  %s3, 18432, %s70, [#allocation9], 576, 576, 36
    $region17: #{tpu_custom_call.1} parent=1 // pred_fallthru
      _
    // Predicated region
    $region18: #{tpu_custom_call.1} parent=1 // pred_check
      _
    $region19: #{tpu_custom_call.1} parent=1 // pred_check_branch
      %77 = sbr.rel (0) target = $region21
    $region20: #{tpu_custom_call.1} parent=1 // pred_region
      %s79 = ssub.s32 144, 144
      %80 = vsyncadd [#allocation9], %s79
      %s82 = sshll.u32 [#allocation10], 4
      %s83 = int_to_ptr.vmem [resolvable:$true] %s82
      %85 = dma.hbm_to_vmem [thread:$0]  %s4, 144, %s83, [#allocation9]
    $region21: #{tpu_custom_call.1} parent=1 // pred_fallthru
      _
    // Predicated region
    $region22: #{tpu_custom_call.1} parent=1 // pred_check
      _
    $region23: #{tpu_custom_call.1} parent=1 // pred_check_branch
      %87 = sbr.rel (0) target = $region25
    $region24: #{tpu_custom_call.1} parent=1 // pred_region
      %s89 = ssub.s32 36864, 36864
      %90 = vsyncadd [#allocation12], %s89
      %s91 = sshll.u32 [#allocation11], 4
      %s92 = int_to_ptr.vmem [resolvable:$true] %s91
      %97 = dma.hbm_to_vmem [thread:$0]  %s5, 36864, %s92, [#allocation12], 768, 768, 48
    $region25: #{tpu_custom_call.1} parent=1 // pred_fallthru
      _
    // Predicated region
    $region26: #{tpu_custom_call.1} parent=1 // pred_check
      _
    $region27: #{tpu_custom_call.1} parent=1 // pred_check_branch
      %99 = sbr.rel (0) target = $region29
    $region28: #{tpu_custom_call.1} parent=1 // pred_region
      %s101 = ssub.s32 192, 192
      %102 = vsyncadd [#allocation12], %s101
      %s104 = sshll.u32 [#allocation13], 4
      %s105 = int_to_ptr.vmem [resolvable:$true] %s104
      %107 = dma.hbm_to_vmem [thread:$0]  %s6, 192, %s105, [#allocation12]
    $region29: #{tpu_custom_call.1} parent=1 // pred_fallthru
      _
    // Predicated region
    $region30: #{tpu_custom_call.1} parent=1 // pred_check
      _
    $region31: #{tpu_custom_call.1} parent=1 // pred_check_branch
      %109 = sbr.rel (0) target = $region33
    $region32: #{tpu_custom_call.1} parent=1 // pred_region
      %s111 = ssub.s32 16384, 16384
      %112 = vsyncadd [#allocation15], %s111
      %s113 = sshll.u32 [#allocation14], 4
      %s114 = int_to_ptr.vmem [resolvable:$true] %s113
      %119 = dma.hbm_to_vmem [thread:$0]  %s7, 16384, %s114, [#allocation15], 256, 256, 16
    $region33: #{tpu_custom_call.1} parent=1 // pred_fallthru
      _
    // Predicated region
    $region34: #{tpu_custom_call.1} parent=1 // pred_check
      _
    $region35: #{tpu_custom_call.1} parent=1 // pred_check_branch
      %121 = sbr.rel (0) target = $region37
    $region36: #{tpu_custom_call.1} parent=1 // pred_region
      %s123 = ssub.s32 64, 64
      %124 = vsyncadd [#allocation15], %s123
      %s126 = sshll.u32 [#allocation16], 4
      %s127 = int_to_ptr.vmem [resolvable:$true] %s126
      %129 = dma.hbm_to_vmem [thread:$0]  %s8, 64, %s127, [#allocation15]
    $region37: #{tpu_custom_call.1} parent=1 // pred_fallthru
      _
    // Predicated region
    $region38: #{tpu_custom_call.1} parent=1 // pred_check
      _
    $region39: #{tpu_custom_call.1} parent=1 // pred_check_branch
      %131 = sbr.rel (0) target = $region41
    $region40: #{tpu_custom_call.1} parent=1 // pred_region
      %s133 = ssub.s32 8192, 8192
      %134 = vsyncadd [#allocation18], %s133
      %s135 = sshll.u32 [#allocation17], 4
      %s136 = int_to_ptr.vmem [resolvable:$true] %s135
      %141 = dma.hbm_to_vmem [thread:$0]  %s9, 8192, %s136, [#allocation18], 128, 128, 8
    $region41: #{tpu_custom_call.1} parent=1 // pred_fallthru
      _
    // Predicated region
    $region42: #{tpu_custom_call.1} parent=1 // pred_check
      _
    $region43: #{tpu_custom_call.1} parent=1 // pred_check_branch
      %143 = sbr.rel (0) target = $region45
    $region44: #{tpu_custom_call.1} parent=1 // pred_region
      %s145 = ssub.s32 32, 32
      %146 = vsyncadd [#allocation18], %s145
      %s148 = sshll.u32 [#allocation19], 4
      %s149 = int_to_ptr.vmem [resolvable:$true] %s148
      %151 = dma.hbm_to_vmem [thread:$0]  %s10, 32, %s149, [#allocation18]
    $region45: #{tpu_custom_call.1} parent=1 // pred_fallthru
      _
    // Predicated region
    $region46: #{tpu_custom_call.1} parent=1 // pred_check
      _
    $region47: #{tpu_custom_call.1} parent=1 // pred_check_branch
      %153 = sbr.rel (0) target = $region49
    $region48: #{tpu_custom_call.1} parent=1 // pred_region
      %s155 = ssub.s32 2048, 2048
      %156 = vsyncadd [#allocation21], %s155
      %s157 = sshll.u32 [#allocation20], 4
      %s158 = int_to_ptr.vmem [resolvable:$true] %s157
      %163 = dma.hbm_to_vmem [thread:$0]  %s11, 2048, %s158, [#allocation21], 64, 64, 4
    $region49: #{tpu_custom_call.1} parent=1 // pred_fallthru
      _
    // Predicated region
    $region50: #{tpu_custom_call.1} parent=1 // pred_check
      _
    $region51: #{tpu_custom_call.1} parent=1 // pred_check_branch
      %165 = sbr.rel (0) target = $region53
    $region52: #{tpu_custom_call.1} parent=1 // pred_region
      %s167 = ssub.s32 16, 16
      %168 = vsyncadd [#allocation21], %s167
      %s170 = sshll.u32 [#allocation22], 4
      %s171 = int_to_ptr.vmem [resolvable:$true] %s170
      %173 = dma.hbm_to_vmem [thread:$0]  %s12, 16, %s171, [#allocation21]
    $region53: #{tpu_custom_call.1} parent=1 // pred_fallthru
      _
    // Predicated region
    $region54: #{tpu_custom_call.1} parent=1 // pred_check
      _
    $region55: #{tpu_custom_call.1} parent=1 // pred_check_branch
      %175 = sbr.rel (0) target = $region57
    $region56: #{tpu_custom_call.1} parent=1 // pred_region
      _
    $region57: #{tpu_custom_call.1} parent=1 // pred_fallthru
      _
    // Predicated region
    $region58: #{tpu_custom_call.1} parent=1 // pred_check
      _
    $region59: #{tpu_custom_call.1} parent=1 // pred_check_branch
      %177 = sbr.rel (0) target = $region61
    $region60: #{tpu_custom_call.1} parent=1 // pred_region
      %s179 = ssub.s32 16, 16
      %180 = vsyncadd [#allocation24], %s179
      %s182 = sshll.u32 [#allocation23], 4
      %s183 = int_to_ptr.vmem [resolvable:$true] %s182
      %185 = dma.hbm_to_vmem [thread:$0]  %s14, 16, %s183, [#allocation24]
    $region61: #{tpu_custom_call.1} parent=1 // pred_fallthru
      _
    // Predicated region
    $region62: #{tpu_custom_call.1} parent=1 // pred_check
      _
    $region63: #{tpu_custom_call.1} parent=1 // pred_check_branch
      %187 = sbr.rel (0) target = $region65
    $region64: #{tpu_custom_call.1} parent=1 // pred_region
      %s189 = ssub.s32 16, 16
      %190 = vsyncadd [#allocation24], %s189
      %s192 = sshll.u32 [#allocation25], 4
      %s193 = int_to_ptr.vmem [resolvable:$true] %s192
      %195 = dma.hbm_to_vmem [thread:$0]  %s15, 16, %s193, [#allocation24]
    $region65: #{tpu_custom_call.1} parent=1 // pred_fallthru
      _
    // Predicated region
    $region66: #{tpu_custom_call.1} parent=1 // pred_check
      _
    $region67: #{tpu_custom_call.1} parent=1 // pred_check_branch
      %197 = sbr.rel (0) target = $region69
    $region68: #{tpu_custom_call.1} parent=1 // pred_region
      _
    $region69: #{tpu_custom_call.1} parent=1 // pred_fallthru
      _
    // Predicated region
    $region70: #{tpu_custom_call.1} parent=1 // pred_check
      _
    $region71: #{tpu_custom_call.1} parent=1 // pred_check_branch
      %199 = sbr.rel (0) target = $region73
    $region72: #{tpu_custom_call.1} parent=1 // pred_region
      %200 = dma.done [#allocation4], 128
    $region73: #{tpu_custom_call.1} parent=1 // pred_fallthru
      _
    // Predicated region
    $region74: #{tpu_custom_call.1} parent=1 // pred_check
      _
    $region75: #{tpu_custom_call.1} parent=1 // pred_check_branch
      %202 = sbr.rel (0) target = $region77
    $region76: #{tpu_custom_call.1} parent=1 // pred_region
      %203 = dma.done [#allocation6], 3072
    $region77: #{tpu_custom_call.1} parent=1 // pred_fallthru
      _
    // Predicated region
    $region78: #{tpu_custom_call.1} parent=1 // pred_check
      _
    $region79: #{tpu_custom_call.1} parent=1 // pred_check_branch
      %205 = sbr.rel (0) target = $region81
    $region80: #{tpu_custom_call.1} parent=1 // pred_region
      %206 = dma.done [#allocation6], 96
    $region81: #{tpu_custom_call.1} parent=1 // pred_fallthru
      _
    // Predicated region
    $region82: #{tpu_custom_call.1} parent=1 // pred_check
      _
    $region83: #{tpu_custom_call.1} parent=1 // pred_check_branch
      %208 = sbr.rel (0) target = $region85
    $region84: #{tpu_custom_call.1} parent=1 // pred_region
      %209 = dma.done [#allocation9], 18432
    $region85: #{tpu_custom_call.1} parent=1 // pred_fallthru
      _
    // Predicated region
    $region86: #{tpu_custom_call.1} parent=1 // pred_check
      _
    $region87: #{tpu_custom_call.1} parent=1 // pred_check_branch
      %211 = sbr.rel (0) target = $region89
    $region88: #{tpu_custom_call.1} parent=1 // pred_region
      %212 = dma.done [#allocation9], 144
    $region89: #{tpu_custom_call.1} parent=1 // pred_fallthru
      _
    // Predicated region
    $region90: #{tpu_custom_call.1} parent=1 // pred_check
      _
    $region91: #{tpu_custom_call.1} parent=1 // pred_check_branch
      %214 = sbr.rel (0) target = $region93
    $region92: #{tpu_custom_call.1} parent=1 // pred_region
      %215 = dma.done [#allocation12], 36864
    $region93: #{tpu_custom_call.1} parent=1 // pred_fallthru
      _
    // Predicated region
    $region94: #{tpu_custom_call.1} parent=1 // pred_check
      _
    $region95: #{tpu_custom_call.1} parent=1 // pred_check_branch
      %217 = sbr.rel (0) target = $region97
    $region96: #{tpu_custom_call.1} parent=1 // pred_region
      %218 = dma.done [#allocation12], 192
    $region97: #{tpu_custom_call.1} parent=1 // pred_fallthru
      _
    // Predicated region
    $region98: #{tpu_custom_call.1} parent=1 // pred_check
      _
    $region99: #{tpu_custom_call.1} parent=1 // pred_check_branch
      %220 = sbr.rel (0) target = $region101
    $region100: #{tpu_custom_call.1} parent=1 // pred_region
      %221 = dma.done [#allocation15], 16384
    $region101: #{tpu_custom_call.1} parent=1 // pred_fallthru
      _
    // Predicated region
    $region102: #{tpu_custom_call.1} parent=1 // pred_check
      _
    $region103: #{tpu_custom_call.1} parent=1 // pred_check_branch
      %223 = sbr.rel (0) target = $region105
    $region104: #{tpu_custom_call.1} parent=1 // pred_region
      %224 = dma.done [#allocation15], 64
    $region105: #{tpu_custom_call.1} parent=1 // pred_fallthru
      _
    // Predicated region
    $region106: #{tpu_custom_call.1} parent=1 // pred_check
      _
    $region107: #{tpu_custom_call.1} parent=1 // pred_check_branch
      %226 = sbr.rel (0) target = $region109
    $region108: #{tpu_custom_call.1} parent=1 // pred_region
      %227 = dma.done [#allocation18], 8192
    $region109: #{tpu_custom_call.1} parent=1 // pred_fallthru
      _
    // Predicated region
    $region110: #{tpu_custom_call.1} parent=1 // pred_check
      _
    $region111: #{tpu_custom_call.1} parent=1 // pred_check_branch
      %229 = sbr.rel (0) target = $region113
    $region112: #{tpu_custom_call.1} parent=1 // pred_region
      %230 = dma.done [#allocation18], 32
    $region113: #{tpu_custom_call.1} parent=1 // pred_fallthru
      _
    // Predicated region
    $region114: #{tpu_custom_call.1} parent=1 // pred_check
      _
    $region115: #{tpu_custom_call.1} parent=1 // pred_check_branch
      %232 = sbr.rel (0) target = $region117
    $region116: #{tpu_custom_call.1} parent=1 // pred_region
      %233 = dma.done [#allocation21], 2048
    $region117: #{tpu_custom_call.1} parent=1 // pred_fallthru
      _
    // Predicated region
    $region118: #{tpu_custom_call.1} parent=1 // pred_check
      _
    $region119: #{tpu_custom_call.1} parent=1 // pred_check_branch
      %235 = sbr.rel (0) target = $region121
    $region120: #{tpu_custom_call.1} parent=1 // pred_region
      %236 = dma.done [#allocation21], 16
    $region121: #{tpu_custom_call.1} parent=1 // pred_fallthru
      _
    // Predicated region
    $region122: #{tpu_custom_call.1} parent=1 // pred_check
      _
    $region123: #{tpu_custom_call.1} parent=1 // pred_check_branch
      %238 = sbr.rel (0) target = $region125
    $region124: #{tpu_custom_call.1} parent=1 // pred_region
      %239 = dma.done [#allocation24], 16
    $region125: #{tpu_custom_call.1} parent=1 // pred_fallthru
      _
    // Predicated region
    $region126: #{tpu_custom_call.1} parent=1 // pred_check
      _
    $region127: #{tpu_custom_call.1} parent=1 // pred_check_branch
      %241 = sbr.rel (0) target = $region129
    $region128: #{tpu_custom_call.1} parent=1 // pred_region
      %242 = dma.done [#allocation24], 16
    $region129: #{tpu_custom_call.1} parent=1 // pred_fallthru
      _
    %v244 = vld [vmem:[#allocation3] sm:$0xff]
    %v245 = vpack.c.bf16 %v244, %v244
    %v246 = vld [vmem:[#allocation5] sm:$0xff]
    %v247 = vld [vmem:[#allocation5 + $0x8] sm:$0xff]
    %v248 = vld [vmem:[#allocation5 + $0x10] sm:$0xff]
    %v249 = vld [vmem:[#allocation5 + $0x18] sm:$0xff]
    %v250 = vld [vmem:[#allocation5 + $0x20] sm:$0xff]
    %v251 = vld [vmem:[#allocation5 + $0x28] sm:$0xff]
    %v252 = vld [vmem:[#allocation5 + $0x30] sm:$0xff]
    %v253 = vld [vmem:[#allocation5 + $0x38] sm:$0xff]
    %v254 = vld [vmem:[#allocation5 + $0x40] sm:$0xff]
    %v255 = vld [vmem:[#allocation5 + $0x48] sm:$0xff]
    %v256 = vld [vmem:[#allocation5 + $0x50] sm:$0xff]
    %v257 = vld [vmem:[#allocation5 + $0x58] sm:$0xff]
    %v258 = vld [vmem:[#allocation5 + $0x60] sm:$0xff]
    %v259 = vld [vmem:[#allocation5 + $0x68] sm:$0xff]
    %v260 = vld [vmem:[#allocation5 + $0x70] sm:$0xff]
    %v261 = vld [vmem:[#allocation5 + $0x78] sm:$0xff]
    %v262 = vld [vmem:[#allocation5 + $0x80] sm:$0xff]
    %v263 = vld [vmem:[#allocation5 + $0x88] sm:$0xff]
    %v264 = vld [vmem:[#allocation5 + $0x90] sm:$0xff]
    %v265 = vld [vmem:[#allocation5 + $0x98] sm:$0xff]
    %v266 = vld [vmem:[#allocation5 + $0xa0] sm:$0xff]
    %v267 = vld [vmem:[#allocation5 + $0xa8] sm:$0xff]
    %v268 = vld [vmem:[#allocation5 + $0xb0] sm:$0xff]
    %v269 = vld [vmem:[#allocation5 + $0xb8] sm:$0xff]
    %v270 = vld [vmem:[#allocation7] sm:$0x3f]
    %v272 = vlaneseq
    %v273 = vshrl.u32 %v272, 7
    %v274 = vsub.s32 0, %v273
    %v275 = vrot.slane %v270, %v274
    %v276 = vlaneseq
    %v277 = vshrl.u32 %v276, 7
    %v278 = vsub.s32 1, %v277
    %v279 = vrot.slane %v270, %v278
    %v280 = vlaneseq
    %v281 = vshrl.u32 %v280, 7
    %v282 = vsub.s32 2, %v281
    %v283 = vrot.slane %v270, %v282
    %v284 = vlaneseq
    %v285 = vshrl.u32 %v284, 7
    %v286 = vsub.s32 3, %v285
    %v287 = vrot.slane %v270, %v286
    %v288 = vlaneseq
    %v289 = vshrl.u32 %v288, 7
    %v290 = vsub.s32 4, %v289
    %v291 = vrot.slane %v270, %v290
    %v292 = vlaneseq
    %v293 = vshrl.u32 %v292, 7
    %v294 = vsub.s32 5, %v293
    %v295 = vrot.slane %v270, %v294
    %v326 = vunpack.c.l.b16 %v246
    %v327 = vunpack.c.h.b16 %v246
    %v328 = vunpack.c.l.b16 %v247
    %v329 = vunpack.c.h.b16 %v247
    %v330 = vunpack.c.l.b16 %v248
    %v331 = vunpack.c.h.b16 %v248
    %v332 = vunpack.c.l.b16 %v249
    %v333 = vunpack.c.h.b16 %v249
    %v334 = vunpack.c.l.b16 %v250
    %v335 = vunpack.c.h.b16 %v250
    %v336 = vunpack.c.l.b16 %v251
    %v337 = vunpack.c.h.b16 %v251
    %v338 = vunpack.c.l.b16 %v252
    %v339 = vunpack.c.h.b16 %v252
    %v340 = vunpack.c.l.b16 %v253
    %v341 = vunpack.c.h.b16 %v253
    %v342 = vunpack.c.l.b16 %v254
    %v343 = vunpack.c.h.b16 %v254
    %v344 = vunpack.c.l.b16 %v255
    %v345 = vunpack.c.h.b16 %v255
    %v346 = vunpack.c.l.b16 %v256
    %v347 = vunpack.c.h.b16 %v256
    %v348 = vunpack.c.l.b16 %v257
    %v349 = vunpack.c.h.b16 %v257
    %v350 = vunpack.c.l.b16 %v258
    %v351 = vunpack.c.h.b16 %v258
    %v352 = vunpack.c.l.b16 %v259
    %v353 = vunpack.c.h.b16 %v259
    %v354 = vunpack.c.l.b16 %v260
    %v355 = vunpack.c.h.b16 %v260
    %v356 = vunpack.c.l.b16 %v261
    %v357 = vunpack.c.h.b16 %v261
    %v358 = vunpack.c.l.b16 %v262
    %v359 = vunpack.c.h.b16 %v262
    %v360 = vunpack.c.l.b16 %v263
    %v361 = vunpack.c.h.b16 %v263
    %v362 = vunpack.c.l.b16 %v264
    %v363 = vunpack.c.h.b16 %v264
    %v364 = vunpack.c.l.b16 %v265
    %v365 = vunpack.c.h.b16 %v265
    %v366 = vunpack.c.l.b16 %v266
    %v367 = vunpack.c.h.b16 %v266
    %v368 = vunpack.c.l.b16 %v267
    %v369 = vunpack.c.h.b16 %v267
    %v370 = vunpack.c.l.b16 %v268
    %v371 = vunpack.c.h.b16 %v268
    %v372 = vunpack.c.l.b16 %v269
    %v373 = vunpack.c.h.b16 %v269
    %v374 = vpack.c.b16 %v332, %v326
    %v375 = vpack.c.b16 %v333, %v327
    %v376 = vpack.c.b16 %v334, %v328
    %v377 = vpack.c.b16 %v335, %v329
    %v378 = vpack.c.b16 %v336, %v330
    %v379 = vpack.c.b16 %v337, %v331
    %v380 = vpack.c.b16 %v344, %v338
    %v381 = vpack.c.b16 %v345, %v339
    %v382 = vpack.c.b16 %v346, %v340
    %v383 = vpack.c.b16 %v347, %v341
    %v384 = vpack.c.b16 %v348, %v342
    %v385 = vpack.c.b16 %v349, %v343
    %v386 = vpack.c.b16 %v356, %v350
    %v387 = vpack.c.b16 %v357, %v351
    %v388 = vpack.c.b16 %v358, %v352
    %v389 = vpack.c.b16 %v359, %v353
    %v390 = vpack.c.b16 %v360, %v354
    %v391 = vpack.c.b16 %v361, %v355
    %v392 = vpack.c.b16 %v368, %v362
    %v393 = vpack.c.b16 %v369, %v363
    %v394 = vpack.c.b16 %v370, %v364
    %v395 = vpack.c.b16 %v371, %v365
    %v396 = vpack.c.b16 %v372, %v366
    %v397 = vpack.c.b16 %v373, %v367
    %vm422 = vcmask 523264
    %v424 = vsel %vm422, %v245, 0
    %426 = vmatprep.subr.bf16.mxu0 %v375
    %427 = vmatpush1.bf16.msra.mxu0 %v374
    %428 = vmatprep.subr.bf16.mxu0 %v381
    %429 = vmatpush1.bf16.msra.mxu0 %v380
    %430 = vmatprep.subr.bf16.mxu0 %v387
    %431 = vmatpush1.bf16.msra.mxu0 %v386
    %432 = vmatprep.subr.bf16.mxu0 %v393
    %433 = vmatpush1.bf16.msra.mxu0 %v392
    %434 = vmatprep.subr.bf16.mxu0 0
    %435 = vmatpush1.bf16.msra.mxu0 0
    %436 = vmatprep.subr.bf16.mxu0 0
    %437 = vmatpush1.bf16.msra.mxu0 0
    %438 = vmatprep.subr.bf16.mxu0 0
    %439 = vmatpush1.bf16.msra.mxu0 0
    %440 = vmatprep.subr.bf16.mxu0 0
    %441 = vmatpush1.bf16.msra.mxu0 0
    %442 = vmatprep.subr.bf16.mxu0 0
    %443 = vmatpush1.bf16.msra.mxu0 0
    %444 = vmatprep.subr.bf16.mxu0 0
    %445 = vmatpush1.bf16.msra.mxu0 0
    %446 = vmatprep.subr.bf16.mxu0 0
    %447 = vmatpush1.bf16.msra.mxu0 0
    %448 = vmatprep.subr.bf16.mxu0 0
    %449 = vmatpush1.bf16.msra.mxu0 0
    %450 = vmatprep.subr.bf16.mxu0 0
    %451 = vmatpush1.bf16.msra.mxu0 0
    %452 = vmatprep.subr.bf16.mxu0 0
    %453 = vmatpush1.bf16.msra.mxu0 0
    %454 = vmatprep.subr.bf16.mxu0 0
    %455 = vmatpush1.bf16.msra.mxu0 0
    %456 = vmatprep.subr.bf16.mxu0 0
    %457 = vmatpush1.bf16.msra.mxu0 0
    %458 = vmatprep.mubr.bf16.mxu0 0
    %459 = vmatmul.mubr.bf16.gmra.mrb[0].mxu0 %v424
    %v460 = vpop.f32.mrb[0].mxu0
    %v461 = vadd.f32 %v275, %v460
    %v462 = vpop.f32.mrb[0].mxu0
    %v463 = vadd.f32 %v279, %v462
    %v464 = vpop.f32.mrb[0].mxu0
    %v465 = vpop.f32.mrb[0].mxu0
    %466 = vdwg.mxu0
    %467 = vmatprep.subr.bf16.mxu0 %v377
    %468 = vmatpush1.bf16.msra.mxu0 %v376
    %469 = vmatprep.subr.bf16.mxu0 %v383
    %470 = vmatpush1.bf16.msra.mxu0 %v382
    %471 = vmatprep.subr.bf16.mxu0 %v389
    %472 = vmatpush1.bf16.msra.mxu0 %v388
    %473 = vmatprep.subr.bf16.mxu0 %v395
    %474 = vmatpush1.bf16.msra.mxu0 %v394
    %475 = vmatprep.subr.bf16.mxu0 0
    %476 = vmatpush1.bf16.msra.mxu0 0
    %477 = vmatprep.subr.bf16.mxu0 0
    %478 = vmatpush1.bf16.msra.mxu0 0
    %479 = vmatprep.subr.bf16.mxu0 0
    %480 = vmatpush1.bf16.msra.mxu0 0
    %481 = vmatprep.subr.bf16.mxu0 0
    %482 = vmatpush1.bf16.msra.mxu0 0
    %483 = vmatprep.subr.bf16.mxu0 0
    %484 = vmatpush1.bf16.msra.mxu0 0
    %485 = vmatprep.subr.bf16.mxu0 0
    %486 = vmatpush1.bf16.msra.mxu0 0
    %487 = vmatprep.subr.bf16.mxu0 0
    %488 = vmatpush1.bf16.msra.mxu0 0
    %489 = vmatprep.subr.bf16.mxu0 0
    %490 = vmatpush1.bf16.msra.mxu0 0
    %491 = vmatprep.subr.bf16.mxu0 0
    %492 = vmatpush1.bf16.msra.mxu0 0
    %493 = vmatprep.subr.bf16.mxu0 0
    %494 = vmatpush1.bf16.msra.mxu0 0
    %495 = vmatprep.subr.bf16.mxu0 0
    %496 = vmatpush1.bf16.msra.mxu0 0
    %497 = vmatprep.subr.bf16.mxu0 0
    %498 = vmatpush1.bf16.msra.mxu0 0
    %499 = vmatprep.mubr.bf16.mxu0 0
    %500 = vmatmul.mubr.bf16.gmra.mrb[0].mxu0 %v424
    %v501 = vpop.f32.mrb[0].mxu0
    %v502 = vadd.f32 %v283, %v501
    %v503 = vpop.f32.mrb[0].mxu0
    %v504 = vadd.f32 %v287, %v503
    %v505 = vpop.f32.mrb[0].mxu0
    %v506 = vpop.f32.mrb[0].mxu0
    %507 = vdwg.mxu0
    %508 = vmatprep.subr.bf16.mxu0 %v379
    %509 = vmatpush1.bf16.msra.mxu0 %v378
    %510 = vmatprep.subr.bf16.mxu0 %v385
    %511 = vmatpush1.bf16.msra.mxu0 %v384
    %512 = vmatprep.subr.bf16.mxu0 %v391
    %513 = vmatpush1.bf16.msra.mxu0 %v390
    %514 = vmatprep.subr.bf16.mxu0 %v397
    %515 = vmatpush1.bf16.msra.mxu0 %v396
    %516 = vmatprep.subr.bf16.mxu0 0
    %517 = vmatpush1.bf16.msra.mxu0 0
    %518 = vmatprep.subr.bf16.mxu0 0
    %519 = vmatpush1.bf16.msra.mxu0 0
    %520 = vmatprep.subr.bf16.mxu0 0
    %521 = vmatpush1.bf16.msra.mxu0 0
    %522 = vmatprep.subr.bf16.mxu0 0
    %523 = vmatpush1.bf16.msra.mxu0 0
    %524 = vmatprep.subr.bf16.mxu0 0
    %525 = vmatpush1.bf16.msra.mxu0 0
    %526 = vmatprep.subr.bf16.mxu0 0
    %527 = vmatpush1.bf16.msra.mxu0 0
    %528 = vmatprep.subr.bf16.mxu0 0
    %529 = vmatpush1.bf16.msra.mxu0 0
    %530 = vmatprep.subr.bf16.mxu0 0
    %531 = vmatpush1.bf16.msra.mxu0 0
    %532 = vmatprep.subr.bf16.mxu0 0
    %533 = vmatpush1.bf16.msra.mxu0 0
    %534 = vmatprep.subr.bf16.mxu0 0
    %535 = vmatpush1.bf16.msra.mxu0 0
    %536 = vmatprep.subr.bf16.mxu0 0
    %537 = vmatpush1.bf16.msra.mxu0 0
    %538 = vmatprep.subr.bf16.mxu0 0
    %539 = vmatpush1.bf16.msra.mxu0 0
    %540 = vmatprep.mubr.bf16.mxu0 0
    %541 = vmatmul.mubr.bf16.gmra.mrb[0].mxu0 %v424
    %v542 = vpop.f32.mrb[0].mxu0
    %v543 = vadd.f32 %v291, %v542
    %v544 = vpop.f32.mrb[0].mxu0
    %v545 = vadd.f32 %v295, %v544
    %v546 = vpop.f32.mrb[0].mxu0
    %v547 = vpop.f32.mrb[0].mxu0
    %548 = vdwg.mxu0
    %v549 = vmul.f32 %v461, 0.5
    %v550 = vmul.f32 %v463, 0.5
    %v551 = vtanh.pop %v549
    %v552 = vtanh.pop %v550
    %v553 = vmul.f32 %v551, 0.5
    %v554 = vmul.f32 %v552, 0.5
    %v555 = vadd.f32 %v553, 0.5
    %v556 = vadd.f32 %v554, 0.5
    %v557 = vtanh.pop %v502
    %v558 = vtanh.pop %v504
    %v559 = vmul.f32 %v543, 0.5
    %v560 = vmul.f32 %v545, 0.5
    %v561 = vtanh.pop %v559
    %v562 = vtanh.pop %v560
    %v563 = vmul.f32 %v561, 0.5
    %v564 = vmul.f32 %v562, 0.5
    %v565 = vadd.f32 %v563, 0.5
    %v566 = vadd.f32 %v564, 0.5
    %v567 = vmul.f32 %v555, %v557
    %v568 = vmul.f32 %v556, %v558
    %v569 = vtanh.pop %v567
    %v570 = vtanh.pop %v568
    %v571 = vmul.f32 %v565, %v569
    %v572 = vmul.f32 %v566, %v570
    %v573 = vpack.c.bf16 %v571, %v571
    %v574 = vpack.c.bf16 %v572, %v572
    %v575 = vld [vmem:[#allocation8] sm:$0xff]
    %v576 = vld [vmem:[#allocation8 + $0x8] sm:$0xff]
    %v577 = vld [vmem:[#allocation8 + $0x10] sm:$0xff]
    %v578 = vld [vmem:[#allocation8 + $0x18] sm:$0xff]
    %v579 = vld [vmem:[#allocation8 + $0x20] sm:$0xf]
    %v580 = vld [vmem:[#allocation8 + $0x24] sm:$0xff]
    %v581 = vld [vmem:[#allocation8 + $0x2c] sm:$0xff]
    %v582 = vld [vmem:[#allocation8 + $0x34] sm:$0xff]
    %v583 = vld [vmem:[#allocation8 + $0x3c] sm:$0xff]
    %v584 = vld [vmem:[#allocation8 + $0x44] sm:$0xf]
    %v585 = vld [vmem:[#allocation8 + $0x48] sm:$0xff]
    %v586 = vld [vmem:[#allocation8 + $0x50] sm:$0xff]
    %v587 = vld [vmem:[#allocation8 + $0x58] sm:$0xff]
    %v588 = vld [vmem:[#allocation8 + $0x60] sm:$0xff]
    %v589 = vld [vmem:[#allocation8 + $0x68] sm:$0xf]
    %v590 = vld [vmem:[#allocation8 + $0x6c] sm:$0xff]
    %v591 = vld [vmem:[#allocation8 + $0x74] sm:$0xff]
    %v592 = vld [vmem:[#allocation8 + $0x7c] sm:$0xff]
    %v593 = vld [vmem:[#allocation8 + $0x84] sm:$0xff]
    %v594 = vld [vmem:[#allocation8 + $0x8c] sm:$0xf]
    %v595 = vld [vmem:[#allocation8 + $0x90] sm:$0xff]
    %v596 = vld [vmem:[#allocation8 + $0x98] sm:$0xff]
    %v597 = vld [vmem:[#allocation8 + $0xa0] sm:$0xff]
    %v598 = vld [vmem:[#allocation8 + $0xa8] sm:$0xff]
    %v599 = vld [vmem:[#allocation8 + $0xb0] sm:$0xf]
    %v600 = vld [vmem:[#allocation8 + $0xb4] sm:$0xff]
    %v601 = vld [vmem:[#allocation8 + $0xbc] sm:$0xff]
    %v602 = vld [vmem:[#allocation8 + $0xc4] sm:$0xff]
    %v603 = vld [vmem:[#allocation8 + $0xcc] sm:$0xff]
    %v604 = vld [vmem:[#allocation8 + $0xd4] sm:$0xf]
    %v605 = vld [vmem:[#allocation8 + $0xd8] sm:$0xff]
    %v606 = vld [vmem:[#allocation8 + $0xe0] sm:$0xff]
    %v607 = vld [vmem:[#allocation8 + $0xe8] sm:$0xff]
    %v608 = vld [vmem:[#allocation8 + $0xf0] sm:$0xff]
    %v609 = vld [vmem:[#allocation8 + $0xf8] sm:$0xf]
    %v610 = vld [vmem:[#allocation8 + $0xfc] sm:$0xff]
    %v611 = vld [vmem:[#allocation8 + $0x104] sm:$0xff]
    %v612 = vld [vmem:[#allocation8 + $0x10c] sm:$0xff]
    %v613 = vld [vmem:[#allocation8 + $0x114] sm:$0xff]
    %v614 = vld [vmem:[#allocation8 + $0x11c] sm:$0xf]
    %v615 = vld [vmem:[#allocation8 + $0x120] sm:$0xff]
    %v616 = vld [vmem:[#allocation8 + $0x128] sm:$0xff]
    %v617 = vld [vmem:[#allocation8 + $0x130] sm:$0xff]
    %v618 = vld [vmem:[#allocation8 + $0x138] sm:$0xff]
    %v619 = vld [vmem:[#allocation8 + $0x140] sm:$0xf]
    %v620 = vld [vmem:[#allocation8 + $0x144] sm:$0xff]
    %v621 = vld [vmem:[#allocation8 + $0x14c] sm:$0xff]
    %v622 = vld [vmem:[#allocation8 + $0x154] sm:$0xff]
    %v623 = vld [vmem:[#allocation8 + $0x15c] sm:$0xff]
    %v624 = vld [vmem:[#allocation8 + $0x164] sm:$0xf]
    %v625 = vld [vmem:[#allocation8 + $0x168] sm:$0xff]
    %v626 = vld [vmem:[#allocation8 + $0x170] sm:$0xff]
    %v627 = vld [vmem:[#allocation8 + $0x178] sm:$0xff]
    %v628 = vld [vmem:[#allocation8 + $0x180] sm:$0xff]
    %v629 = vld [vmem:[#allocation8 + $0x188] sm:$0xf]
    %v630 = vld [vmem:[#allocation8 + $0x18c] sm:$0xff]
    %v631 = vld [vmem:[#allocation8 + $0x194] sm:$0xff]
    %v632 = vld [vmem:[#allocation8 + $0x19c] sm:$0xff]
    %v633 = vld [vmem:[#allocation8 + $0x1a4] sm:$0xff]
    %v634 = vld [vmem:[#allocation8 + $0x1ac] sm:$0xf]
    %v635 = vld [vmem:[#allocation8 + $0x1b0] sm:$0xff]
    %v636 = vld [vmem:[#allocation8 + $0x1b8] sm:$0xff]
    %v637 = vld [vmem:[#allocation8 + $0x1c0] sm:$0xff]
    %v638 = vld [vmem:[#allocation8 + $0x1c8] sm:$0xff]
    %v639 = vld [vmem:[#allocation8 + $0x1d0] sm:$0xf]
    %v640 = vld [vmem:[#allocation8 + $0x1d4] sm:$0xff]
    %v641 = vld [vmem:[#allocation8 + $0x1dc] sm:$0xff]
    %v642 = vld [vmem:[#allocation8 + $0x1e4] sm:$0xff]
    %v643 = vld [vmem:[#allocation8 + $0x1ec] sm:$0xff]
    %v644 = vld [vmem:[#allocation8 + $0x1f4] sm:$0xf]
    %v645 = vld [vmem:[#allocation8 + $0x1f8] sm:$0xff]
    %v646 = vld [vmem:[#allocation8 + $0x200] sm:$0xff]
    %v647 = vld [vmem:[#allocation8 + $0x208] sm:$0xff]
    %v648 = vld [vmem:[#allocation8 + $0x210] sm:$0xff]
    %v649 = vld [vmem:[#allocation8 + $0x218] sm:$0xf]
    %v650 = vld [vmem:[#allocation8 + $0x21c] sm:$0xff]
    %v651 = vld [vmem:[#allocation8 + $0x224] sm:$0xff]
    %v652 = vld [vmem:[#allocation8 + $0x22c] sm:$0xff]
    %v653 = vld [vmem:[#allocation8 + $0x234] sm:$0xff]
    %v654 = vld [vmem:[#allocation8 + $0x23c] sm:$0xf]
    %v655 = vld [vmem:[#allocation8 + $0x240] sm:$0xff]
    %v656 = vld [vmem:[#allocation8 + $0x248] sm:$0xff]
    %v657 = vld [vmem:[#allocation8 + $0x250] sm:$0xff]
    %v658 = vld [vmem:[#allocation8 + $0x258] sm:$0xff]
    %v659 = vld [vmem:[#allocation8 + $0x260] sm:$0xf]
    %v660 = vld [vmem:[#allocation8 + $0x264] sm:$0xff]
    %v661 = vld [vmem:[#allocation8 + $0x26c] sm:$0xff]
    %v662 = vld [vmem:[#allocation8 + $0x274] sm:$0xff]
    %v663 = vld [vmem:[#allocation8 + $0x27c] sm:$0xff]
    %v664 = vld [vmem:[#allocation8 + $0x284] sm:$0xf]
    %v665 = vld [vmem:[#allocation8 + $0x288] sm:$0xff]
    %v666 = vld [vmem:[#allocation8 + $0x290] sm:$0xff]
    %v667 = vld [vmem:[#allocation8 + $0x298] sm:$0xff]
    %v668 = vld [vmem:[#allocation8 + $0x2a0] sm:$0xff]
    %v669 = vld [vmem:[#allocation8 + $0x2a8] sm:$0xf]
    %v670 = vld [vmem:[#allocation8 + $0x2ac] sm:$0xff]
    %v671 = vld [vmem:[#allocation8 + $0x2b4] sm:$0xff]
    %v672 = vld [vmem:[#allocation8 + $0x2bc] sm:$0xff]
    %v673 = vld [vmem:[#allocation8 + $0x2c4] sm:$0xff]
    %v674 = vld [vmem:[#allocation8 + $0x2cc] sm:$0xf]
    %v675 = vld [vmem:[#allocation8 + $0x2d0] sm:$0xff]
    %v676 = vld [vmem:[#allocation8 + $0x2d8] sm:$0xff]
    %v677 = vld [vmem:[#allocation8 + $0x2e0] sm:$0xff]
    %v678 = vld [vmem:[#allocation8 + $0x2e8] sm:$0xff]
    %v679 = vld [vmem:[#allocation8 + $0x2f0] sm:$0xf]
    %v680 = vld [vmem:[#allocation8 + $0x2f4] sm:$0xff]
    %v681 = vld [vmem:[#allocation8 + $0x2fc] sm:$0xff]
    %v682 = vld [vmem:[#allocation8 + $0x304] sm:$0xff]
    %v683 = vld [vmem:[#allocation8 + $0x30c] sm:$0xff]
    %v684 = vld [vmem:[#allocation8 + $0x314] sm:$0xf]
    %v685 = vld [vmem:[#allocation8 + $0x318] sm:$0xff]
    %v686 = vld [vmem:[#allocation8 + $0x320] sm:$0xff]
    %v687 = vld [vmem:[#allocation8 + $0x328] sm:$0xff]
    %v688 = vld [vmem:[#allocation8 + $0x330] sm:$0xff]
    %v689 = vld [vmem:[#allocation8 + $0x338] sm:$0xf]
    %v690 = vld [vmem:[#allocation8 + $0x33c] sm:$0xff]
    %v691 = vld [vmem:[#allocation8 + $0x344] sm:$0xff]
    %v692 = vld [vmem:[#allocation8 + $0x34c] sm:$0xff]
    %v693 = vld [vmem:[#allocation8 + $0x354] sm:$0xff]
    %v694 = vld [vmem:[#allocation8 + $0x35c] sm:$0xf]
    %v695 = vld [vmem:[#allocation8 + $0x360] sm:$0xff]
    %v696 = vld [vmem:[#allocation8 + $0x368] sm:$0xff]
    %v697 = vld [vmem:[#allocation8 + $0x370] sm:$0xff]
    %v698 = vld [vmem:[#allocation8 + $0x378] sm:$0xff]
    %v699 = vld [vmem:[#allocation8 + $0x380] sm:$0xf]
    %v700 = vld [vmem:[#allocation8 + $0x384] sm:$0xff]
    %v701 = vld [vmem:[#allocation8 + $0x38c] sm:$0xff]
    %v702 = vld [vmem:[#allocation8 + $0x394] sm:$0xff]
    %v703 = vld [vmem:[#allocation8 + $0x39c] sm:$0xff]
    %v704 = vld [vmem:[#allocation8 + $0x3a4] sm:$0xf]
    %v705 = vld [vmem:[#allocation8 + $0x3a8] sm:$0xff]
    %v706 = vld [vmem:[#allocation8 + $0x3b0] sm:$0xff]
    %v707 = vld [vmem:[#allocation8 + $0x3b8] sm:$0xff]
    %v708 = vld [vmem:[#allocation8 + $0x3c0] sm:$0xff]
    %v709 = vld [vmem:[#allocation8 + $0x3c8] sm:$0xf]
    %v710 = vld [vmem:[#allocation8 + $0x3cc] sm:$0xff]
    %v711 = vld [vmem:[#allocation8 + $0x3d4] sm:$0xff]
    %v712 = vld [vmem:[#allocation8 + $0x3dc] sm:$0xff]
    %v713 = vld [vmem:[#allocation8 + $0x3e4] sm:$0xff]
    %v714 = vld [vmem:[#allocation8 + $0x3ec] sm:$0xf]
    %v715 = vld [vmem:[#allocation8 + $0x3f0] sm:$0xff]
    %v716 = vld [vmem:[#allocation8 + $0x3f8] sm:$0xff]
    %v717 = vld [vmem:[#allocation8 + $0x400] sm:$0xff]
    %v718 = vld [vmem:[#allocation8 + $0x408] sm:$0xff]
    %v719 = vld [vmem:[#allocation8 + $0x410] sm:$0xf]
    %v720 = vld [vmem:[#allocation8 + $0x414] sm:$0xff]
    %v721 = vld [vmem:[#allocation8 + $0x41c] sm:$0xff]
    %v722 = vld [vmem:[#allocation8 + $0x424] sm:$0xff]
    %v723 = vld [vmem:[#allocation8 + $0x42c] sm:$0xff]
    %v724 = vld [vmem:[#allocation8 + $0x434] sm:$0xf]
    %v725 = vld [vmem:[#allocation8 + $0x438] sm:$0xff]
    %v726 = vld [vmem:[#allocation8 + $0x440] sm:$0xff]
    %v727 = vld [vmem:[#allocation8 + $0x448] sm:$0xff]
    %v728 = vld [vmem:[#allocation8 + $0x450] sm:$0xff]
    %v729 = vld [vmem:[#allocation8 + $0x458] sm:$0xf]
    %v730 = vld [vmem:[#allocation8 + $0x45c] sm:$0xff]
    %v731 = vld [vmem:[#allocation8 + $0x464] sm:$0xff]
    %v732 = vld [vmem:[#allocation8 + $0x46c] sm:$0xff]
    %v733 = vld [vmem:[#allocation8 + $0x474] sm:$0xff]
    %v734 = vld [vmem:[#allocation8 + $0x47c] sm:$0xf]
    %v735 = vld [vmem:[#allocation10] sm:$0xff]
    %v736 = vld [vmem:[#allocation10 + $0x8] sm:$0x1]
    %v739 = vlaneseq
    %v740 = vshrl.u32 %v739, 7
    %v741 = vsub.s32 0, %v740
    %v742 = vrot.slane %v735, %v741
    %v743 = vlaneseq
    %v744 = vshrl.u32 %v743, 7
    %v745 = vsub.s32 1, %v744
    %v746 = vrot.slane %v735, %v745
    %v747 = vlaneseq
    %v748 = vshrl.u32 %v747, 7
    %v749 = vsub.s32 2, %v748
    %v750 = vrot.slane %v735, %v749
    %v751 = vlaneseq
    %v752 = vshrl.u32 %v751, 7
    %v753 = vsub.s32 3, %v752
    %v754 = vrot.slane %v735, %v753
    %v755 = vlaneseq
    %v756 = vshrl.u32 %v755, 7
    %v757 = vsub.s32 4, %v756
    %v758 = vrot.slane %v735, %v757
    %v759 = vlaneseq
    %v760 = vshrl.u32 %v759, 7
    %v761 = vsub.s32 5, %v760
    %v762 = vrot.slane %v735, %v761
    %v763 = vlaneseq
    %v764 = vshrl.u32 %v763, 7
    %v765 = vsub.s32 6, %v764
    %v766 = vrot.slane %v735, %v765
    %v767 = vlaneseq
    %v768 = vshrl.u32 %v767, 7
    %v769 = vsub.s32 7, %v768
    %v770 = vrot.slane %v735, %v769
    %v771 = vlaneseq
    %v772 = vshrl.u32 %v771, 7
    %v773 = vsub.s32 0, %v772
    %v774 = vrot.slane %v736, %v773
    %v944 = vunpack.c.l.b16 %v575
    %v945 = vunpack.c.h.b16 %v575
    %v946 = vunpack.c.l.b16 %v576
    %v947 = vunpack.c.h.b16 %v576
    %v948 = vunpack.c.l.b16 %v577
    %v949 = vunpack.c.h.b16 %v577
    %v950 = vunpack.c.l.b16 %v578
    %v951 = vunpack.c.h.b16 %v578
    %v952 = vunpack.c.l.b16 %v579
    %v953 = vunpack.c.l.b16 %v580
    %v954 = vunpack.c.h.b16 %v580
    %v955 = vunpack.c.l.b16 %v581
    %v956 = vunpack.c.h.b16 %v581
    %v957 = vunpack.c.l.b16 %v582
    %v958 = vunpack.c.h.b16 %v582
    %v959 = vunpack.c.l.b16 %v583
    %v960 = vunpack.c.h.b16 %v583
    %v961 = vunpack.c.l.b16 %v584
    %v962 = vunpack.c.l.b16 %v585
    %v963 = vunpack.c.h.b16 %v585
    %v964 = vunpack.c.l.b16 %v586
    %v965 = vunpack.c.h.b16 %v586
    %v966 = vunpack.c.l.b16 %v587
    %v967 = vunpack.c.h.b16 %v587
    %v968 = vunpack.c.l.b16 %v588
    %v969 = vunpack.c.h.b16 %v588
    %v970 = vunpack.c.l.b16 %v589
    %v971 = vunpack.c.l.b16 %v590
    %v972 = vunpack.c.h.b16 %v590
    %v973 = vunpack.c.l.b16 %v591
    %v974 = vunpack.c.h.b16 %v591
    %v975 = vunpack.c.l.b16 %v592
    %v976 = vunpack.c.h.b16 %v592
    %v977 = vunpack.c.l.b16 %v593
    %v978 = vunpack.c.h.b16 %v593
    %v979 = vunpack.c.l.b16 %v594
    %v980 = vunpack.c.l.b16 %v595
    %v981 = vunpack.c.h.b16 %v595
    %v982 = vunpack.c.l.b16 %v596
    %v983 = vunpack.c.h.b16 %v596
    %v984 = vunpack.c.l.b16 %v597
    %v985 = vunpack.c.h.b16 %v597
    %v986 = vunpack.c.l.b16 %v598
    %v987 = vunpack.c.h.b16 %v598
    %v988 = vunpack.c.l.b16 %v599
    %v989 = vunpack.c.l.b16 %v600
    %v990 = vunpack.c.h.b16 %v600
    %v991 = vunpack.c.l.b16 %v601
    %v992 = vunpack.c.h.b16 %v601
    %v993 = vunpack.c.l.b16 %v602
    %v994 = vunpack.c.h.b16 %v602
    %v995 = vunpack.c.l.b16 %v603
    %v996 = vunpack.c.h.b16 %v603
    %v997 = vunpack.c.l.b16 %v604
    %v998 = vunpack.c.l.b16 %v605
    %v999 = vunpack.c.h.b16 %v605
    %v1000 = vunpack.c.l.b16 %v606
    %v1001 = vunpack.c.h.b16 %v606
    %v1002 = vunpack.c.l.b16 %v607
    %v1003 = vunpack.c.h.b16 %v607
    %v1004 = vunpack.c.l.b16 %v608
    %v1005 = vunpack.c.h.b16 %v608
    %v1006 = vunpack.c.l.b16 %v609
    %v1007 = vunpack.c.l.b16 %v610
    %v1008 = vunpack.c.h.b16 %v610
    %v1009 = vunpack.c.l.b16 %v611
    %v1010 = vunpack.c.h.b16 %v611
    %v1011 = vunpack.c.l.b16 %v612
    %v1012 = vunpack.c.h.b16 %v612
    %v1013 = vunpack.c.l.b16 %v613
    %v1014 = vunpack.c.h.b16 %v613
    %v1015 = vunpack.c.l.b16 %v614
    %v1016 = vunpack.c.l.b16 %v615
    %v1017 = vunpack.c.h.b16 %v615
    %v1018 = vunpack.c.l.b16 %v616
    %v1019 = vunpack.c.h.b16 %v616
    %v1020 = vunpack.c.l.b16 %v617
    %v1021 = vunpack.c.h.b16 %v617
    %v1022 = vunpack.c.l.b16 %v618
    %v1023 = vunpack.c.h.b16 %v618
    %v1024 = vunpack.c.l.b16 %v619
    %v1025 = vunpack.c.l.b16 %v620
    %v1026 = vunpack.c.h.b16 %v620
    %v1027 = vunpack.c.l.b16 %v621
    %v1028 = vunpack.c.h.b16 %v621
    %v1029 = vunpack.c.l.b16 %v622
    %v1030 = vunpack.c.h.b16 %v622
    %v1031 = vunpack.c.l.b16 %v623
    %v1032 = vunpack.c.h.b16 %v623
    %v1033 = vunpack.c.l.b16 %v624
    %v1034 = vunpack.c.l.b16 %v625
    %v1035 = vunpack.c.h.b16 %v625
    %v1036 = vunpack.c.l.b16 %v626
    %v1037 = vunpack.c.h.b16 %v626
    %v1038 = vunpack.c.l.b16 %v627
    %v1039 = vunpack.c.h.b16 %v627
    %v1040 = vunpack.c.l.b16 %v628
    %v1041 = vunpack.c.h.b16 %v628
    %v1042 = vunpack.c.l.b16 %v629
    %v1043 = vunpack.c.l.b16 %v630
    %v1044 = vunpack.c.h.b16 %v630
    %v1045 = vunpack.c.l.b16 %v631
    %v1046 = vunpack.c.h.b16 %v631
    %v1047 = vunpack.c.l.b16 %v632
    %v1048 = vunpack.c.h.b16 %v632
    %v1049 = vunpack.c.l.b16 %v633
    %v1050 = vunpack.c.h.b16 %v633
    %v1051 = vunpack.c.l.b16 %v634
    %v1052 = vunpack.c.l.b16 %v635
    %v1053 = vunpack.c.h.b16 %v635
    %v1054 = vunpack.c.l.b16 %v636
    %v1055 = vunpack.c.h.b16 %v636
    %v1056 = vunpack.c.l.b16 %v637
    %v1057 = vunpack.c.h.b16 %v637
    %v1058 = vunpack.c.l.b16 %v638
    %v1059 = vunpack.c.h.b16 %v638
    %v1060 = vunpack.c.l.b16 %v639
    %v1061 = vunpack.c.l.b16 %v640
    %v1062 = vunpack.c.h.b16 %v640
    %v1063 = vunpack.c.l.b16 %v641
    %v1064 = vunpack.c.h.b16 %v641
    %v1065 = vunpack.c.l.b16 %v642
    %v1066 = vunpack.c.h.b16 %v642
    %v1067 = vunpack.c.l.b16 %v643
    %v1068 = vunpack.c.h.b16 %v643
    %v1069 = vunpack.c.l.b16 %v644
    %v1070 = vunpack.c.l.b16 %v645
    %v1071 = vunpack.c.h.b16 %v645
    %v1072 = vunpack.c.l.b16 %v646
    %v1073 = vunpack.c.h.b16 %v646
    %v1074 = vunpack.c.l.b16 %v647
    %v1075 = vunpack.c.h.b16 %v647
    %v1076 = vunpack.c.l.b16 %v648
    %v1077 = vunpack.c.h.b16 %v648
    %v1078 = vunpack.c.l.b16 %v649
    %v1079 = vunpack.c.l.b16 %v650
    %v1080 = vunpack.c.h.b16 %v650
    %v1081 = vunpack.c.l.b16 %v651
    %v1082 = vunpack.c.h.b16 %v651
    %v1083 = vunpack.c.l.b16 %v652
    %v1084 = vunpack.c.h.b16 %v652
    %v1085 = vunpack.c.l.b16 %v653
    %v1086 = vunpack.c.h.b16 %v653
    %v1087 = vunpack.c.l.b16 %v654
    %v1088 = vunpack.c.l.b16 %v655
    %v1089 = vunpack.c.h.b16 %v655
    %v1090 = vunpack.c.l.b16 %v656
    %v1091 = vunpack.c.h.b16 %v656
    %v1092 = vunpack.c.l.b16 %v657
    %v1093 = vunpack.c.h.b16 %v657
    %v1094 = vunpack.c.l.b16 %v658
    %v1095 = vunpack.c.h.b16 %v658
    %v1096 = vunpack.c.l.b16 %v659
    %v1097 = vunpack.c.l.b16 %v660
    %v1098 = vunpack.c.h.b16 %v660
    %v1099 = vunpack.c.l.b16 %v661
    %v1100 = vunpack.c.h.b16 %v661
    %v1101 = vunpack.c.l.b16 %v662
    %v1102 = vunpack.c.h.b16 %v662
    %v1103 = vunpack.c.l.b16 %v663
    %v1104 = vunpack.c.h.b16 %v663
    %v1105 = vunpack.c.l.b16 %v664
    %v1106 = vunpack.c.l.b16 %v665
    %v1107 = vunpack.c.h.b16 %v665
    %v1108 = vunpack.c.l.b16 %v666
    %v1109 = vunpack.c.h.b16 %v666
    %v1110 = vunpack.c.l.b16 %v667
    %v1111 = vunpack.c.h.b16 %v667
    %v1112 = vunpack.c.l.b16 %v668
    %v1113 = vunpack.c.h.b16 %v668
    %v1114 = vunpack.c.l.b16 %v669
    %v1115 = vunpack.c.l.b16 %v670
    %v1116 = vunpack.c.h.b16 %v670
    %v1117 = vunpack.c.l.b16 %v671
    %v1118 = vunpack.c.h.b16 %v671
    %v1119 = vunpack.c.l.b16 %v672
    %v1120 = vunpack.c.h.b16 %v672
    %v1121 = vunpack.c.l.b16 %v673
    %v1122 = vunpack.c.h.b16 %v673
    %v1123 = vunpack.c.l.b16 %v674
    %v1124 = vunpack.c.l.b16 %v675
    %v1125 = vunpack.c.h.b16 %v675
    %v1126 = vunpack.c.l.b16 %v676
    %v1127 = vunpack.c.h.b16 %v676
    %v1128 = vunpack.c.l.b16 %v677
    %v1129 = vunpack.c.h.b16 %v677
    %v1130 = vunpack.c.l.b16 %v678
    %v1131 = vunpack.c.h.b16 %v678
    %v1132 = vunpack.c.l.b16 %v679
    %v1133 = vunpack.c.l.b16 %v680
    %v1134 = vunpack.c.h.b16 %v680
    %v1135 = vunpack.c.l.b16 %v681
    %v1136 = vunpack.c.h.b16 %v681
    %v1137 = vunpack.c.l.b16 %v682
    %v1138 = vunpack.c.h.b16 %v682
    %v1139 = vunpack.c.l.b16 %v683
    %v1140 = vunpack.c.h.b16 %v683
    %v1141 = vunpack.c.l.b16 %v684
    %v1142 = vunpack.c.l.b16 %v685
    %v1143 = vunpack.c.h.b16 %v685
    %v1144 = vunpack.c.l.b16 %v686
    %v1145 = vunpack.c.h.b16 %v686
    %v1146 = vunpack.c.l.b16 %v687
    %v1147 = vunpack.c.h.b16 %v687
    %v1148 = vunpack.c.l.b16 %v688
    %v1149 = vunpack.c.h.b16 %v688
    %v1150 = vunpack.c.l.b16 %v689
    %v1151 = vunpack.c.l.b16 %v690
    %v1152 = vunpack.c.h.b16 %v690
    %v1153 = vunpack.c.l.b16 %v691
    %v1154 = vunpack.c.h.b16 %v691
    %v1155 = vunpack.c.l.b16 %v692
    %v1156 = vunpack.c.h.b16 %v692
    %v1157 = vunpack.c.l.b16 %v693
    %v1158 = vunpack.c.h.b16 %v693
    %v1159 = vunpack.c.l.b16 %v694
    %v1160 = vunpack.c.l.b16 %v695
    %v1161 = vunpack.c.h.b16 %v695
    %v1162 = vunpack.c.l.b16 %v696
    %v1163 = vunpack.c.h.b16 %v696
    %v1164 = vunpack.c.l.b16 %v697
    %v1165 = vunpack.c.h.b16 %v697
    %v1166 = vunpack.c.l.b16 %v698
    %v1167 = vunpack.c.h.b16 %v698
    %v1168 = vunpack.c.l.b16 %v699
    %v1169 = vunpack.c.l.b16 %v700
    %v1170 = vunpack.c.h.b16 %v700
    %v1171 = vunpack.c.l.b16 %v701
    %v1172 = vunpack.c.h.b16 %v701
    %v1173 = vunpack.c.l.b16 %v702
    %v1174 = vunpack.c.h.b16 %v702
    %v1175 = vunpack.c.l.b16 %v703
    %v1176 = vunpack.c.h.b16 %v703
    %v1177 = vunpack.c.l.b16 %v704
    %v1178 = vunpack.c.l.b16 %v705
    %v1179 = vunpack.c.h.b16 %v705
    %v1180 = vunpack.c.l.b16 %v706
    %v1181 = vunpack.c.h.b16 %v706
    %v1182 = vunpack.c.l.b16 %v707
    %v1183 = vunpack.c.h.b16 %v707
    %v1184 = vunpack.c.l.b16 %v708
    %v1185 = vunpack.c.h.b16 %v708
    %v1186 = vunpack.c.l.b16 %v709
    %v1187 = vunpack.c.l.b16 %v710
    %v1188 = vunpack.c.h.b16 %v710
    %v1189 = vunpack.c.l.b16 %v711
    %v1190 = vunpack.c.h.b16 %v711
    %v1191 = vunpack.c.l.b16 %v712
    %v1192 = vunpack.c.h.b16 %v712
    %v1193 = vunpack.c.l.b16 %v713
    %v1194 = vunpack.c.h.b16 %v713
    %v1195 = vunpack.c.l.b16 %v714
    %v1196 = vunpack.c.l.b16 %v715
    %v1197 = vunpack.c.h.b16 %v715
    %v1198 = vunpack.c.l.b16 %v716
    %v1199 = vunpack.c.h.b16 %v716
    %v1200 = vunpack.c.l.b16 %v717
    %v1201 = vunpack.c.h.b16 %v717
    %v1202 = vunpack.c.l.b16 %v718
    %v1203 = vunpack.c.h.b16 %v718
    %v1204 = vunpack.c.l.b16 %v719
    %v1205 = vunpack.c.l.b16 %v720
    %v1206 = vunpack.c.h.b16 %v720
    %v1207 = vunpack.c.l.b16 %v721
    %v1208 = vunpack.c.h.b16 %v721
    %v1209 = vunpack.c.l.b16 %v722
    %v1210 = vunpack.c.h.b16 %v722
    %v1211 = vunpack.c.l.b16 %v723
    %v1212 = vunpack.c.h.b16 %v723
    %v1213 = vunpack.c.l.b16 %v724
    %v1214 = vunpack.c.l.b16 %v725
    %v1215 = vunpack.c.h.b16 %v725
    %v1216 = vunpack.c.l.b16 %v726
    %v1217 = vunpack.c.h.b16 %v726
    %v1218 = vunpack.c.l.b16 %v727
    %v1219 = vunpack.c.h.b16 %v727
    %v1220 = vunpack.c.l.b16 %v728
    %v1221 = vunpack.c.h.b16 %v728
    %v1222 = vunpack.c.l.b16 %v729
    %v1223 = vunpack.c.l.b16 %v730
    %v1224 = vunpack.c.h.b16 %v730
    %v1225 = vunpack.c.l.b16 %v731
    %v1226 = vunpack.c.h.b16 %v731
    %v1227 = vunpack.c.l.b16 %v732
    %v1228 = vunpack.c.h.b16 %v732
    %v1229 = vunpack.c.l.b16 %v733
    %v1230 = vunpack.c.h.b16 %v733
    %v1231 = vunpack.c.l.b16 %v734
    %v1232 = vpack.c.b16 %v953, %v944
    %v1233 = vpack.c.b16 %v954, %v945
    %v1234 = vpack.c.b16 %v955, %v946
    %v1235 = vpack.c.b16 %v956, %v947
    %v1236 = vpack.c.b16 %v957, %v948
    %v1237 = vpack.c.b16 %v958, %v949
    %v1238 = vpack.c.b16 %v959, %v950
    %v1239 = vpack.c.b16 %v960, %v951
    %v1240 = vpack.c.b16 %v961, %v952
    %v1241 = vpack.c.b16 %v971, %v962
    %v1242 = vpack.c.b16 %v972, %v963
    %v1243 = vpack.c.b16 %v973, %v964
    %v1244 = vpack.c.b16 %v974, %v965
    %v1245 = vpack.c.b16 %v975, %v966
    %v1246 = vpack.c.b16 %v976, %v967
    %v1247 = vpack.c.b16 %v977, %v968
    %v1248 = vpack.c.b16 %v978, %v969
    %v1249 = vpack.c.b16 %v979, %v970
    %v1250 = vpack.c.b16 %v989, %v980
    %v1251 = vpack.c.b16 %v990, %v981
    %v1252 = vpack.c.b16 %v991, %v982
    %v1253 = vpack.c.b16 %v992, %v983
    %v1254 = vpack.c.b16 %v993, %v984
    %v1255 = vpack.c.b16 %v994, %v985
    %v1256 = vpack.c.b16 %v995, %v986
    %v1257 = vpack.c.b16 %v996, %v987
    %v1258 = vpack.c.b16 %v997, %v988
    %v1259 = vpack.c.b16 %v1007, %v998
    %v1260 = vpack.c.b16 %v1008, %v999
    %v1261 = vpack.c.b16 %v1009, %v1000
    %v1262 = vpack.c.b16 %v1010, %v1001
    %v1263 = vpack.c.b16 %v1011, %v1002
    %v1264 = vpack.c.b16 %v1012, %v1003
    %v1265 = vpack.c.b16 %v1013, %v1004
    %v1266 = vpack.c.b16 %v1014, %v1005
    %v1267 = vpack.c.b16 %v1015, %v1006
    %v1268 = vpack.c.b16 %v1025, %v1016
    %v1269 = vpack.c.b16 %v1026, %v1017
    %v1270 = vpack.c.b16 %v1027, %v1018
    %v1271 = vpack.c.b16 %v1028, %v1019
    %v1272 = vpack.c.b16 %v1029, %v1020
    %v1273 = vpack.c.b16 %v1030, %v1021
    %v1274 = vpack.c.b16 %v1031, %v1022
    %v1275 = vpack.c.b16 %v1032, %v1023
    %v1276 = vpack.c.b16 %v1033, %v1024
    %v1277 = vpack.c.b16 %v1043, %v1034
    %v1278 = vpack.c.b16 %v1044, %v1035
    %v1279 = vpack.c.b16 %v1045, %v1036
    %v1280 = vpack.c.b16 %v1046, %v1037
    %v1281 = vpack.c.b16 %v1047, %v1038
    %v1282 = vpack.c.b16 %v1048, %v1039
    %v1283 = vpack.c.b16 %v1049, %v1040
    %v1284 = vpack.c.b16 %v1050, %v1041
    %v1285 = vpack.c.b16 %v1051, %v1042
    %v1286 = vpack.c.b16 %v1061, %v1052
    %v1287 = vpack.c.b16 %v1062, %v1053
    %v1288 = vpack.c.b16 %v1063, %v1054
    %v1289 = vpack.c.b16 %v1064, %v1055
    %v1290 = vpack.c.b16 %v1065, %v1056
    %v1291 = vpack.c.b16 %v1066, %v1057
    %v1292 = vpack.c.b16 %v1067, %v1058
    %v1293 = vpack.c.b16 %v1068, %v1059
    %v1294 = vpack.c.b16 %v1069, %v1060
    %v1295 = vpack.c.b16 %v1079, %v1070
    %v1296 = vpack.c.b16 %v1080, %v1071
    %v1297 = vpack.c.b16 %v1081, %v1072
    %v1298 = vpack.c.b16 %v1082, %v1073
    %v1299 = vpack.c.b16 %v1083, %v1074
    %v1300 = vpack.c.b16 %v1084, %v1075
    %v1301 = vpack.c.b16 %v1085, %v1076
    %v1302 = vpack.c.b16 %v1086, %v1077
    %v1303 = vpack.c.b16 %v1087, %v1078
    %v1304 = vpack.c.b16 %v1097, %v1088
    %v1305 = vpack.c.b16 %v1098, %v1089
    %v1306 = vpack.c.b16 %v1099, %v1090
    %v1307 = vpack.c.b16 %v1100, %v1091
    %v1308 = vpack.c.b16 %v1101, %v1092
    %v1309 = vpack.c.b16 %v1102, %v1093
    %v1310 = vpack.c.b16 %v1103, %v1094
    %v1311 = vpack.c.b16 %v1104, %v1095
    %v1312 = vpack.c.b16 %v1105, %v1096
    %v1313 = vpack.c.b16 %v1115, %v1106
    %v1314 = vpack.c.b16 %v1116, %v1107
    %v1315 = vpack.c.b16 %v1117, %v1108
    %v1316 = vpack.c.b16 %v1118, %v1109
    %v1317 = vpack.c.b16 %v1119, %v1110
    %v1318 = vpack.c.b16 %v1120, %v1111
    %v1319 = vpack.c.b16 %v1121, %v1112
    %v1320 = vpack.c.b16 %v1122, %v1113
    %v1321 = vpack.c.b16 %v1123, %v1114
    %v1322 = vpack.c.b16 %v1133, %v1124
    %v1323 = vpack.c.b16 %v1134, %v1125
    %v1324 = vpack.c.b16 %v1135, %v1126
    %v1325 = vpack.c.b16 %v1136, %v1127
    %v1326 = vpack.c.b16 %v1137, %v1128
    %v1327 = vpack.c.b16 %v1138, %v1129
    %v1328 = vpack.c.b16 %v1139, %v1130
    %v1329 = vpack.c.b16 %v1140, %v1131
    %v1330 = vpack.c.b16 %v1141, %v1132
    %v1331 = vpack.c.b16 %v1151, %v1142
    %v1332 = vpack.c.b16 %v1152, %v1143
    %v1333 = vpack.c.b16 %v1153, %v1144
    %v1334 = vpack.c.b16 %v1154, %v1145
    %v1335 = vpack.c.b16 %v1155, %v1146
    %v1336 = vpack.c.b16 %v1156, %v1147
    %v1337 = vpack.c.b16 %v1157, %v1148
    %v1338 = vpack.c.b16 %v1158, %v1149
    %v1339 = vpack.c.b16 %v1159, %v1150
    %v1340 = vpack.c.b16 %v1169, %v1160
    %v1341 = vpack.c.b16 %v1170, %v1161
    %v1342 = vpack.c.b16 %v1171, %v1162
    %v1343 = vpack.c.b16 %v1172, %v1163
    %v1344 = vpack.c.b16 %v1173, %v1164
    %v1345 = vpack.c.b16 %v1174, %v1165
    %v1346 = vpack.c.b16 %v1175, %v1166
    %v1347 = vpack.c.b16 %v1176, %v1167
    %v1348 = vpack.c.b16 %v1177, %v1168
    %v1349 = vpack.c.b16 %v1187, %v1178
    %v1350 = vpack.c.b16 %v1188, %v1179
    %v1351 = vpack.c.b16 %v1189, %v1180
    %v1352 = vpack.c.b16 %v1190, %v1181
    %v1353 = vpack.c.b16 %v1191, %v1182
    %v1354 = vpack.c.b16 %v1192, %v1183
    %v1355 = vpack.c.b16 %v1193, %v1184
    %v1356 = vpack.c.b16 %v1194, %v1185
    %v1357 = vpack.c.b16 %v1195, %v1186
    %v1358 = vpack.c.b16 %v1205, %v1196
    %v1359 = vpack.c.b16 %v1206, %v1197
    %v1360 = vpack.c.b16 %v1207, %v1198
    %v1361 = vpack.c.b16 %v1208, %v1199
    %v1362 = vpack.c.b16 %v1209, %v1200
    %v1363 = vpack.c.b16 %v1210, %v1201
    %v1364 = vpack.c.b16 %v1211, %v1202
    %v1365 = vpack.c.b16 %v1212, %v1203
    %v1366 = vpack.c.b16 %v1213, %v1204
    %v1367 = vpack.c.b16 %v1223, %v1214
    %v1368 = vpack.c.b16 %v1224, %v1215
    %v1369 = vpack.c.b16 %v1225, %v1216
    %v1370 = vpack.c.b16 %v1226, %v1217
    %v1371 = vpack.c.b16 %v1227, %v1218
    %v1372 = vpack.c.b16 %v1228, %v1219
    %v1373 = vpack.c.b16 %v1229, %v1220
    %v1374 = vpack.c.b16 %v1230, %v1221
    %v1375 = vpack.c.b16 %v1231, %v1222
    %1520 = vmatprep.subr.bf16.mxu0 %v1233
    %1521 = vmatpush1.bf16.msra.mxu0 %v1232
    %1522 = vmatprep.subr.bf16.mxu0 %v1242
    %1523 = vmatpush1.bf16.msra.mxu0 %v1241
    %1524 = vmatprep.subr.bf16.mxu0 %v1251
    %1525 = vmatpush1.bf16.msra.mxu0 %v1250
    %1526 = vmatprep.subr.bf16.mxu0 %v1260
    %1527 = vmatpush1.bf16.msra.mxu0 %v1259
    %1528 = vmatprep.subr.bf16.mxu0 %v1269
    %1529 = vmatpush1.bf16.msra.mxu0 %v1268
    %1530 = vmatprep.subr.bf16.mxu0 %v1278
    %1531 = vmatpush1.bf16.msra.mxu0 %v1277
    %1532 = vmatprep.subr.bf16.mxu0 %v1287
    %1533 = vmatpush1.bf16.msra.mxu0 %v1286
    %1534 = vmatprep.subr.bf16.mxu0 %v1296
    %1535 = vmatpush1.bf16.msra.mxu0 %v1295
    %1536 = vmatprep.subr.bf16.mxu0 %v1305
    %1537 = vmatpush1.bf16.msra.mxu0 %v1304
    %1538 = vmatprep.subr.bf16.mxu0 %v1314
    %1539 = vmatpush1.bf16.msra.mxu0 %v1313
    %1540 = vmatprep.subr.bf16.mxu0 %v1323
    %1541 = vmatpush1.bf16.msra.mxu0 %v1322
    %1542 = vmatprep.subr.bf16.mxu0 %v1332
    %1543 = vmatpush1.bf16.msra.mxu0 %v1331
    %1544 = vmatprep.subr.bf16.mxu0 %v1341
    %1545 = vmatpush1.bf16.msra.mxu0 %v1340
    %1546 = vmatprep.subr.bf16.mxu0 %v1350
    %1547 = vmatpush1.bf16.msra.mxu0 %v1349
    %1548 = vmatprep.subr.bf16.mxu0 %v1359
    %1549 = vmatpush1.bf16.msra.mxu0 %v1358
    %1550 = vmatprep.subr.bf16.mxu0 %v1368
    %1551 = vmatpush1.bf16.msra.mxu0 %v1367
    %1552 = vmatprep.mubr.bf16.mxu0 %v574
    %1553 = vmatmul.mubr.bf16.gmra.mrb[0].mxu0 %v573
    %v1554 = vpop.f32.mrb[0].mxu0
    %v1555 = vadd.f32 %v742, %v1554
    %v1556 = vpop.f32.mrb[0].mxu0
    %v1557 = vadd.f32 %v746, %v1556
    %v1558 = vpop.f32.mrb[0].mxu0
    %v1559 = vpop.f32.mrb[0].mxu0
    %1560 = vdwg.mxu0
    %1561 = vmatprep.subr.bf16.mxu0 %v1235
    %1562 = vmatpush1.bf16.msra.mxu0 %v1234
    %1563 = vmatprep.subr.bf16.mxu0 %v1244
    %1564 = vmatpush1.bf16.msra.mxu0 %v1243
    %1565 = vmatprep.subr.bf16.mxu0 %v1253
    %1566 = vmatpush1.bf16.msra.mxu0 %v1252
    %1567 = vmatprep.subr.bf16.mxu0 %v1262
    %1568 = vmatpush1.bf16.msra.mxu0 %v1261
    %1569 = vmatprep.subr.bf16.mxu0 %v1271
    %1570 = vmatpush1.bf16.msra.mxu0 %v1270
    %1571 = vmatprep.subr.bf16.mxu0 %v1280
    %1572 = vmatpush1.bf16.msra.mxu0 %v1279
    %1573 = vmatprep.subr.bf16.mxu0 %v1289
    %1574 = vmatpush1.bf16.msra.mxu0 %v1288
    %1575 = vmatprep.subr.bf16.mxu0 %v1298
    %1576 = vmatpush1.bf16.msra.mxu0 %v1297
    %1577 = vmatprep.subr.bf16.mxu0 %v1307
    %1578 = vmatpush1.bf16.msra.mxu0 %v1306
    %1579 = vmatprep.subr.bf16.mxu0 %v1316
    %1580 = vmatpush1.bf16.msra.mxu0 %v1315
    %1581 = vmatprep.subr.bf16.mxu0 %v1325
    %1582 = vmatpush1.bf16.msra.mxu0 %v1324
    %1583 = vmatprep.subr.bf16.mxu0 %v1334
    %1584 = vmatpush1.bf16.msra.mxu0 %v1333
    %1585 = vmatprep.subr.bf16.mxu0 %v1343
    %1586 = vmatpush1.bf16.msra.mxu0 %v1342
    %1587 = vmatprep.subr.bf16.mxu0 %v1352
    %1588 = vmatpush1.bf16.msra.mxu0 %v1351
    %1589 = vmatprep.subr.bf16.mxu0 %v1361
    %1590 = vmatpush1.bf16.msra.mxu0 %v1360
    %1591 = vmatprep.subr.bf16.mxu0 %v1370
    %1592 = vmatpush1.bf16.msra.mxu0 %v1369
    %1593 = vmatprep.mubr.bf16.mxu0 %v574
    %1594 = vmatmul.mubr.bf16.gmra.mrb[0].mxu0 %v573
    %v1595 = vpop.f32.mrb[0].mxu0
    %v1596 = vadd.f32 %v750, %v1595
    %v1597 = vpop.f32.mrb[0].mxu0
    %v1598 = vadd.f32 %v754, %v1597
    %v1599 = vpop.f32.mrb[0].mxu0
    %v1600 = vpop.f32.mrb[0].mxu0
    %1601 = vdwg.mxu0
    %1602 = vmatprep.subr.bf16.mxu0 %v1237
    %1603 = vmatpush1.bf16.msra.mxu0 %v1236
    %1604 = vmatprep.subr.bf16.mxu0 %v1246
    %1605 = vmatpush1.bf16.msra.mxu0 %v1245
    %1606 = vmatprep.subr.bf16.mxu0 %v1255
    %1607 = vmatpush1.bf16.msra.mxu0 %v1254
    %1608 = vmatprep.subr.bf16.mxu0 %v1264
    %1609 = vmatpush1.bf16.msra.mxu0 %v1263
    %1610 = vmatprep.subr.bf16.mxu0 %v1273
    %1611 = vmatpush1.bf16.msra.mxu0 %v1272
    %1612 = vmatprep.subr.bf16.mxu0 %v1282
    %1613 = vmatpush1.bf16.msra.mxu0 %v1281
    %1614 = vmatprep.subr.bf16.mxu0 %v1291
    %1615 = vmatpush1.bf16.msra.mxu0 %v1290
    %1616 = vmatprep.subr.bf16.mxu0 %v1300
    %1617 = vmatpush1.bf16.msra.mxu0 %v1299
    %1618 = vmatprep.subr.bf16.mxu0 %v1309
    %1619 = vmatpush1.bf16.msra.mxu0 %v1308
    %1620 = vmatprep.subr.bf16.mxu0 %v1318
    %1621 = vmatpush1.bf16.msra.mxu0 %v1317
    %1622 = vmatprep.subr.bf16.mxu0 %v1327
    %1623 = vmatpush1.bf16.msra.mxu0 %v1326
    %1624 = vmatprep.subr.bf16.mxu0 %v1336
    %1625 = vmatpush1.bf16.msra.mxu0 %v1335
    %1626 = vmatprep.subr.bf16.mxu0 %v1345
    %1627 = vmatpush1.bf16.msra.mxu0 %v1344
    %1628 = vmatprep.subr.bf16.mxu0 %v1354
    %1629 = vmatpush1.bf16.msra.mxu0 %v1353
    %1630 = vmatprep.subr.bf16.mxu0 %v1363
    %1631 = vmatpush1.bf16.msra.mxu0 %v1362
    %1632 = vmatprep.subr.bf16.mxu0 %v1372
    %1633 = vmatpush1.bf16.msra.mxu0 %v1371
    %1634 = vmatprep.mubr.bf16.mxu0 %v574
    %1635 = vmatmul.mubr.bf16.gmra.mrb[0].mxu0 %v573
    %v1636 = vpop.f32.mrb[0].mxu0
    %v1637 = vadd.f32 %v758, %v1636
    %v1638 = vpop.f32.mrb[0].mxu0
    %v1639 = vadd.f32 %v762, %v1638
    %v1640 = vpop.f32.mrb[0].mxu0
    %v1641 = vpop.f32.mrb[0].mxu0
    %1642 = vdwg.mxu0
    %1643 = vmatprep.subr.bf16.mxu0 %v1239
    %1644 = vmatpush1.bf16.msra.mxu0 %v1238
    %1645 = vmatprep.subr.bf16.mxu0 %v1248
    %1646 = vmatpush1.bf16.msra.mxu0 %v1247
    %1647 = vmatprep.subr.bf16.mxu0 %v1257
    %1648 = vmatpush1.bf16.msra.mxu0 %v1256
    %1649 = vmatprep.subr.bf16.mxu0 %v1266
    %1650 = vmatpush1.bf16.msra.mxu0 %v1265
    %1651 = vmatprep.subr.bf16.mxu0 %v1275
    %1652 = vmatpush1.bf16.msra.mxu0 %v1274
    %1653 = vmatprep.subr.bf16.mxu0 %v1284
    %1654 = vmatpush1.bf16.msra.mxu0 %v1283
    %1655 = vmatprep.subr.bf16.mxu0 %v1293
    %1656 = vmatpush1.bf16.msra.mxu0 %v1292
    %1657 = vmatprep.subr.bf16.mxu0 %v1302
    %1658 = vmatpush1.bf16.msra.mxu0 %v1301
    %1659 = vmatprep.subr.bf16.mxu0 %v1311
    %1660 = vmatpush1.bf16.msra.mxu0 %v1310
    %1661 = vmatprep.subr.bf16.mxu0 %v1320
    %1662 = vmatpush1.bf16.msra.mxu0 %v1319
    %1663 = vmatprep.subr.bf16.mxu0 %v1329
    %1664 = vmatpush1.bf16.msra.mxu0 %v1328
    %1665 = vmatprep.subr.bf16.mxu0 %v1338
    %1666 = vmatpush1.bf16.msra.mxu0 %v1337
    %1667 = vmatprep.subr.bf16.mxu0 %v1347
    %1668 = vmatpush1.bf16.msra.mxu0 %v1346
    %1669 = vmatprep.subr.bf16.mxu0 %v1356
    %1670 = vmatpush1.bf16.msra.mxu0 %v1355
    %1671 = vmatprep.subr.bf16.mxu0 %v1365
    %1672 = vmatpush1.bf16.msra.mxu0 %v1364
    %1673 = vmatprep.subr.bf16.mxu0 %v1374
    %1674 = vmatpush1.bf16.msra.mxu0 %v1373
    %1675 = vmatprep.mubr.bf16.mxu0 %v574
    %1676 = vmatmul.mubr.bf16.gmra.mrb[0].mxu0 %v573
    %v1677 = vpop.f32.mrb[0].mxu0
    %v1678 = vadd.f32 %v766, %v1677
    %v1679 = vpop.f32.mrb[0].mxu0
    %v1680 = vadd.f32 %v770, %v1679
    %v1681 = vpop.f32.mrb[0].mxu0
    %v1682 = vpop.f32.mrb[0].mxu0
    %1683 = vdwg.mxu0
    %1684 = vmatprep.subr.bf16.mxu0 0
    %1685 = vmatpush1.bf16.msra.mxu0 %v1240
    %1686 = vmatprep.subr.bf16.mxu0 0
    %1687 = vmatpush1.bf16.msra.mxu0 %v1249
    %1688 = vmatprep.subr.bf16.mxu0 0
    %1689 = vmatpush1.bf16.msra.mxu0 %v1258
    %1690 = vmatprep.subr.bf16.mxu0 0
    %1691 = vmatpush1.bf16.msra.mxu0 %v1267
    %1692 = vmatprep.subr.bf16.mxu0 0
    %1693 = vmatpush1.bf16.msra.mxu0 %v1276
    %1694 = vmatprep.subr.bf16.mxu0 0
    %1695 = vmatpush1.bf16.msra.mxu0 %v1285
    %1696 = vmatprep.subr.bf16.mxu0 0
    %1697 = vmatpush1.bf16.msra.mxu0 %v1294
    %1698 = vmatprep.subr.bf16.mxu0 0
    %1699 = vmatpush1.bf16.msra.mxu0 %v1303
    %1700 = vmatprep.subr.bf16.mxu0 0
    %1701 = vmatpush1.bf16.msra.mxu0 %v1312
    %1702 = vmatprep.subr.bf16.mxu0 0
    %1703 = vmatpush1.bf16.msra.mxu0 %v1321
    %1704 = vmatprep.subr.bf16.mxu0 0
    %1705 = vmatpush1.bf16.msra.mxu0 %v1330
    %1706 = vmatprep.subr.bf16.mxu0 0
    %1707 = vmatpush1.bf16.msra.mxu0 %v1339
    %1708 = vmatprep.subr.bf16.mxu0 0
    %1709 = vmatpush1.bf16.msra.mxu0 %v1348
    %1710 = vmatprep.subr.bf16.mxu0 0
    %1711 = vmatpush1.bf16.msra.mxu0 %v1357
    %1712 = vmatprep.subr.bf16.mxu0 0
    %1713 = vmatpush1.bf16.msra.mxu0 %v1366
    %1714 = vmatprep.subr.bf16.mxu0 0
    %1715 = vmatpush1.bf16.msra.mxu0 %v1375
    %1716 = vmatprep.mubr.bf16.mxu0 %v574
    %1717 = vmatmul.mubr.bf16.gmra.mrb[0].mxu0 %v573
    %v1718 = vpop.f32.mrb[0].mxu0
    %v1719 = vadd.f32 %v774, %v1718
    %v1720 = vpop.f32.mrb[0].mxu0
    %v1721 = vpop.f32.mrb[0].mxu0
    %v1722 = vpop.f32.mrb[0].mxu0
    %1723 = vdwg.mxu0
    %v1724 = vmul.f32 %v1555, 0.5
    %v1725 = vmul.f32 %v1557, 0.5
    %v1726 = vmul.f32 %v1596, 0.5
    %v1727 = vtanh.pop %v1724
    %v1728 = vtanh.pop %v1725
    %v1729 = vtanh.pop %v1726
    %v1730 = vmul.f32 %v1727, 0.5
    %v1731 = vmul.f32 %v1728, 0.5
    %v1732 = vmul.f32 %v1729, 0.5
    %v1733 = vadd.f32 %v1730, 0.5
    %v1734 = vadd.f32 %v1731, 0.5
    %v1735 = vadd.f32 %v1732, 0.5
    %v1736 = vtanh.pop %v1598
    %v1737 = vtanh.pop %v1637
    %v1738 = vtanh.pop %v1639
    %v1739 = vmul.f32 %v1678, 0.5
    %v1740 = vmul.f32 %v1680, 0.5
    %v1741 = vmul.f32 %v1719, 0.5
    %v1742 = vtanh.pop %v1739
    %v1743 = vtanh.pop %v1740
    %v1744 = vtanh.pop %v1741
    %v1745 = vmul.f32 %v1742, 0.5
    %v1746 = vmul.f32 %v1743, 0.5
    %v1747 = vmul.f32 %v1744, 0.5
    %v1748 = vadd.f32 %v1745, 0.5
    %v1749 = vadd.f32 %v1746, 0.5
    %v1750 = vadd.f32 %v1747, 0.5
    %v1751 = vmul.f32 %v1733, %v1736
    %v1752 = vmul.f32 %v1734, %v1737
    %v1753 = vmul.f32 %v1735, %v1738
    %v1754 = vtanh.pop %v1751
    %v1755 = vtanh.pop %v1752
    %v1756 = vtanh.pop %v1753
    %v1757 = vmul.f32 %v1748, %v1754
    %v1758 = vmul.f32 %v1749, %v1755
    %v1759 = vmul.f32 %v1750, %v1756
    %v1760 = vpack.c.bf16 %v1757, %v1757
    %v1761 = vpack.c.bf16 %v1758, %v1758
    %v1762 = vpack.c.bf16 %v1759, %v1759
    %v1763 = vld [vmem:[#allocation11] sm:$0xff]
    %v1764 = vld [vmem:[#allocation11 + $0x8] sm:$0xff]
    %v1765 = vld [vmem:[#allocation11 + $0x10] sm:$0xff]
    %v1766 = vld [vmem:[#allocation11 + $0x18] sm:$0xff]
    %v1767 = vld [vmem:[#allocation11 + $0x20] sm:$0xff]
    %v1768 = vld [vmem:[#allocation11 + $0x28] sm:$0xff]
    %v1769 = vld [vmem:[#allocation11 + $0x30] sm:$0xff]
    %v1770 = vld [vmem:[#allocation11 + $0x38] sm:$0xff]
    %v1771 = vld [vmem:[#allocation11 + $0x40] sm:$0xff]
    %v1772 = vld [vmem:[#allocation11 + $0x48] sm:$0xff]
    %v1773 = vld [vmem:[#allocation11 + $0x50] sm:$0xff]
    %v1774 = vld [vmem:[#allocation11 + $0x58] sm:$0xff]
    %v1775 = vld [vmem:[#allocation11 + $0x60] sm:$0xff]
    %v1776 = vld [vmem:[#allocation11 + $0x68] sm:$0xff]
    %v1777 = vld [vmem:[#allocation11 + $0x70] sm:$0xff]
    %v1778 = vld [vmem:[#allocation11 + $0x78] sm:$0xff]
    %v1779 = vld [vmem:[#allocation11 + $0x80] sm:$0xff]
    %v1780 = vld [vmem:[#allocation11 + $0x88] sm:$0xff]
    %v1781 = vld [vmem:[#allocation11 + $0x90] sm:$0xff]
    %v1782 = vld [vmem:[#allocation11 + $0x98] sm:$0xff]
    %v1783 = vld [vmem:[#allocation11 + $0xa0] sm:$0xff]
    %v1784 = vld [vmem:[#allocation11 + $0xa8] sm:$0xff]
    %v1785 = vld [vmem:[#allocation11 + $0xb0] sm:$0xff]
    %v1786 = vld [vmem:[#allocation11 + $0xb8] sm:$0xff]
    %v1787 = vld [vmem:[#allocation11 + $0xc0] sm:$0xff]
    %v1788 = vld [vmem:[#allocation11 + $0xc8] sm:$0xff]
    %v1789 = vld [vmem:[#allocation11 + $0xd0] sm:$0xff]
    %v1790 = vld [vmem:[#allocation11 + $0xd8] sm:$0xff]
    %v1791 = vld [vmem:[#allocation11 + $0xe0] sm:$0xff]
    %v1792 = vld [vmem:[#allocation11 + $0xe8] sm:$0xff]
    %v1793 = vld [vmem:[#allocation11 + $0xf0] sm:$0xff]
    %v1794 = vld [vmem:[#allocation11 + $0xf8] sm:$0xff]
    %v1795 = vld [vmem:[#allocation11 + $0x100] sm:$0xff]
    %v1796 = vld [vmem:[#allocation11 + $0x108] sm:$0xff]
    %v1797 = vld [vmem:[#allocation11 + $0x110] sm:$0xff]
    %v1798 = vld [vmem:[#allocation11 + $0x118] sm:$0xff]
    %v1799 = vld [vmem:[#allocation11 + $0x120] sm:$0xff]
    %v1800 = vld [vmem:[#allocation11 + $0x128] sm:$0xff]
    %v1801 = vld [vmem:[#allocation11 + $0x130] sm:$0xff]
    %v1802 = vld [vmem:[#allocation11 + $0x138] sm:$0xff]
    %v1803 = vld [vmem:[#allocation11 + $0x140] sm:$0xff]
    %v1804 = vld [vmem:[#allocation11 + $0x148] sm:$0xff]
    %v1805 = vld [vmem:[#allocation11 + $0x150] sm:$0xff]
    %v1806 = vld [vmem:[#allocation11 + $0x158] sm:$0xff]
    %v1807 = vld [vmem:[#allocation11 + $0x160] sm:$0xff]
    %v1808 = vld [vmem:[#allocation11 + $0x168] sm:$0xff]
    %v1809 = vld [vmem:[#allocation11 + $0x170] sm:$0xff]
    %v1810 = vld [vmem:[#allocation11 + $0x178] sm:$0xff]
    %v1811 = vld [vmem:[#allocation11 + $0x180] sm:$0xff]
    %v1812 = vld [vmem:[#allocation11 + $0x188] sm:$0xff]
    %v1813 = vld [vmem:[#allocation11 + $0x190] sm:$0xff]
    %v1814 = vld [vmem:[#allocation11 + $0x198] sm:$0xff]
    %v1815 = vld [vmem:[#allocation11 + $0x1a0] sm:$0xff]
    %v1816 = vld [vmem:[#allocation11 + $0x1a8] sm:$0xff]
    %v1817 = vld [vmem:[#allocation11 + $0x1b0] sm:$0xff]
    %v1818 = vld [vmem:[#allocation11 + $0x1b8] sm:$0xff]
    %v1819 = vld [vmem:[#allocation11 + $0x1c0] sm:$0xff]
    %v1820 = vld [vmem:[#allocation11 + $0x1c8] sm:$0xff]
    %v1821 = vld [vmem:[#allocation11 + $0x1d0] sm:$0xff]
    %v1822 = vld [vmem:[#allocation11 + $0x1d8] sm:$0xff]
    %v1823 = vld [vmem:[#allocation11 + $0x1e0] sm:$0xff]
    %v1824 = vld [vmem:[#allocation11 + $0x1e8] sm:$0xff]
    %v1825 = vld [vmem:[#allocation11 + $0x1f0] sm:$0xff]
    %v1826 = vld [vmem:[#allocation11 + $0x1f8] sm:$0xff]
    %v1827 = vld [vmem:[#allocation11 + $0x200] sm:$0xff]
    %v1828 = vld [vmem:[#allocation11 + $0x208] sm:$0xff]
    %v1829 = vld [vmem:[#allocation11 + $0x210] sm:$0xff]
    %v1830 = vld [vmem:[#allocation11 + $0x218] sm:$0xff]
    %v1831 = vld [vmem:[#allocation11 + $0x220] sm:$0xff]
    %v1832 = vld [vmem:[#allocation11 + $0x228] sm:$0xff]
    %v1833 = vld [vmem:[#allocation11 + $0x230] sm:$0xff]
    %v1834 = vld [vmem:[#allocation11 + $0x238] sm:$0xff]
    %v1835 = vld [vmem:[#allocation11 + $0x240] sm:$0xff]
    %v1836 = vld [vmem:[#allocation11 + $0x248] sm:$0xff]
    %v1837 = vld [vmem:[#allocation11 + $0x250] sm:$0xff]
    %v1838 = vld [vmem:[#allocation11 + $0x258] sm:$0xff]
    %v1839 = vld [vmem:[#allocation11 + $0x260] sm:$0xff]
    %v1840 = vld [vmem:[#allocation11 + $0x268] sm:$0xff]
    %v1841 = vld [vmem:[#allocation11 + $0x270] sm:$0xff]
    %v1842 = vld [vmem:[#allocation11 + $0x278] sm:$0xff]
    %v1843 = vld [vmem:[#allocation11 + $0x280] sm:$0xff]
    %v1844 = vld [vmem:[#allocation11 + $0x288] sm:$0xff]
    %v1845 = vld [vmem:[#allocation11 + $0x290] sm:$0xff]
    %v1846 = vld [vmem:[#allocation11 + $0x298] sm:$0xff]
    %v1847 = vld [vmem:[#allocation11 + $0x2a0] sm:$0xff]
    %v1848 = vld [vmem:[#allocation11 + $0x2a8] sm:$0xff]
    %v1849 = vld [vmem:[#allocation11 + $0x2b0] sm:$0xff]
    %v1850 = vld [vmem:[#allocation11 + $0x2b8] sm:$0xff]
    %v1851 = vld [vmem:[#allocation11 + $0x2c0] sm:$0xff]
    %v1852 = vld [vmem:[#allocation11 + $0x2c8] sm:$0xff]
    %v1853 = vld [vmem:[#allocation11 + $0x2d0] sm:$0xff]
    %v1854 = vld [vmem:[#allocation11 + $0x2d8] sm:$0xff]
    %v1855 = vld [vmem:[#allocation11 + $0x2e0] sm:$0xff]
    %v1856 = vld [vmem:[#allocation11 + $0x2e8] sm:$0xff]
    %v1857 = vld [vmem:[#allocation11 + $0x2f0] sm:$0xff]
    %v1858 = vld [vmem:[#allocation11 + $0x2f8] sm:$0xff]
    %v1859 = vld [vmem:[#allocation11 + $0x300] sm:$0xff]
    %v1860 = vld [vmem:[#allocation11 + $0x308] sm:$0xff]
    %v1861 = vld [vmem:[#allocation11 + $0x310] sm:$0xff]
    %v1862 = vld [vmem:[#allocation11 + $0x318] sm:$0xff]
    %v1863 = vld [vmem:[#allocation11 + $0x320] sm:$0xff]
    %v1864 = vld [vmem:[#allocation11 + $0x328] sm:$0xff]
    %v1865 = vld [vmem:[#allocation11 + $0x330] sm:$0xff]
    %v1866 = vld [vmem:[#allocation11 + $0x338] sm:$0xff]
    %v1867 = vld [vmem:[#allocation11 + $0x340] sm:$0xff]
    %v1868 = vld [vmem:[#allocation11 + $0x348] sm:$0xff]
    %v1869 = vld [vmem:[#allocation11 + $0x350] sm:$0xff]
    %v1870 = vld [vmem:[#allocation11 + $0x358] sm:$0xff]
    %v1871 = vld [vmem:[#allocation11 + $0x360] sm:$0xff]
    %v1872 = vld [vmem:[#allocation11 + $0x368] sm:$0xff]
    %v1873 = vld [vmem:[#allocation11 + $0x370] sm:$0xff]
    %v1874 = vld [vmem:[#allocation11 + $0x378] sm:$0xff]
    %v1875 = vld [vmem:[#allocation11 + $0x380] sm:$0xff]
    %v1876 = vld [vmem:[#allocation11 + $0x388] sm:$0xff]
    %v1877 = vld [vmem:[#allocation11 + $0x390] sm:$0xff]
    %v1878 = vld [vmem:[#allocation11 + $0x398] sm:$0xff]
    %v1879 = vld [vmem:[#allocation11 + $0x3a0] sm:$0xff]
    %v1880 = vld [vmem:[#allocation11 + $0x3a8] sm:$0xff]
    %v1881 = vld [vmem:[#allocation11 + $0x3b0] sm:$0xff]
    %v1882 = vld [vmem:[#allocation11 + $0x3b8] sm:$0xff]
    %v1883 = vld [vmem:[#allocation11 + $0x3c0] sm:$0xff]
    %v1884 = vld [vmem:[#allocation11 + $0x3c8] sm:$0xff]
    %v1885 = vld [vmem:[#allocation11 + $0x3d0] sm:$0xff]
    %v1886 = vld [vmem:[#allocation11 + $0x3d8] sm:$0xff]
    %v1887 = vld [vmem:[#allocation11 + $0x3e0] sm:$0xff]
    %v1888 = vld [vmem:[#allocation11 + $0x3e8] sm:$0xff]
    %v1889 = vld [vmem:[#allocation11 + $0x3f0] sm:$0xff]
    %v1890 = vld [vmem:[#allocation11 + $0x3f8] sm:$0xff]
    %v1891 = vld [vmem:[#allocation11 + $0x400] sm:$0xff]
    %v1892 = vld [vmem:[#allocation11 + $0x408] sm:$0xff]
    %v1893 = vld [vmem:[#allocation11 + $0x410] sm:$0xff]
    %v1894 = vld [vmem:[#allocation11 + $0x418] sm:$0xff]
    %v1895 = vld [vmem:[#allocation11 + $0x420] sm:$0xff]
    %v1896 = vld [vmem:[#allocation11 + $0x428] sm:$0xff]
    %v1897 = vld [vmem:[#allocation11 + $0x430] sm:$0xff]
    %v1898 = vld [vmem:[#allocation11 + $0x438] sm:$0xff]
    %v1899 = vld [vmem:[#allocation11 + $0x440] sm:$0xff]
    %v1900 = vld [vmem:[#allocation11 + $0x448] sm:$0xff]
    %v1901 = vld [vmem:[#allocation11 + $0x450] sm:$0xff]
    %v1902 = vld [vmem:[#allocation11 + $0x458] sm:$0xff]
    %v1903 = vld [vmem:[#allocation11 + $0x460] sm:$0xff]
    %v1904 = vld [vmem:[#allocation11 + $0x468] sm:$0xff]
    %v1905 = vld [vmem:[#allocation11 + $0x470] sm:$0xff]
    %v1906 = vld [vmem:[#allocation11 + $0x478] sm:$0xff]
    %v1907 = vld [vmem:[#allocation11 + $0x480] sm:$0xff]
    %v1908 = vld [vmem:[#allocation11 + $0x488] sm:$0xff]
    %v1909 = vld [vmem:[#allocation11 + $0x490] sm:$0xff]
    %v1910 = vld [vmem:[#allocation11 + $0x498] sm:$0xff]
    %v1911 = vld [vmem:[#allocation11 + $0x4a0] sm:$0xff]
    %v1912 = vld [vmem:[#allocation11 + $0x4a8] sm:$0xff]
    %v1913 = vld [vmem:[#allocation11 + $0x4b0] sm:$0xff]
    %v1914 = vld [vmem:[#allocation11 + $0x4b8] sm:$0xff]
    %v1915 = vld [vmem:[#allocation11 + $0x4c0] sm:$0xff]
    %v1916 = vld [vmem:[#allocation11 + $0x4c8] sm:$0xff]
    %v1917 = vld [vmem:[#allocation11 + $0x4d0] sm:$0xff]
    %v1918 = vld [vmem:[#allocation11 + $0x4d8] sm:$0xff]
    %v1919 = vld [vmem:[#allocation11 + $0x4e0] sm:$0xff]
    %v1920 = vld [vmem:[#allocation11 + $0x4e8] sm:$0xff]
    %v1921 = vld [vmem:[#allocation11 + $0x4f0] sm:$0xff]
    %v1922 = vld [vmem:[#allocation11 + $0x4f8] sm:$0xff]
    %v1923 = vld [vmem:[#allocation11 + $0x500] sm:$0xff]
    %v1924 = vld [vmem:[#allocation11 + $0x508] sm:$0xff]
    %v1925 = vld [vmem:[#allocation11 + $0x510] sm:$0xff]
    %v1926 = vld [vmem:[#allocation11 + $0x518] sm:$0xff]
    %v1927 = vld [vmem:[#allocation11 + $0x520] sm:$0xff]
    %v1928 = vld [vmem:[#allocation11 + $0x528] sm:$0xff]
    %v1929 = vld [vmem:[#allocation11 + $0x530] sm:$0xff]
    %v1930 = vld [vmem:[#allocation11 + $0x538] sm:$0xff]
    %v1931 = vld [vmem:[#allocation11 + $0x540] sm:$0xff]
    %v1932 = vld [vmem:[#allocation11 + $0x548] sm:$0xff]
    %v1933 = vld [vmem:[#allocation11 + $0x550] sm:$0xff]
    %v1934 = vld [vmem:[#allocation11 + $0x558] sm:$0xff]
    %v1935 = vld [vmem:[#allocation11 + $0x560] sm:$0xff]
    %v1936 = vld [vmem:[#allocation11 + $0x568] sm:$0xff]
    %v1937 = vld [vmem:[#allocation11 + $0x570] sm:$0xff]
    %v1938 = vld [vmem:[#allocation11 + $0x578] sm:$0xff]
    %v1939 = vld [vmem:[#allocation11 + $0x580] sm:$0xff]
    %v1940 = vld [vmem:[#allocation11 + $0x588] sm:$0xff]
    %v1941 = vld [vmem:[#allocation11 + $0x590] sm:$0xff]
    %v1942 = vld [vmem:[#allocation11 + $0x598] sm:$0xff]
    %v1943 = vld [vmem:[#allocation11 + $0x5a0] sm:$0xff]
    %v1944 = vld [vmem:[#allocation11 + $0x5a8] sm:$0xff]
    %v1945 = vld [vmem:[#allocation11 + $0x5b0] sm:$0xff]
    %v1946 = vld [vmem:[#allocation11 + $0x5b8] sm:$0xff]
    %v1947 = vld [vmem:[#allocation11 + $0x5c0] sm:$0xff]
    %v1948 = vld [vmem:[#allocation11 + $0x5c8] sm:$0xff]
    %v1949 = vld [vmem:[#allocation11 + $0x5d0] sm:$0xff]
    %v1950 = vld [vmem:[#allocation11 + $0x5d8] sm:$0xff]
    %v1951 = vld [vmem:[#allocation11 + $0x5e0] sm:$0xff]
    %v1952 = vld [vmem:[#allocation11 + $0x5e8] sm:$0xff]
    %v1953 = vld [vmem:[#allocation11 + $0x5f0] sm:$0xff]
    %v1954 = vld [vmem:[#allocation11 + $0x5f8] sm:$0xff]
    %v1955 = vld [vmem:[#allocation11 + $0x600] sm:$0xff]
    %v1956 = vld [vmem:[#allocation11 + $0x608] sm:$0xff]
    %v1957 = vld [vmem:[#allocation11 + $0x610] sm:$0xff]
    %v1958 = vld [vmem:[#allocation11 + $0x618] sm:$0xff]
    %v1959 = vld [vmem:[#allocation11 + $0x620] sm:$0xff]
    %v1960 = vld [vmem:[#allocation11 + $0x628] sm:$0xff]
    %v1961 = vld [vmem:[#allocation11 + $0x630] sm:$0xff]
    %v1962 = vld [vmem:[#allocation11 + $0x638] sm:$0xff]
    %v1963 = vld [vmem:[#allocation11 + $0x640] sm:$0xff]
    %v1964 = vld [vmem:[#allocation11 + $0x648] sm:$0xff]
    %v1965 = vld [vmem:[#allocation11 + $0x650] sm:$0xff]
    %v1966 = vld [vmem:[#allocation11 + $0x658] sm:$0xff]
    %v1967 = vld [vmem:[#allocation11 + $0x660] sm:$0xff]
    %v1968 = vld [vmem:[#allocation11 + $0x668] sm:$0xff]
    %v1969 = vld [vmem:[#allocation11 + $0x670] sm:$0xff]
    %v1970 = vld [vmem:[#allocation11 + $0x678] sm:$0xff]
    %v1971 = vld [vmem:[#allocation11 + $0x680] sm:$0xff]
    %v1972 = vld [vmem:[#allocation11 + $0x688] sm:$0xff]
    %v1973 = vld [vmem:[#allocation11 + $0x690] sm:$0xff]
    %v1974 = vld [vmem:[#allocation11 + $0x698] sm:$0xff]
    %v1975 = vld [vmem:[#allocation11 + $0x6a0] sm:$0xff]
    %v1976 = vld [vmem:[#allocation11 + $0x6a8] sm:$0xff]
    %v1977 = vld [vmem:[#allocation11 + $0x6b0] sm:$0xff]
    %v1978 = vld [vmem:[#allocation11 + $0x6b8] sm:$0xff]
    %v1979 = vld [vmem:[#allocation11 + $0x6c0] sm:$0xff]
    %v1980 = vld [vmem:[#allocation11 + $0x6c8] sm:$0xff]
    %v1981 = vld [vmem:[#allocation11 + $0x6d0] sm:$0xff]
    %v1982 = vld [vmem:[#allocation11 + $0x6d8] sm:$0xff]
    %v1983 = vld [vmem:[#allocation11 + $0x6e0] sm:$0xff]
    %v1984 = vld [vmem:[#allocation11 + $0x6e8] sm:$0xff]
    %v1985 = vld [vmem:[#allocation11 + $0x6f0] sm:$0xff]
    %v1986 = vld [vmem:[#allocation11 + $0x6f8] sm:$0xff]
    %v1987 = vld [vmem:[#allocation11 + $0x700] sm:$0xff]
    %v1988 = vld [vmem:[#allocation11 + $0x708] sm:$0xff]
    %v1989 = vld [vmem:[#allocation11 + $0x710] sm:$0xff]
    %v1990 = vld [vmem:[#allocation11 + $0x718] sm:$0xff]
    %v1991 = vld [vmem:[#allocation11 + $0x720] sm:$0xff]
    %v1992 = vld [vmem:[#allocation11 + $0x728] sm:$0xff]
    %v1993 = vld [vmem:[#allocation11 + $0x730] sm:$0xff]
    %v1994 = vld [vmem:[#allocation11 + $0x738] sm:$0xff]
    %v1995 = vld [vmem:[#allocation11 + $0x740] sm:$0xff]
    %v1996 = vld [vmem:[#allocation11 + $0x748] sm:$0xff]
    %v1997 = vld [vmem:[#allocation11 + $0x750] sm:$0xff]
    %v1998 = vld [vmem:[#allocation11 + $0x758] sm:$0xff]
    %v1999 = vld [vmem:[#allocation11 + $0x760] sm:$0xff]
    %v2000 = vld [vmem:[#allocation11 + $0x768] sm:$0xff]
    %v2001 = vld [vmem:[#allocation11 + $0x770] sm:$0xff]
    %v2002 = vld [vmem:[#allocation11 + $0x778] sm:$0xff]
    %v2003 = vld [vmem:[#allocation11 + $0x780] sm:$0xff]
    %v2004 = vld [vmem:[#allocation11 + $0x788] sm:$0xff]
    %v2005 = vld [vmem:[#allocation11 + $0x790] sm:$0xff]
    %v2006 = vld [vmem:[#allocation11 + $0x798] sm:$0xff]
    %v2007 = vld [vmem:[#allocation11 + $0x7a0] sm:$0xff]
    %v2008 = vld [vmem:[#allocation11 + $0x7a8] sm:$0xff]
    %v2009 = vld [vmem:[#allocation11 + $0x7b0] sm:$0xff]
    %v2010 = vld [vmem:[#allocation11 + $0x7b8] sm:$0xff]
    %v2011 = vld [vmem:[#allocation11 + $0x7c0] sm:$0xff]
    %v2012 = vld [vmem:[#allocation11 + $0x7c8] sm:$0xff]
    %v2013 = vld [vmem:[#allocation11 + $0x7d0] sm:$0xff]
    %v2014 = vld [vmem:[#allocation11 + $0x7d8] sm:$0xff]
    %v2015 = vld [vmem:[#allocation11 + $0x7e0] sm:$0xff]
    %v2016 = vld [vmem:[#allocation11 + $0x7e8] sm:$0xff]
    %v2017 = vld [vmem:[#allocation11 + $0x7f0] sm:$0xff]
    %v2018 = vld [vmem:[#allocation11 + $0x7f8] sm:$0xff]
    %v2019 = vld [vmem:[#allocation11 + $0x800] sm:$0xff]
    %v2020 = vld [vmem:[#allocation11 + $0x808] sm:$0xff]
    %v2021 = vld [vmem:[#allocation11 + $0x810] sm:$0xff]
    %v2022 = vld [vmem:[#allocation11 + $0x818] sm:$0xff]
    %v2023 = vld [vmem:[#allocation11 + $0x820] sm:$0xff]
    %v2024 = vld [vmem:[#allocation11 + $0x828] sm:$0xff]
    %v2025 = vld [vmem:[#allocation11 + $0x830] sm:$0xff]
    %v2026 = vld [vmem:[#allocation11 + $0x838] sm:$0xff]
    %v2027 = vld [vmem:[#allocation11 + $0x840] sm:$0xff]
    %v2028 = vld [vmem:[#allocation11 + $0x848] sm:$0xff]
    %v2029 = vld [vmem:[#allocation11 + $0x850] sm:$0xff]
    %v2030 = vld [vmem:[#allocation11 + $0x858] sm:$0xff]
    %v2031 = vld [vmem:[#allocation11 + $0x860] sm:$0xff]
    %v2032 = vld [vmem:[#allocation11 + $0x868] sm:$0xff]
    %v2033 = vld [vmem:[#allocation11 + $0x870] sm:$0xff]
    %v2034 = vld [vmem:[#allocation11 + $0x878] sm:$0xff]
    %v2035 = vld [vmem:[#allocation11 + $0x880] sm:$0xff]
    %v2036 = vld [vmem:[#allocation11 + $0x888] sm:$0xff]
    %v2037 = vld [vmem:[#allocation11 + $0x890] sm:$0xff]
    %v2038 = vld [vmem:[#allocation11 + $0x898] sm:$0xff]
    %v2039 = vld [vmem:[#allocation11 + $0x8a0] sm:$0xff]
    %v2040 = vld [vmem:[#allocation11 + $0x8a8] sm:$0xff]
    %v2041 = vld [vmem:[#allocation11 + $0x8b0] sm:$0xff]
    %v2042 = vld [vmem:[#allocation11 + $0x8b8] sm:$0xff]
    %v2043 = vld [vmem:[#allocation11 + $0x8c0] sm:$0xff]
    %v2044 = vld [vmem:[#allocation11 + $0x8c8] sm:$0xff]
    %v2045 = vld [vmem:[#allocation11 + $0x8d0] sm:$0xff]
    %v2046 = vld [vmem:[#allocation11 + $0x8d8] sm:$0xff]
    %v2047 = vld [vmem:[#allocation11 + $0x8e0] sm:$0xff]
    %v2048 = vld [vmem:[#allocation11 + $0x8e8] sm:$0xff]
    %v2049 = vld [vmem:[#allocation11 + $0x8f0] sm:$0xff]
    %v2050 = vld [vmem:[#allocation11 + $0x8f8] sm:$0xff]
    %v2051 = vld [vmem:[#allocation13] sm:$0xff]
    %v2052 = vld [vmem:[#allocation13 + $0x8] sm:$0xf]
    %v2055 = vlaneseq
    %v2056 = vshrl.u32 %v2055, 7
    %v2057 = vsub.s32 0, %v2056
    %v2058 = vrot.slane %v2051, %v2057
    %v2059 = vlaneseq
    %v2060 = vshrl.u32 %v2059, 7
    %v2061 = vsub.s32 1, %v2060
    %v2062 = vrot.slane %v2051, %v2061
    %v2063 = vlaneseq
    %v2064 = vshrl.u32 %v2063, 7
    %v2065 = vsub.s32 2, %v2064
    %v2066 = vrot.slane %v2051, %v2065
    %v2067 = vlaneseq
    %v2068 = vshrl.u32 %v2067, 7
    %v2069 = vsub.s32 3, %v2068
    %v2070 = vrot.slane %v2051, %v2069
    %v2071 = vlaneseq
    %v2072 = vshrl.u32 %v2071, 7
    %v2073 = vsub.s32 4, %v2072
    %v2074 = vrot.slane %v2051, %v2073
    %v2075 = vlaneseq
    %v2076 = vshrl.u32 %v2075, 7
    %v2077 = vsub.s32 5, %v2076
    %v2078 = vrot.slane %v2051, %v2077
    %v2079 = vlaneseq
    %v2080 = vshrl.u32 %v2079, 7
    %v2081 = vsub.s32 6, %v2080
    %v2082 = vrot.slane %v2051, %v2081
    %v2083 = vlaneseq
    %v2084 = vshrl.u32 %v2083, 7
    %v2085 = vsub.s32 7, %v2084
    %v2086 = vrot.slane %v2051, %v2085
    %v2087 = vlaneseq
    %v2088 = vshrl.u32 %v2087, 7
    %v2089 = vsub.s32 0, %v2088
    %v2090 = vrot.slane %v2052, %v2089
    %v2091 = vlaneseq
    %v2092 = vshrl.u32 %v2091, 7
    %v2093 = vsub.s32 1, %v2092
    %v2094 = vrot.slane %v2052, %v2093
    %v2095 = vlaneseq
    %v2096 = vshrl.u32 %v2095, 7
    %v2097 = vsub.s32 2, %v2096
    %v2098 = vrot.slane %v2052, %v2097
    %v2099 = vlaneseq
    %v2100 = vshrl.u32 %v2099, 7
    %v2101 = vsub.s32 3, %v2100
    %v2102 = vrot.slane %v2052, %v2101
    %v2403 = vunpack.c.l.b16 %v1763
    %v2404 = vunpack.c.h.b16 %v1763
    %v2405 = vunpack.c.l.b16 %v1764
    %v2406 = vunpack.c.h.b16 %v1764
    %v2407 = vunpack.c.l.b16 %v1765
    %v2408 = vunpack.c.h.b16 %v1765
    %v2409 = vunpack.c.l.b16 %v1766
    %v2410 = vunpack.c.h.b16 %v1766
    %v2411 = vunpack.c.l.b16 %v1767
    %v2412 = vunpack.c.h.b16 %v1767
    %v2413 = vunpack.c.l.b16 %v1768
    %v2414 = vunpack.c.h.b16 %v1768
    %v2415 = vunpack.c.l.b16 %v1769
    %v2416 = vunpack.c.h.b16 %v1769
    %v2417 = vunpack.c.l.b16 %v1770
    %v2418 = vunpack.c.h.b16 %v1770
    %v2419 = vunpack.c.l.b16 %v1771
    %v2420 = vunpack.c.h.b16 %v1771
    %v2421 = vunpack.c.l.b16 %v1772
    %v2422 = vunpack.c.h.b16 %v1772
    %v2423 = vunpack.c.l.b16 %v1773
    %v2424 = vunpack.c.h.b16 %v1773
    %v2425 = vunpack.c.l.b16 %v1774
    %v2426 = vunpack.c.h.b16 %v1774
    %v2427 = vunpack.c.l.b16 %v1775
    %v2428 = vunpack.c.h.b16 %v1775
    %v2429 = vunpack.c.l.b16 %v1776
    %v2430 = vunpack.c.h.b16 %v1776
    %v2431 = vunpack.c.l.b16 %v1777
    %v2432 = vunpack.c.h.b16 %v1777
    %v2433 = vunpack.c.l.b16 %v1778
    %v2434 = vunpack.c.h.b16 %v1778
    %v2435 = vunpack.c.l.b16 %v1779
    %v2436 = vunpack.c.h.b16 %v1779
    %v2437 = vunpack.c.l.b16 %v1780
    %v2438 = vunpack.c.h.b16 %v1780
    %v2439 = vunpack.c.l.b16 %v1781
    %v2440 = vunpack.c.h.b16 %v1781
    %v2441 = vunpack.c.l.b16 %v1782
    %v2442 = vunpack.c.h.b16 %v1782
    %v2443 = vunpack.c.l.b16 %v1783
    %v2444 = vunpack.c.h.b16 %v1783
    %v2445 = vunpack.c.l.b16 %v1784
    %v2446 = vunpack.c.h.b16 %v1784
    %v2447 = vunpack.c.l.b16 %v1785
    %v2448 = vunpack.c.h.b16 %v1785
    %v2449 = vunpack.c.l.b16 %v1786
    %v2450 = vunpack.c.h.b16 %v1786
    %v2451 = vunpack.c.l.b16 %v1787
    %v2452 = vunpack.c.h.b16 %v1787
    %v2453 = vunpack.c.l.b16 %v1788
    %v2454 = vunpack.c.h.b16 %v1788
    %v2455 = vunpack.c.l.b16 %v1789
    %v2456 = vunpack.c.h.b16 %v1789
    %v2457 = vunpack.c.l.b16 %v1790
    %v2458 = vunpack.c.h.b16 %v1790
    %v2459 = vunpack.c.l.b16 %v1791
    %v2460 = vunpack.c.h.b16 %v1791
    %v2461 = vunpack.c.l.b16 %v1792
    %v2462 = vunpack.c.h.b16 %v1792
    %v2463 = vunpack.c.l.b16 %v1793
    %v2464 = vunpack.c.h.b16 %v1793
    %v2465 = vunpack.c.l.b16 %v1794
    %v2466 = vunpack.c.h.b16 %v1794
    %v2467 = vunpack.c.l.b16 %v1795
    %v2468 = vunpack.c.h.b16 %v1795
    %v2469 = vunpack.c.l.b16 %v1796
    %v2470 = vunpack.c.h.b16 %v1796
    %v2471 = vunpack.c.l.b16 %v1797
    %v2472 = vunpack.c.h.b16 %v1797
    %v2473 = vunpack.c.l.b16 %v1798
    %v2474 = vunpack.c.h.b16 %v1798
    %v2475 = vunpack.c.l.b16 %v1799
    %v2476 = vunpack.c.h.b16 %v1799
    %v2477 = vunpack.c.l.b16 %v1800
    %v2478 = vunpack.c.h.b16 %v1800
    %v2479 = vunpack.c.l.b16 %v1801
    %v2480 = vunpack.c.h.b16 %v1801
    %v2481 = vunpack.c.l.b16 %v1802
    %v2482 = vunpack.c.h.b16 %v1802
    %v2483 = vunpack.c.l.b16 %v1803
    %v2484 = vunpack.c.h.b16 %v1803
    %v2485 = vunpack.c.l.b16 %v1804
    %v2486 = vunpack.c.h.b16 %v1804
    %v2487 = vunpack.c.l.b16 %v1805
    %v2488 = vunpack.c.h.b16 %v1805
    %v2489 = vunpack.c.l.b16 %v1806
    %v2490 = vunpack.c.h.b16 %v1806
    %v2491 = vunpack.c.l.b16 %v1807
    %v2492 = vunpack.c.h.b16 %v1807
    %v2493 = vunpack.c.l.b16 %v1808
    %v2494 = vunpack.c.h.b16 %v1808
    %v2495 = vunpack.c.l.b16 %v1809
    %v2496 = vunpack.c.h.b16 %v1809
    %v2497 = vunpack.c.l.b16 %v1810
    %v2498 = vunpack.c.h.b16 %v1810
    %v2499 = vunpack.c.l.b16 %v1811
    %v2500 = vunpack.c.h.b16 %v1811
    %v2501 = vunpack.c.l.b16 %v1812
    %v2502 = vunpack.c.h.b16 %v1812
    %v2503 = vunpack.c.l.b16 %v1813
    %v2504 = vunpack.c.h.b16 %v1813
    %v2505 = vunpack.c.l.b16 %v1814
    %v2506 = vunpack.c.h.b16 %v1814
    %v2507 = vunpack.c.l.b16 %v1815
    %v2508 = vunpack.c.h.b16 %v1815
    %v2509 = vunpack.c.l.b16 %v1816
    %v2510 = vunpack.c.h.b16 %v1816
    %v2511 = vunpack.c.l.b16 %v1817
    %v2512 = vunpack.c.h.b16 %v1817
    %v2513 = vunpack.c.l.b16 %v1818
    %v2514 = vunpack.c.h.b16 %v1818
    %v2515 = vunpack.c.l.b16 %v1819
    %v2516 = vunpack.c.h.b16 %v1819
    %v2517 = vunpack.c.l.b16 %v1820
    %v2518 = vunpack.c.h.b16 %v1820
    %v2519 = vunpack.c.l.b16 %v1821
    %v2520 = vunpack.c.h.b16 %v1821
    %v2521 = vunpack.c.l.b16 %v1822
    %v2522 = vunpack.c.h.b16 %v1822
    %v2523 = vunpack.c.l.b16 %v1823
    %v2524 = vunpack.c.h.b16 %v1823
    %v2525 = vunpack.c.l.b16 %v1824
    %v2526 = vunpack.c.h.b16 %v1824
    %v2527 = vunpack.c.l.b16 %v1825
    %v2528 = vunpack.c.h.b16 %v1825
    %v2529 = vunpack.c.l.b16 %v1826
    %v2530 = vunpack.c.h.b16 %v1826
    %v2531 = vunpack.c.l.b16 %v1827
    %v2532 = vunpack.c.h.b16 %v1827
    %v2533 = vunpack.c.l.b16 %v1828
    %v2534 = vunpack.c.h.b16 %v1828
    %v2535 = vunpack.c.l.b16 %v1829
    %v2536 = vunpack.c.h.b16 %v1829
    %v2537 = vunpack.c.l.b16 %v1830
    %v2538 = vunpack.c.h.b16 %v1830
    %v2539 = vunpack.c.l.b16 %v1831
    %v2540 = vunpack.c.h.b16 %v1831
    %v2541 = vunpack.c.l.b16 %v1832
    %v2542 = vunpack.c.h.b16 %v1832
    %v2543 = vunpack.c.l.b16 %v1833
    %v2544 = vunpack.c.h.b16 %v1833
    %v2545 = vunpack.c.l.b16 %v1834
    %v2546 = vunpack.c.h.b16 %v1834
    %v2547 = vunpack.c.l.b16 %v1835
    %v2548 = vunpack.c.h.b16 %v1835
    %v2549 = vunpack.c.l.b16 %v1836
    %v2550 = vunpack.c.h.b16 %v1836
    %v2551 = vunpack.c.l.b16 %v1837
    %v2552 = vunpack.c.h.b16 %v1837
    %v2553 = vunpack.c.l.b16 %v1838
    %v2554 = vunpack.c.h.b16 %v1838
    %v2555 = vunpack.c.l.b16 %v1839
    %v2556 = vunpack.c.h.b16 %v1839
    %v2557 = vunpack.c.l.b16 %v1840
    %v2558 = vunpack.c.h.b16 %v1840
    %v2559 = vunpack.c.l.b16 %v1841
    %v2560 = vunpack.c.h.b16 %v1841
    %v2561 = vunpack.c.l.b16 %v1842
    %v2562 = vunpack.c.h.b16 %v1842
    %v2563 = vunpack.c.l.b16 %v1843
    %v2564 = vunpack.c.h.b16 %v1843
    %v2565 = vunpack.c.l.b16 %v1844
    %v2566 = vunpack.c.h.b16 %v1844
    %v2567 = vunpack.c.l.b16 %v1845
    %v2568 = vunpack.c.h.b16 %v1845
    %v2569 = vunpack.c.l.b16 %v1846
    %v2570 = vunpack.c.h.b16 %v1846
    %v2571 = vunpack.c.l.b16 %v1847
    %v2572 = vunpack.c.h.b16 %v1847
    %v2573 = vunpack.c.l.b16 %v1848
    %v2574 = vunpack.c.h.b16 %v1848
    %v2575 = vunpack.c.l.b16 %v1849
    %v2576 = vunpack.c.h.b16 %v1849
    %v2577 = vunpack.c.l.b16 %v1850
    %v2578 = vunpack.c.h.b16 %v1850
    %v2579 = vunpack.c.l.b16 %v1851
    %v2580 = vunpack.c.h.b16 %v1851
    %v2581 = vunpack.c.l.b16 %v1852
    %v2582 = vunpack.c.h.b16 %v1852
    %v2583 = vunpack.c.l.b16 %v1853
    %v2584 = vunpack.c.h.b16 %v1853
    %v2585 = vunpack.c.l.b16 %v1854
    %v2586 = vunpack.c.h.b16 %v1854
    %v2587 = vunpack.c.l.b16 %v1855
    %v2588 = vunpack.c.h.b16 %v1855
    %v2589 = vunpack.c.l.b16 %v1856
    %v2590 = vunpack.c.h.b16 %v1856
    %v2591 = vunpack.c.l.b16 %v1857
    %v2592 = vunpack.c.h.b16 %v1857
    %v2593 = vunpack.c.l.b16 %v1858
    %v2594 = vunpack.c.h.b16 %v1858
    %v2595 = vunpack.c.l.b16 %v1859
    %v2596 = vunpack.c.h.b16 %v1859
    %v2597 = vunpack.c.l.b16 %v1860
    %v2598 = vunpack.c.h.b16 %v1860
    %v2599 = vunpack.c.l.b16 %v1861
    %v2600 = vunpack.c.h.b16 %v1861
    %v2601 = vunpack.c.l.b16 %v1862
    %v2602 = vunpack.c.h.b16 %v1862
    %v2603 = vunpack.c.l.b16 %v1863
    %v2604 = vunpack.c.h.b16 %v1863
    %v2605 = vunpack.c.l.b16 %v1864
    %v2606 = vunpack.c.h.b16 %v1864
    %v2607 = vunpack.c.l.b16 %v1865
    %v2608 = vunpack.c.h.b16 %v1865
    %v2609 = vunpack.c.l.b16 %v1866
    %v2610 = vunpack.c.h.b16 %v1866
    %v2611 = vunpack.c.l.b16 %v1867
    %v2612 = vunpack.c.h.b16 %v1867
    %v2613 = vunpack.c.l.b16 %v1868
    %v2614 = vunpack.c.h.b16 %v1868
    %v2615 = vunpack.c.l.b16 %v1869
    %v2616 = vunpack.c.h.b16 %v1869
    %v2617 = vunpack.c.l.b16 %v1870
    %v2618 = vunpack.c.h.b16 %v1870
    %v2619 = vunpack.c.l.b16 %v1871
    %v2620 = vunpack.c.h.b16 %v1871
    %v2621 = vunpack.c.l.b16 %v1872
    %v2622 = vunpack.c.h.b16 %v1872
    %v2623 = vunpack.c.l.b16 %v1873
    %v2624 = vunpack.c.h.b16 %v1873
    %v2625 = vunpack.c.l.b16 %v1874
    %v2626 = vunpack.c.h.b16 %v1874
    %v2627 = vunpack.c.l.b16 %v1875
    %v2628 = vunpack.c.h.b16 %v1875
    %v2629 = vunpack.c.l.b16 %v1876
    %v2630 = vunpack.c.h.b16 %v1876
    %v2631 = vunpack.c.l.b16 %v1877
    %v2632 = vunpack.c.h.b16 %v1877
    %v2633 = vunpack.c.l.b16 %v1878
    %v2634 = vunpack.c.h.b16 %v1878
    %v2635 = vunpack.c.l.b16 %v1879
    %v2636 = vunpack.c.h.b16 %v1879
    %v2637 = vunpack.c.l.b16 %v1880
    %v2638 = vunpack.c.h.b16 %v1880
    %v2639 = vunpack.c.l.b16 %v1881
    %v2640 = vunpack.c.h.b16 %v1881
    %v2641 = vunpack.c.l.b16 %v1882
    %v2642 = vunpack.c.h.b16 %v1882
    %v2643 = vunpack.c.l.b16 %v1883
    %v2644 = vunpack.c.h.b16 %v1883
    %v2645 = vunpack.c.l.b16 %v1884
    %v2646 = vunpack.c.h.b16 %v1884
    %v2647 = vunpack.c.l.b16 %v1885
    %v2648 = vunpack.c.h.b16 %v1885
    %v2649 = vunpack.c.l.b16 %v1886
    %v2650 = vunpack.c.h.b16 %v1886
    %v2651 = vunpack.c.l.b16 %v1887
    %v2652 = vunpack.c.h.b16 %v1887
    %v2653 = vunpack.c.l.b16 %v1888
    %v2654 = vunpack.c.h.b16 %v1888
    %v2655 = vunpack.c.l.b16 %v1889
    %v2656 = vunpack.c.h.b16 %v1889
    %v2657 = vunpack.c.l.b16 %v1890
    %v2658 = vunpack.c.h.b16 %v1890
    %v2659 = vunpack.c.l.b16 %v1891
    %v2660 = vunpack.c.h.b16 %v1891
    %v2661 = vunpack.c.l.b16 %v1892
    %v2662 = vunpack.c.h.b16 %v1892
    %v2663 = vunpack.c.l.b16 %v1893
    %v2664 = vunpack.c.h.b16 %v1893
    %v2665 = vunpack.c.l.b16 %v1894
    %v2666 = vunpack.c.h.b16 %v1894
    %v2667 = vunpack.c.l.b16 %v1895
    %v2668 = vunpack.c.h.b16 %v1895
    %v2669 = vunpack.c.l.b16 %v1896
    %v2670 = vunpack.c.h.b16 %v1896
    %v2671 = vunpack.c.l.b16 %v1897
    %v2672 = vunpack.c.h.b16 %v1897
    %v2673 = vunpack.c.l.b16 %v1898
    %v2674 = vunpack.c.h.b16 %v1898
    %v2675 = vunpack.c.l.b16 %v1899
    %v2676 = vunpack.c.h.b16 %v1899
    %v2677 = vunpack.c.l.b16 %v1900
    %v2678 = vunpack.c.h.b16 %v1900
    %v2679 = vunpack.c.l.b16 %v1901
    %v2680 = vunpack.c.h.b16 %v1901
    %v2681 = vunpack.c.l.b16 %v1902
    %v2682 = vunpack.c.h.b16 %v1902
    %v2683 = vunpack.c.l.b16 %v1903
    %v2684 = vunpack.c.h.b16 %v1903
    %v2685 = vunpack.c.l.b16 %v1904
    %v2686 = vunpack.c.h.b16 %v1904
    %v2687 = vunpack.c.l.b16 %v1905
    %v2688 = vunpack.c.h.b16 %v1905
    %v2689 = vunpack.c.l.b16 %v1906
    %v2690 = vunpack.c.h.b16 %v1906
    %v2691 = vunpack.c.l.b16 %v1907
    %v2692 = vunpack.c.h.b16 %v1907
    %v2693 = vunpack.c.l.b16 %v1908
    %v2694 = vunpack.c.h.b16 %v1908
    %v2695 = vunpack.c.l.b16 %v1909
    %v2696 = vunpack.c.h.b16 %v1909
    %v2697 = vunpack.c.l.b16 %v1910
    %v2698 = vunpack.c.h.b16 %v1910
    %v2699 = vunpack.c.l.b16 %v1911
    %v2700 = vunpack.c.h.b16 %v1911
    %v2701 = vunpack.c.l.b16 %v1912
    %v2702 = vunpack.c.h.b16 %v1912
    %v2703 = vunpack.c.l.b16 %v1913
    %v2704 = vunpack.c.h.b16 %v1913
    %v2705 = vunpack.c.l.b16 %v1914
    %v2706 = vunpack.c.h.b16 %v1914
    %v2707 = vunpack.c.l.b16 %v1915
    %v2708 = vunpack.c.h.b16 %v1915
    %v2709 = vunpack.c.l.b16 %v1916
    %v2710 = vunpack.c.h.b16 %v1916
    %v2711 = vunpack.c.l.b16 %v1917
    %v2712 = vunpack.c.h.b16 %v1917
    %v2713 = vunpack.c.l.b16 %v1918
    %v2714 = vunpack.c.h.b16 %v1918
    %v2715 = vunpack.c.l.b16 %v1919
    %v2716 = vunpack.c.h.b16 %v1919
    %v2717 = vunpack.c.l.b16 %v1920
    %v2718 = vunpack.c.h.b16 %v1920
    %v2719 = vunpack.c.l.b16 %v1921
    %v2720 = vunpack.c.h.b16 %v1921
    %v2721 = vunpack.c.l.b16 %v1922
    %v2722 = vunpack.c.h.b16 %v1922
    %v2723 = vunpack.c.l.b16 %v1923
    %v2724 = vunpack.c.h.b16 %v1923
    %v2725 = vunpack.c.l.b16 %v1924
    %v2726 = vunpack.c.h.b16 %v1924
    %v2727 = vunpack.c.l.b16 %v1925
    %v2728 = vunpack.c.h.b16 %v1925
    %v2729 = vunpack.c.l.b16 %v1926
    %v2730 = vunpack.c.h.b16 %v1926
    %v2731 = vunpack.c.l.b16 %v1927
    %v2732 = vunpack.c.h.b16 %v1927
    %v2733 = vunpack.c.l.b16 %v1928
    %v2734 = vunpack.c.h.b16 %v1928
    %v2735 = vunpack.c.l.b16 %v1929
    %v2736 = vunpack.c.h.b16 %v1929
    %v2737 = vunpack.c.l.b16 %v1930
    %v2738 = vunpack.c.h.b16 %v1930
    %v2739 = vunpack.c.l.b16 %v1931
    %v2740 = vunpack.c.h.b16 %v1931
    %v2741 = vunpack.c.l.b16 %v1932
    %v2742 = vunpack.c.h.b16 %v1932
    %v2743 = vunpack.c.l.b16 %v1933
    %v2744 = vunpack.c.h.b16 %v1933
    %v2745 = vunpack.c.l.b16 %v1934
    %v2746 = vunpack.c.h.b16 %v1934
    %v2747 = vunpack.c.l.b16 %v1935
    %v2748 = vunpack.c.h.b16 %v1935
    %v2749 = vunpack.c.l.b16 %v1936
    %v2750 = vunpack.c.h.b16 %v1936
    %v2751 = vunpack.c.l.b16 %v1937
    %v2752 = vunpack.c.h.b16 %v1937
    %v2753 = vunpack.c.l.b16 %v1938
    %v2754 = vunpack.c.h.b16 %v1938
    %v2755 = vunpack.c.l.b16 %v1939
    %v2756 = vunpack.c.h.b16 %v1939
    %v2757 = vunpack.c.l.b16 %v1940
    %v2758 = vunpack.c.h.b16 %v1940
    %v2759 = vunpack.c.l.b16 %v1941
    %v2760 = vunpack.c.h.b16 %v1941
    %v2761 = vunpack.c.l.b16 %v1942
    %v2762 = vunpack.c.h.b16 %v1942
    %v2763 = vunpack.c.l.b16 %v1943
    %v2764 = vunpack.c.h.b16 %v1943
    %v2765 = vunpack.c.l.b16 %v1944
    %v2766 = vunpack.c.h.b16 %v1944
    %v2767 = vunpack.c.l.b16 %v1945
    %v2768 = vunpack.c.h.b16 %v1945
    %v2769 = vunpack.c.l.b16 %v1946
    %v2770 = vunpack.c.h.b16 %v1946
    %v2771 = vunpack.c.l.b16 %v1947
    %v2772 = vunpack.c.h.b16 %v1947
    %v2773 = vunpack.c.l.b16 %v1948
    %v2774 = vunpack.c.h.b16 %v1948
    %v2775 = vunpack.c.l.b16 %v1949
    %v2776 = vunpack.c.h.b16 %v1949
    %v2777 = vunpack.c.l.b16 %v1950
    %v2778 = vunpack.c.h.b16 %v1950
    %v2779 = vunpack.c.l.b16 %v1951
    %v2780 = vunpack.c.h.b16 %v1951
    %v2781 = vunpack.c.l.b16 %v1952
    %v2782 = vunpack.c.h.b16 %v1952
    %v2783 = vunpack.c.l.b16 %v1953
    %v2784 = vunpack.c.h.b16 %v1953
    %v2785 = vunpack.c.l.b16 %v1954
    %v2786 = vunpack.c.h.b16 %v1954
    %v2787 = vunpack.c.l.b16 %v1955
    %v2788 = vunpack.c.h.b16 %v1955
    %v2789 = vunpack.c.l.b16 %v1956
    %v2790 = vunpack.c.h.b16 %v1956
    %v2791 = vunpack.c.l.b16 %v1957
    %v2792 = vunpack.c.h.b16 %v1957
    %v2793 = vunpack.c.l.b16 %v1958
    %v2794 = vunpack.c.h.b16 %v1958
    %v2795 = vunpack.c.l.b16 %v1959
    %v2796 = vunpack.c.h.b16 %v1959
    %v2797 = vunpack.c.l.b16 %v1960
    %v2798 = vunpack.c.h.b16 %v1960
    %v2799 = vunpack.c.l.b16 %v1961
    %v2800 = vunpack.c.h.b16 %v1961
    %v2801 = vunpack.c.l.b16 %v1962
    %v2802 = vunpack.c.h.b16 %v1962
    %v2803 = vunpack.c.l.b16 %v1963
    %v2804 = vunpack.c.h.b16 %v1963
    %v2805 = vunpack.c.l.b16 %v1964
    %v2806 = vunpack.c.h.b16 %v1964
    %v2807 = vunpack.c.l.b16 %v1965
    %v2808 = vunpack.c.h.b16 %v1965
    %v2809 = vunpack.c.l.b16 %v1966
    %v2810 = vunpack.c.h.b16 %v1966
    %v2811 = vunpack.c.l.b16 %v1967
    %v2812 = vunpack.c.h.b16 %v1967
    %v2813 = vunpack.c.l.b16 %v1968
    %v2814 = vunpack.c.h.b16 %v1968
    %v2815 = vunpack.c.l.b16 %v1969
    %v2816 = vunpack.c.h.b16 %v1969
    %v2817 = vunpack.c.l.b16 %v1970
    %v2818 = vunpack.c.h.b16 %v1970
    %v2819 = vunpack.c.l.b16 %v1971
    %v2820 = vunpack.c.h.b16 %v1971
    %v2821 = vunpack.c.l.b16 %v1972
    %v2822 = vunpack.c.h.b16 %v1972
    %v2823 = vunpack.c.l.b16 %v1973
    %v2824 = vunpack.c.h.b16 %v1973
    %v2825 = vunpack.c.l.b16 %v1974
    %v2826 = vunpack.c.h.b16 %v1974
    %v2827 = vunpack.c.l.b16 %v1975
    %v2828 = vunpack.c.h.b16 %v1975
    %v2829 = vunpack.c.l.b16 %v1976
    %v2830 = vunpack.c.h.b16 %v1976
    %v2831 = vunpack.c.l.b16 %v1977
    %v2832 = vunpack.c.h.b16 %v1977
    %v2833 = vunpack.c.l.b16 %v1978
    %v2834 = vunpack.c.h.b16 %v1978
    %v2835 = vunpack.c.l.b16 %v1979
    %v2836 = vunpack.c.h.b16 %v1979
    %v2837 = vunpack.c.l.b16 %v1980
    %v2838 = vunpack.c.h.b16 %v1980
    %v2839 = vunpack.c.l.b16 %v1981
    %v2840 = vunpack.c.h.b16 %v1981
    %v2841 = vunpack.c.l.b16 %v1982
    %v2842 = vunpack.c.h.b16 %v1982
    %v2843 = vunpack.c.l.b16 %v1983
    %v2844 = vunpack.c.h.b16 %v1983
    %v2845 = vunpack.c.l.b16 %v1984
    %v2846 = vunpack.c.h.b16 %v1984
    %v2847 = vunpack.c.l.b16 %v1985
    %v2848 = vunpack.c.h.b16 %v1985
    %v2849 = vunpack.c.l.b16 %v1986
    %v2850 = vunpack.c.h.b16 %v1986
    %v2851 = vunpack.c.l.b16 %v1987
    %v2852 = vunpack.c.h.b16 %v1987
    %v2853 = vunpack.c.l.b16 %v1988
    %v2854 = vunpack.c.h.b16 %v1988
    %v2855 = vunpack.c.l.b16 %v1989
    %v2856 = vunpack.c.h.b16 %v1989
    %v2857 = vunpack.c.l.b16 %v1990
    %v2858 = vunpack.c.h.b16 %v1990
    %v2859 = vunpack.c.l.b16 %v1991
    %v2860 = vunpack.c.h.b16 %v1991
    %v2861 = vunpack.c.l.b16 %v1992
    %v2862 = vunpack.c.h.b16 %v1992
    %v2863 = vunpack.c.l.b16 %v1993
    %v2864 = vunpack.c.h.b16 %v1993
    %v2865 = vunpack.c.l.b16 %v1994
    %v2866 = vunpack.c.h.b16 %v1994
    %v2867 = vunpack.c.l.b16 %v1995
    %v2868 = vunpack.c.h.b16 %v1995
    %v2869 = vunpack.c.l.b16 %v1996
    %v2870 = vunpack.c.h.b16 %v1996
    %v2871 = vunpack.c.l.b16 %v1997
    %v2872 = vunpack.c.h.b16 %v1997
    %v2873 = vunpack.c.l.b16 %v1998
    %v2874 = vunpack.c.h.b16 %v1998
    %v2875 = vunpack.c.l.b16 %v1999
    %v2876 = vunpack.c.h.b16 %v1999
    %v2877 = vunpack.c.l.b16 %v2000
    %v2878 = vunpack.c.h.b16 %v2000
    %v2879 = vunpack.c.l.b16 %v2001
    %v2880 = vunpack.c.h.b16 %v2001
    %v2881 = vunpack.c.l.b16 %v2002
    %v2882 = vunpack.c.h.b16 %v2002
    %v2883 = vunpack.c.l.b16 %v2003
    %v2884 = vunpack.c.h.b16 %v2003
    %v2885 = vunpack.c.l.b16 %v2004
    %v2886 = vunpack.c.h.b16 %v2004
    %v2887 = vunpack.c.l.b16 %v2005
    %v2888 = vunpack.c.h.b16 %v2005
    %v2889 = vunpack.c.l.b16 %v2006
    %v2890 = vunpack.c.h.b16 %v2006
    %v2891 = vunpack.c.l.b16 %v2007
    %v2892 = vunpack.c.h.b16 %v2007
    %v2893 = vunpack.c.l.b16 %v2008
    %v2894 = vunpack.c.h.b16 %v2008
    %v2895 = vunpack.c.l.b16 %v2009
    %v2896 = vunpack.c.h.b16 %v2009
    %v2897 = vunpack.c.l.b16 %v2010
    %v2898 = vunpack.c.h.b16 %v2010
    %v2899 = vunpack.c.l.b16 %v2011
    %v2900 = vunpack.c.h.b16 %v2011
    %v2901 = vunpack.c.l.b16 %v2012
    %v2902 = vunpack.c.h.b16 %v2012
    %v2903 = vunpack.c.l.b16 %v2013
    %v2904 = vunpack.c.h.b16 %v2013
    %v2905 = vunpack.c.l.b16 %v2014
    %v2906 = vunpack.c.h.b16 %v2014
    %v2907 = vunpack.c.l.b16 %v2015
    %v2908 = vunpack.c.h.b16 %v2015
    %v2909 = vunpack.c.l.b16 %v2016
    %v2910 = vunpack.c.h.b16 %v2016
    %v2911 = vunpack.c.l.b16 %v2017
    %v2912 = vunpack.c.h.b16 %v2017
    %v2913 = vunpack.c.l.b16 %v2018
    %v2914 = vunpack.c.h.b16 %v2018
    %v2915 = vunpack.c.l.b16 %v2019
    %v2916 = vunpack.c.h.b16 %v2019
    %v2917 = vunpack.c.l.b16 %v2020
    %v2918 = vunpack.c.h.b16 %v2020
    %v2919 = vunpack.c.l.b16 %v2021
    %v2920 = vunpack.c.h.b16 %v2021
    %v2921 = vunpack.c.l.b16 %v2022
    %v2922 = vunpack.c.h.b16 %v2022
    %v2923 = vunpack.c.l.b16 %v2023
    %v2924 = vunpack.c.h.b16 %v2023
    %v2925 = vunpack.c.l.b16 %v2024
    %v2926 = vunpack.c.h.b16 %v2024
    %v2927 = vunpack.c.l.b16 %v2025
    %v2928 = vunpack.c.h.b16 %v2025
    %v2929 = vunpack.c.l.b16 %v2026
    %v2930 = vunpack.c.h.b16 %v2026
    %v2931 = vunpack.c.l.b16 %v2027
    %v2932 = vunpack.c.h.b16 %v2027
    %v2933 = vunpack.c.l.b16 %v2028
    %v2934 = vunpack.c.h.b16 %v2028
    %v2935 = vunpack.c.l.b16 %v2029
    %v2936 = vunpack.c.h.b16 %v2029
    %v2937 = vunpack.c.l.b16 %v2030
    %v2938 = vunpack.c.h.b16 %v2030
    %v2939 = vunpack.c.l.b16 %v2031
    %v2940 = vunpack.c.h.b16 %v2031
    %v2941 = vunpack.c.l.b16 %v2032
    %v2942 = vunpack.c.h.b16 %v2032
    %v2943 = vunpack.c.l.b16 %v2033
    %v2944 = vunpack.c.h.b16 %v2033
    %v2945 = vunpack.c.l.b16 %v2034
    %v2946 = vunpack.c.h.b16 %v2034
    %v2947 = vunpack.c.l.b16 %v2035
    %v2948 = vunpack.c.h.b16 %v2035
    %v2949 = vunpack.c.l.b16 %v2036
    %v2950 = vunpack.c.h.b16 %v2036
    %v2951 = vunpack.c.l.b16 %v2037
    %v2952 = vunpack.c.h.b16 %v2037
    %v2953 = vunpack.c.l.b16 %v2038
    %v2954 = vunpack.c.h.b16 %v2038
    %v2955 = vunpack.c.l.b16 %v2039
    %v2956 = vunpack.c.h.b16 %v2039
    %v2957 = vunpack.c.l.b16 %v2040
    %v2958 = vunpack.c.h.b16 %v2040
    %v2959 = vunpack.c.l.b16 %v2041
    %v2960 = vunpack.c.h.b16 %v2041
    %v2961 = vunpack.c.l.b16 %v2042
    %v2962 = vunpack.c.h.b16 %v2042
    %v2963 = vunpack.c.l.b16 %v2043
    %v2964 = vunpack.c.h.b16 %v2043
    %v2965 = vunpack.c.l.b16 %v2044
    %v2966 = vunpack.c.h.b16 %v2044
    %v2967 = vunpack.c.l.b16 %v2045
    %v2968 = vunpack.c.h.b16 %v2045
    %v2969 = vunpack.c.l.b16 %v2046
    %v2970 = vunpack.c.h.b16 %v2046
    %v2971 = vunpack.c.l.b16 %v2047
    %v2972 = vunpack.c.h.b16 %v2047
    %v2973 = vunpack.c.l.b16 %v2048
    %v2974 = vunpack.c.h.b16 %v2048
    %v2975 = vunpack.c.l.b16 %v2049
    %v2976 = vunpack.c.h.b16 %v2049
    %v2977 = vunpack.c.l.b16 %v2050
    %v2978 = vunpack.c.h.b16 %v2050
    %v2979 = vpack.c.b16 %v2415, %v2403
    %v2980 = vpack.c.b16 %v2416, %v2404
    %v2981 = vpack.c.b16 %v2417, %v2405
    %v2982 = vpack.c.b16 %v2418, %v2406
    %v2983 = vpack.c.b16 %v2419, %v2407
    %v2984 = vpack.c.b16 %v2420, %v2408
    %v2985 = vpack.c.b16 %v2421, %v2409
    %v2986 = vpack.c.b16 %v2422, %v2410
    %v2987 = vpack.c.b16 %v2423, %v2411
    %v2988 = vpack.c.b16 %v2424, %v2412
    %v2989 = vpack.c.b16 %v2425, %v2413
    %v2990 = vpack.c.b16 %v2426, %v2414
    %v2991 = vpack.c.b16 %v2439, %v2427
    %v2992 = vpack.c.b16 %v2440, %v2428
    %v2993 = vpack.c.b16 %v2441, %v2429
    %v2994 = vpack.c.b16 %v2442, %v2430
    %v2995 = vpack.c.b16 %v2443, %v2431
    %v2996 = vpack.c.b16 %v2444, %v2432
    %v2997 = vpack.c.b16 %v2445, %v2433
    %v2998 = vpack.c.b16 %v2446, %v2434
    %v2999 = vpack.c.b16 %v2447, %v2435
    %v3000 = vpack.c.b16 %v2448, %v2436
    %v3001 = vpack.c.b16 %v2449, %v2437
    %v3002 = vpack.c.b16 %v2450, %v2438
    %v3003 = vpack.c.b16 %v2463, %v2451
    %v3004 = vpack.c.b16 %v2464, %v2452
    %v3005 = vpack.c.b16 %v2465, %v2453
    %v3006 = vpack.c.b16 %v2466, %v2454
    %v3007 = vpack.c.b16 %v2467, %v2455
    %v3008 = vpack.c.b16 %v2468, %v2456
    %v3009 = vpack.c.b16 %v2469, %v2457
    %v3010 = vpack.c.b16 %v2470, %v2458
    %v3011 = vpack.c.b16 %v2471, %v2459
    %v3012 = vpack.c.b16 %v2472, %v2460
    %v3013 = vpack.c.b16 %v2473, %v2461
    %v3014 = vpack.c.b16 %v2474, %v2462
    %v3015 = vpack.c.b16 %v2487, %v2475
    %v3016 = vpack.c.b16 %v2488, %v2476
    %v3017 = vpack.c.b16 %v2489, %v2477
    %v3018 = vpack.c.b16 %v2490, %v2478
    %v3019 = vpack.c.b16 %v2491, %v2479
    %v3020 = vpack.c.b16 %v2492, %v2480
    %v3021 = vpack.c.b16 %v2493, %v2481
    %v3022 = vpack.c.b16 %v2494, %v2482
    %v3023 = vpack.c.b16 %v2495, %v2483
    %v3024 = vpack.c.b16 %v2496, %v2484
    %v3025 = vpack.c.b16 %v2497, %v2485
    %v3026 = vpack.c.b16 %v2498, %v2486
    %v3027 = vpack.c.b16 %v2511, %v2499
    %v3028 = vpack.c.b16 %v2512, %v2500
    %v3029 = vpack.c.b16 %v2513, %v2501
    %v3030 = vpack.c.b16 %v2514, %v2502
    %v3031 = vpack.c.b16 %v2515, %v2503
    %v3032 = vpack.c.b16 %v2516, %v2504
    %v3033 = vpack.c.b16 %v2517, %v2505
    %v3034 = vpack.c.b16 %v2518, %v2506
    %v3035 = vpack.c.b16 %v2519, %v2507
    %v3036 = vpack.c.b16 %v2520, %v2508
    %v3037 = vpack.c.b16 %v2521, %v2509
    %v3038 = vpack.c.b16 %v2522, %v2510
    %v3039 = vpack.c.b16 %v2535, %v2523
    %v3040 = vpack.c.b16 %v2536, %v2524
    %v3041 = vpack.c.b16 %v2537, %v2525
    %v3042 = vpack.c.b16 %v2538, %v2526
    %v3043 = vpack.c.b16 %v2539, %v2527
    %v3044 = vpack.c.b16 %v2540, %v2528
    %v3045 = vpack.c.b16 %v2541, %v2529
    %v3046 = vpack.c.b16 %v2542, %v2530
    %v3047 = vpack.c.b16 %v2543, %v2531
    %v3048 = vpack.c.b16 %v2544, %v2532
    %v3049 = vpack.c.b16 %v2545, %v2533
    %v3050 = vpack.c.b16 %v2546, %v2534
    %v3051 = vpack.c.b16 %v2559, %v2547
    %v3052 = vpack.c.b16 %v2560, %v2548
    %v3053 = vpack.c.b16 %v2561, %v2549
    %v3054 = vpack.c.b16 %v2562, %v2550
    %v3055 = vpack.c.b16 %v2563, %v2551
    %v3056 = vpack.c.b16 %v2564, %v2552
    %v3057 = vpack.c.b16 %v2565, %v2553
    %v3058 = vpack.c.b16 %v2566, %v2554
    %v3059 = vpack.c.b16 %v2567, %v2555
    %v3060 = vpack.c.b16 %v2568, %v2556
    %v3061 = vpack.c.b16 %v2569, %v2557
    %v3062 = vpack.c.b16 %v2570, %v2558
    %v3063 = vpack.c.b16 %v2583, %v2571
    %v3064 = vpack.c.b16 %v2584, %v2572
    %v3065 = vpack.c.b16 %v2585, %v2573
    %v3066 = vpack.c.b16 %v2586, %v2574
    %v3067 = vpack.c.b16 %v2587, %v2575
    %v3068 = vpack.c.b16 %v2588, %v2576
    %v3069 = vpack.c.b16 %v2589, %v2577
    %v3070 = vpack.c.b16 %v2590, %v2578
    %v3071 = vpack.c.b16 %v2591, %v2579
    %v3072 = vpack.c.b16 %v2592, %v2580
    %v3073 = vpack.c.b16 %v2593, %v2581
    %v3074 = vpack.c.b16 %v2594, %v2582
    %v3075 = vpack.c.b16 %v2607, %v2595
    %v3076 = vpack.c.b16 %v2608, %v2596
    %v3077 = vpack.c.b16 %v2609, %v2597
    %v3078 = vpack.c.b16 %v2610, %v2598
    %v3079 = vpack.c.b16 %v2611, %v2599
    %v3080 = vpack.c.b16 %v2612, %v2600
    %v3081 = vpack.c.b16 %v2613, %v2601
    %v3082 = vpack.c.b16 %v2614, %v2602
    %v3083 = vpack.c.b16 %v2615, %v2603
    %v3084 = vpack.c.b16 %v2616, %v2604
    %v3085 = vpack.c.b16 %v2617, %v2605
    %v3086 = vpack.c.b16 %v2618, %v2606
    %v3087 = vpack.c.b16 %v2631, %v2619
    %v3088 = vpack.c.b16 %v2632, %v2620
    %v3089 = vpack.c.b16 %v2633, %v2621
    %v3090 = vpack.c.b16 %v2634, %v2622
    %v3091 = vpack.c.b16 %v2635, %v2623
    %v3092 = vpack.c.b16 %v2636, %v2624
    %v3093 = vpack.c.b16 %v2637, %v2625
    %v3094 = vpack.c.b16 %v2638, %v2626
    %v3095 = vpack.c.b16 %v2639, %v2627
    %v3096 = vpack.c.b16 %v2640, %v2628
    %v3097 = vpack.c.b16 %v2641, %v2629
    %v3098 = vpack.c.b16 %v2642, %v2630
    %v3099 = vpack.c.b16 %v2655, %v2643
    %v3100 = vpack.c.b16 %v2656, %v2644
    %v3101 = vpack.c.b16 %v2657, %v2645
    %v3102 = vpack.c.b16 %v2658, %v2646
    %v3103 = vpack.c.b16 %v2659, %v2647
    %v3104 = vpack.c.b16 %v2660, %v2648
    %v3105 = vpack.c.b16 %v2661, %v2649
    %v3106 = vpack.c.b16 %v2662, %v2650
    %v3107 = vpack.c.b16 %v2663, %v2651
    %v3108 = vpack.c.b16 %v2664, %v2652
    %v3109 = vpack.c.b16 %v2665, %v2653
    %v3110 = vpack.c.b16 %v2666, %v2654
    %v3111 = vpack.c.b16 %v2679, %v2667
    %v3112 = vpack.c.b16 %v2680, %v2668
    %v3113 = vpack.c.b16 %v2681, %v2669
    %v3114 = vpack.c.b16 %v2682, %v2670
    %v3115 = vpack.c.b16 %v2683, %v2671
    %v3116 = vpack.c.b16 %v2684, %v2672
    %v3117 = vpack.c.b16 %v2685, %v2673
    %v3118 = vpack.c.b16 %v2686, %v2674
    %v3119 = vpack.c.b16 %v2687, %v2675
    %v3120 = vpack.c.b16 %v2688, %v2676
    %v3121 = vpack.c.b16 %v2689, %v2677
    %v3122 = vpack.c.b16 %v2690, %v2678
    %v3123 = vpack.c.b16 %v2703, %v2691
    %v3124 = vpack.c.b16 %v2704, %v2692
    %v3125 = vpack.c.b16 %v2705, %v2693
    %v3126 = vpack.c.b16 %v2706, %v2694
    %v3127 = vpack.c.b16 %v2707, %v2695
    %v3128 = vpack.c.b16 %v2708, %v2696
    %v3129 = vpack.c.b16 %v2709, %v2697
    %v3130 = vpack.c.b16 %v2710, %v2698
    %v3131 = vpack.c.b16 %v2711, %v2699
    %v3132 = vpack.c.b16 %v2712, %v2700
    %v3133 = vpack.c.b16 %v2713, %v2701
    %v3134 = vpack.c.b16 %v2714, %v2702
    %v3135 = vpack.c.b16 %v2727, %v2715
    %v3136 = vpack.c.b16 %v2728, %v2716
    %v3137 = vpack.c.b16 %v2729, %v2717
    %v3138 = vpack.c.b16 %v2730, %v2718
    %v3139 = vpack.c.b16 %v2731, %v2719
    %v3140 = vpack.c.b16 %v2732, %v2720
    %v3141 = vpack.c.b16 %v2733, %v2721
    %v3142 = vpack.c.b16 %v2734, %v2722
    %v3143 = vpack.c.b16 %v2735, %v2723
    %v3144 = vpack.c.b16 %v2736, %v2724
    %v3145 = vpack.c.b16 %v2737, %v2725
    %v3146 = vpack.c.b16 %v2738, %v2726
    %v3147 = vpack.c.b16 %v2751, %v2739
    %v3148 = vpack.c.b16 %v2752, %v2740
    %v3149 = vpack.c.b16 %v2753, %v2741
    %v3150 = vpack.c.b16 %v2754, %v2742
    %v3151 = vpack.c.b16 %v2755, %v2743
    %v3152 = vpack.c.b16 %v2756, %v2744
    %v3153 = vpack.c.b16 %v2757, %v2745
    %v3154 = vpack.c.b16 %v2758, %v2746
    %v3155 = vpack.c.b16 %v2759, %v2747
    %v3156 = vpack.c.b16 %v2760, %v2748
    %v3157 = vpack.c.b16 %v2761, %v2749
    %v3158 = vpack.c.b16 %v2762, %v2750
    %v3159 = vpack.c.b16 %v2775, %v2763
    %v3160 = vpack.c.b16 %v2776, %v2764
    %v3161 = vpack.c.b16 %v2777, %v2765
    %v3162 = vpack.c.b16 %v2778, %v2766
    %v3163 = vpack.c.b16 %v2779, %v2767
    %v3164 = vpack.c.b16 %v2780, %v2768
    %v3165 = vpack.c.b16 %v2781, %v2769
    %v3166 = vpack.c.b16 %v2782, %v2770
    %v3167 = vpack.c.b16 %v2783, %v2771
    %v3168 = vpack.c.b16 %v2784, %v2772
    %v3169 = vpack.c.b16 %v2785, %v2773
    %v3170 = vpack.c.b16 %v2786, %v2774
    %v3171 = vpack.c.b16 %v2799, %v2787
    %v3172 = vpack.c.b16 %v2800, %v2788
    %v3173 = vpack.c.b16 %v2801, %v2789
    %v3174 = vpack.c.b16 %v2802, %v2790
    %v3175 = vpack.c.b16 %v2803, %v2791
    %v3176 = vpack.c.b16 %v2804, %v2792
    %v3177 = vpack.c.b16 %v2805, %v2793
    %v3178 = vpack.c.b16 %v2806, %v2794
    %v3179 = vpack.c.b16 %v2807, %v2795
    %v3180 = vpack.c.b16 %v2808, %v2796
    %v3181 = vpack.c.b16 %v2809, %v2797
    %v3182 = vpack.c.b16 %v2810, %v2798
    %v3183 = vpack.c.b16 %v2823, %v2811
    %v3184 = vpack.c.b16 %v2824, %v2812
    %v3185 = vpack.c.b16 %v2825, %v2813
    %v3186 = vpack.c.b16 %v2826, %v2814
    %v3187 = vpack.c.b16 %v2827, %v2815
    %v3188 = vpack.c.b16 %v2828, %v2816
    %v3189 = vpack.c.b16 %v2829, %v2817
    %v3190 = vpack.c.b16 %v2830, %v2818
    %v3191 = vpack.c.b16 %v2831, %v2819
    %v3192 = vpack.c.b16 %v2832, %v2820
    %v3193 = vpack.c.b16 %v2833, %v2821
    %v3194 = vpack.c.b16 %v2834, %v2822
    %v3195 = vpack.c.b16 %v2847, %v2835
    %v3196 = vpack.c.b16 %v2848, %v2836
    %v3197 = vpack.c.b16 %v2849, %v2837
    %v3198 = vpack.c.b16 %v2850, %v2838
    %v3199 = vpack.c.b16 %v2851, %v2839
    %v3200 = vpack.c.b16 %v2852, %v2840
    %v3201 = vpack.c.b16 %v2853, %v2841
    %v3202 = vpack.c.b16 %v2854, %v2842
    %v3203 = vpack.c.b16 %v2855, %v2843
    %v3204 = vpack.c.b16 %v2856, %v2844
    %v3205 = vpack.c.b16 %v2857, %v2845
    %v3206 = vpack.c.b16 %v2858, %v2846
    %v3207 = vpack.c.b16 %v2871, %v2859
    %v3208 = vpack.c.b16 %v2872, %v2860
    %v3209 = vpack.c.b16 %v2873, %v2861
    %v3210 = vpack.c.b16 %v2874, %v2862
    %v3211 = vpack.c.b16 %v2875, %v2863
    %v3212 = vpack.c.b16 %v2876, %v2864
    %v3213 = vpack.c.b16 %v2877, %v2865
    %v3214 = vpack.c.b16 %v2878, %v2866
    %v3215 = vpack.c.b16 %v2879, %v2867
    %v3216 = vpack.c.b16 %v2880, %v2868
    %v3217 = vpack.c.b16 %v2881, %v2869
    %v3218 = vpack.c.b16 %v2882, %v2870
    %v3219 = vpack.c.b16 %v2895, %v2883
    %v3220 = vpack.c.b16 %v2896, %v2884
    %v3221 = vpack.c.b16 %v2897, %v2885
    %v3222 = vpack.c.b16 %v2898, %v2886
    %v3223 = vpack.c.b16 %v2899, %v2887
    %v3224 = vpack.c.b16 %v2900, %v2888
    %v3225 = vpack.c.b16 %v2901, %v2889
    %v3226 = vpack.c.b16 %v2902, %v2890
    %v3227 = vpack.c.b16 %v2903, %v2891
    %v3228 = vpack.c.b16 %v2904, %v2892
    %v3229 = vpack.c.b16 %v2905, %v2893
    %v3230 = vpack.c.b16 %v2906, %v2894
    %v3231 = vpack.c.b16 %v2919, %v2907
    %v3232 = vpack.c.b16 %v2920, %v2908
    %v3233 = vpack.c.b16 %v2921, %v2909
    %v3234 = vpack.c.b16 %v2922, %v2910
    %v3235 = vpack.c.b16 %v2923, %v2911
    %v3236 = vpack.c.b16 %v2924, %v2912
    %v3237 = vpack.c.b16 %v2925, %v2913
    %v3238 = vpack.c.b16 %v2926, %v2914
    %v3239 = vpack.c.b16 %v2927, %v2915
    %v3240 = vpack.c.b16 %v2928, %v2916
    %v3241 = vpack.c.b16 %v2929, %v2917
    %v3242 = vpack.c.b16 %v2930, %v2918
    %v3243 = vpack.c.b16 %v2943, %v2931
    %v3244 = vpack.c.b16 %v2944, %v2932
    %v3245 = vpack.c.b16 %v2945, %v2933
    %v3246 = vpack.c.b16 %v2946, %v2934
    %v3247 = vpack.c.b16 %v2947, %v2935
    %v3248 = vpack.c.b16 %v2948, %v2936
    %v3249 = vpack.c.b16 %v2949, %v2937
    %v3250 = vpack.c.b16 %v2950, %v2938
    %v3251 = vpack.c.b16 %v2951, %v2939
    %v3252 = vpack.c.b16 %v2952, %v2940
    %v3253 = vpack.c.b16 %v2953, %v2941
    %v3254 = vpack.c.b16 %v2954, %v2942
    %v3255 = vpack.c.b16 %v2967, %v2955
    %v3256 = vpack.c.b16 %v2968, %v2956
    %v3257 = vpack.c.b16 %v2969, %v2957
    %v3258 = vpack.c.b16 %v2970, %v2958
    %v3259 = vpack.c.b16 %v2971, %v2959
    %v3260 = vpack.c.b16 %v2972, %v2960
    %v3261 = vpack.c.b16 %v2973, %v2961
    %v3262 = vpack.c.b16 %v2974, %v2962
    %v3263 = vpack.c.b16 %v2975, %v2963
    %v3264 = vpack.c.b16 %v2976, %v2964
    %v3265 = vpack.c.b16 %v2977, %v2965
    %v3266 = vpack.c.b16 %v2978, %v2966
    %3555 = vmatprep.subr.bf16.mxu0 %v2980
    %3556 = vmatpush1.bf16.msra.mxu0 %v2979
    %3557 = vmatprep.subr.bf16.mxu0 %v2992
    %3558 = vmatpush1.bf16.msra.mxu0 %v2991
    %3559 = vmatprep.subr.bf16.mxu0 %v3004
    %3560 = vmatpush1.bf16.msra.mxu0 %v3003
    %3561 = vmatprep.subr.bf16.mxu0 %v3016
    %3562 = vmatpush1.bf16.msra.mxu0 %v3015
    %3563 = vmatprep.subr.bf16.mxu0 %v3028
    %3564 = vmatpush1.bf16.msra.mxu0 %v3027
    %3565 = vmatprep.subr.bf16.mxu0 %v3040
    %3566 = vmatpush1.bf16.msra.mxu0 %v3039
    %3567 = vmatprep.subr.bf16.mxu0 %v3052
    %3568 = vmatpush1.bf16.msra.mxu0 %v3051
    %3569 = vmatprep.subr.bf16.mxu0 %v3064
    %3570 = vmatpush1.bf16.msra.mxu0 %v3063
    %3571 = vmatprep.subr.bf16.mxu0 %v3076
    %3572 = vmatpush1.bf16.msra.mxu0 %v3075
    %3573 = vmatprep.subr.bf16.mxu0 %v3088
    %3574 = vmatpush1.bf16.msra.mxu0 %v3087
    %3575 = vmatprep.subr.bf16.mxu0 %v3100
    %3576 = vmatpush1.bf16.msra.mxu0 %v3099
    %3577 = vmatprep.subr.bf16.mxu0 %v3112
    %3578 = vmatpush1.bf16.msra.mxu0 %v3111
    %3579 = vmatprep.subr.bf16.mxu0 %v3124
    %3580 = vmatpush1.bf16.msra.mxu0 %v3123
    %3581 = vmatprep.subr.bf16.mxu0 %v3136
    %3582 = vmatpush1.bf16.msra.mxu0 %v3135
    %3583 = vmatprep.subr.bf16.mxu0 %v3148
    %3584 = vmatpush1.bf16.msra.mxu0 %v3147
    %3585 = vmatprep.subr.bf16.mxu0 %v3160
    %3586 = vmatpush1.bf16.msra.mxu0 %v3159
    %3587 = vmatprep.mubr.bf16.mxu0 %v1761
    %3588 = vmatmul.mubr.bf16.gmra.mrb[0].mxu0 %v1760
    %v3589 = vpop.f32.mrb[0].mxu0
    %v3590 = vadd.f32 %v2058, %v3589
    %v3591 = vpop.f32.mrb[0].mxu0
    %v3592 = vadd.f32 %v2062, %v3591
    %v3593 = vpop.f32.mrb[0].mxu0
    %v3594 = vpop.f32.mrb[0].mxu0
    %3595 = vdwg.mxu0
    %3596 = vmatprep.subr.bf16.mxu0 %v3172
    %3597 = vmatpush1.bf16.msra.mxu0 %v3171
    %3598 = vmatprep.subr.bf16.mxu0 %v3184
    %3599 = vmatpush1.bf16.msra.mxu0 %v3183
    %3600 = vmatprep.subr.bf16.mxu0 %v3196
    %3601 = vmatpush1.bf16.msra.mxu0 %v3195
    %3602 = vmatprep.subr.bf16.mxu0 %v3208
    %3603 = vmatpush1.bf16.msra.mxu0 %v3207
    %3604 = vmatprep.subr.bf16.mxu0 %v3220
    %3605 = vmatpush1.bf16.msra.mxu0 %v3219
    %3606 = vmatprep.subr.bf16.mxu0 %v3232
    %3607 = vmatpush1.bf16.msra.mxu0 %v3231
    %3608 = vmatprep.subr.bf16.mxu0 %v3244
    %3609 = vmatpush1.bf16.msra.mxu0 %v3243
    %3610 = vmatprep.subr.bf16.mxu0 %v3256
    %3611 = vmatpush1.bf16.msra.mxu0 %v3255
    %3612 = vmatprep.subr.bf16.mxu0 0
    %3613 = vmatpush1.bf16.msra.mxu0 0
    %3614 = vmatprep.subr.bf16.mxu0 0
    %3615 = vmatpush1.bf16.msra.mxu0 0
    %3616 = vmatprep.subr.bf16.mxu0 0
    %3617 = vmatpush1.bf16.msra.mxu0 0
    %3618 = vmatprep.subr.bf16.mxu0 0
    %3619 = vmatpush1.bf16.msra.mxu0 0
    %3620 = vmatprep.subr.bf16.mxu0 0
    %3621 = vmatpush1.bf16.msra.mxu0 0
    %3622 = vmatprep.subr.bf16.mxu0 0
    %3623 = vmatpush1.bf16.msra.mxu0 0
    %3624 = vmatprep.subr.bf16.mxu0 0
    %3625 = vmatpush1.bf16.msra.mxu0 0
    %3626 = vmatprep.subr.bf16.mxu0 0
    %3627 = vmatpush1.bf16.msra.mxu0 0
    %3628 = vmatprep.mubr.bf16.mxu0 0
    %3629 = vmatmul.mubr.bf16.gmra.mrb[0].mxu0 %v1762
    %v3630 = vpop.f32.mrb[0].mxu0
    %v3631 = vadd.f32 %v3590, %v3630
    %v3632 = vpop.f32.mrb[0].mxu0
    %v3633 = vadd.f32 %v3592, %v3632
    %v3634 = vpop.f32.mrb[0].mxu0
    %v3635 = vpop.f32.mrb[0].mxu0
    %3636 = vdwg.mxu0
    %3637 = vmatprep.subr.bf16.mxu0 %v2982
    %3638 = vmatpush1.bf16.msra.mxu0 %v2981
    %3639 = vmatprep.subr.bf16.mxu0 %v2994
    %3640 = vmatpush1.bf16.msra.mxu0 %v2993
    %3641 = vmatprep.subr.bf16.mxu0 %v3006
    %3642 = vmatpush1.bf16.msra.mxu0 %v3005
    %3643 = vmatprep.subr.bf16.mxu0 %v3018
    %3644 = vmatpush1.bf16.msra.mxu0 %v3017
    %3645 = vmatprep.subr.bf16.mxu0 %v3030
    %3646 = vmatpush1.bf16.msra.mxu0 %v3029
    %3647 = vmatprep.subr.bf16.mxu0 %v3042
    %3648 = vmatpush1.bf16.msra.mxu0 %v3041
    %3649 = vmatprep.subr.bf16.mxu0 %v3054
    %3650 = vmatpush1.bf16.msra.mxu0 %v3053
    %3651 = vmatprep.subr.bf16.mxu0 %v3066
    %3652 = vmatpush1.bf16.msra.mxu0 %v3065
    %3653 = vmatprep.subr.bf16.mxu0 %v3078
    %3654 = vmatpush1.bf16.msra.mxu0 %v3077
    %3655 = vmatprep.subr.bf16.mxu0 %v3090
    %3656 = vmatpush1.bf16.msra.mxu0 %v3089
    %3657 = vmatprep.subr.bf16.mxu0 %v3102
    %3658 = vmatpush1.bf16.msra.mxu0 %v3101
    %3659 = vmatprep.subr.bf16.mxu0 %v3114
    %3660 = vmatpush1.bf16.msra.mxu0 %v3113
    %3661 = vmatprep.subr.bf16.mxu0 %v3126
    %3662 = vmatpush1.bf16.msra.mxu0 %v3125
    %3663 = vmatprep.subr.bf16.mxu0 %v3138
    %3664 = vmatpush1.bf16.msra.mxu0 %v3137
    %3665 = vmatprep.subr.bf16.mxu0 %v3150
    %3666 = vmatpush1.bf16.msra.mxu0 %v3149
    %3667 = vmatprep.subr.bf16.mxu0 %v3162
    %3668 = vmatpush1.bf16.msra.mxu0 %v3161
    %3669 = vmatprep.mubr.bf16.mxu0 %v1761
    %3670 = vmatmul.mubr.bf16.gmra.mrb[0].mxu0 %v1760
    %v3671 = vpop.f32.mrb[0].mxu0
    %v3672 = vadd.f32 %v2066, %v3671
    %v3673 = vpop.f32.mrb[0].mxu0
    %v3674 = vadd.f32 %v2070, %v3673
    %v3675 = vpop.f32.mrb[0].mxu0
    %v3676 = vpop.f32.mrb[0].mxu0
    %3677 = vdwg.mxu0
    %3678 = vmatprep.subr.bf16.mxu0 %v3174
    %3679 = vmatpush1.bf16.msra.mxu0 %v3173
    %3680 = vmatprep.subr.bf16.mxu0 %v3186
    %3681 = vmatpush1.bf16.msra.mxu0 %v3185
    %3682 = vmatprep.subr.bf16.mxu0 %v3198
    %3683 = vmatpush1.bf16.msra.mxu0 %v3197
    %3684 = vmatprep.subr.bf16.mxu0 %v3210
    %3685 = vmatpush1.bf16.msra.mxu0 %v3209
    %3686 = vmatprep.subr.bf16.mxu0 %v3222
    %3687 = vmatpush1.bf16.msra.mxu0 %v3221
    %3688 = vmatprep.subr.bf16.mxu0 %v3234
    %3689 = vmatpush1.bf16.msra.mxu0 %v3233
    %3690 = vmatprep.subr.bf16.mxu0 %v3246
    %3691 = vmatpush1.bf16.msra.mxu0 %v3245
    %3692 = vmatprep.subr.bf16.mxu0 %v3258
    %3693 = vmatpush1.bf16.msra.mxu0 %v3257
    %3694 = vmatprep.subr.bf16.mxu0 0
    %3695 = vmatpush1.bf16.msra.mxu0 0
    %3696 = vmatprep.subr.bf16.mxu0 0
    %3697 = vmatpush1.bf16.msra.mxu0 0
    %3698 = vmatprep.subr.bf16.mxu0 0
    %3699 = vmatpush1.bf16.msra.mxu0 0
    %3700 = vmatprep.subr.bf16.mxu0 0
    %3701 = vmatpush1.bf16.msra.mxu0 0
    %3702 = vmatprep.subr.bf16.mxu0 0
    %3703 = vmatpush1.bf16.msra.mxu0 0
    %3704 = vmatprep.subr.bf16.mxu0 0
    %3705 = vmatpush1.bf16.msra.mxu0 0
    %3706 = vmatprep.subr.bf16.mxu0 0
    %3707 = vmatpush1.bf16.msra.mxu0 0
    %3708 = vmatprep.subr.bf16.mxu0 0
    %3709 = vmatpush1.bf16.msra.mxu0 0
    %3710 = vmatprep.mubr.bf16.mxu0 0
    %3711 = vmatmul.mubr.bf16.gmra.mrb[0].mxu0 %v1762
    %v3712 = vpop.f32.mrb[0].mxu0
    %v3713 = vadd.f32 %v3672, %v3712
    %v3714 = vpop.f32.mrb[0].mxu0
    %v3715 = vadd.f32 %v3674, %v3714
    %v3716 = vpop.f32.mrb[0].mxu0
    %v3717 = vpop.f32.mrb[0].mxu0
    %3718 = vdwg.mxu0
    %3719 = vmatprep.subr.bf16.mxu0 %v2984
    %3720 = vmatpush1.bf16.msra.mxu0 %v2983
    %3721 = vmatprep.subr.bf16.mxu0 %v2996
    %3722 = vmatpush1.bf16.msra.mxu0 %v2995
    %3723 = vmatprep.subr.bf16.mxu0 %v3008
    %3724 = vmatpush1.bf16.msra.mxu0 %v3007
    %3725 = vmatprep.subr.bf16.mxu0 %v3020
    %3726 = vmatpush1.bf16.msra.mxu0 %v3019
    %3727 = vmatprep.subr.bf16.mxu0 %v3032
    %3728 = vmatpush1.bf16.msra.mxu0 %v3031
    %3729 = vmatprep.subr.bf16.mxu0 %v3044
    %3730 = vmatpush1.bf16.msra.mxu0 %v3043
    %3731 = vmatprep.subr.bf16.mxu0 %v3056
    %3732 = vmatpush1.bf16.msra.mxu0 %v3055
    %3733 = vmatprep.subr.bf16.mxu0 %v3068
    %3734 = vmatpush1.bf16.msra.mxu0 %v3067
    %3735 = vmatprep.subr.bf16.mxu0 %v3080
    %3736 = vmatpush1.bf16.msra.mxu0 %v3079
    %3737 = vmatprep.subr.bf16.mxu0 %v3092
    %3738 = vmatpush1.bf16.msra.mxu0 %v3091
    %3739 = vmatprep.subr.bf16.mxu0 %v3104
    %3740 = vmatpush1.bf16.msra.mxu0 %v3103
    %3741 = vmatprep.subr.bf16.mxu0 %v3116
    %3742 = vmatpush1.bf16.msra.mxu0 %v3115
    %3743 = vmatprep.subr.bf16.mxu0 %v3128
    %3744 = vmatpush1.bf16.msra.mxu0 %v3127
    %3745 = vmatprep.subr.bf16.mxu0 %v3140
    %3746 = vmatpush1.bf16.msra.mxu0 %v3139
    %3747 = vmatprep.subr.bf16.mxu0 %v3152
    %3748 = vmatpush1.bf16.msra.mxu0 %v3151
    %3749 = vmatprep.subr.bf16.mxu0 %v3164
    %3750 = vmatpush1.bf16.msra.mxu0 %v3163
    %3751 = vmatprep.mubr.bf16.mxu0 %v1761
    %3752 = vmatmul.mubr.bf16.gmra.mrb[0].mxu0 %v1760
    %v3753 = vpop.f32.mrb[0].mxu0
    %v3754 = vadd.f32 %v2074, %v3753
    %v3755 = vpop.f32.mrb[0].mxu0
    %v3756 = vadd.f32 %v2078, %v3755
    %v3757 = vpop.f32.mrb[0].mxu0
    %v3758 = vpop.f32.mrb[0].mxu0
    %3759 = vdwg.mxu0
    %3760 = vmatprep.subr.bf16.mxu0 %v3176
    %3761 = vmatpush1.bf16.msra.mxu0 %v3175
    %3762 = vmatprep.subr.bf16.mxu0 %v3188
    %3763 = vmatpush1.bf16.msra.mxu0 %v3187
    %3764 = vmatprep.subr.bf16.mxu0 %v3200
    %3765 = vmatpush1.bf16.msra.mxu0 %v3199
    %3766 = vmatprep.subr.bf16.mxu0 %v3212
    %3767 = vmatpush1.bf16.msra.mxu0 %v3211
    %3768 = vmatprep.subr.bf16.mxu0 %v3224
    %3769 = vmatpush1.bf16.msra.mxu0 %v3223
    %3770 = vmatprep.subr.bf16.mxu0 %v3236
    %3771 = vmatpush1.bf16.msra.mxu0 %v3235
    %3772 = vmatprep.subr.bf16.mxu0 %v3248
    %3773 = vmatpush1.bf16.msra.mxu0 %v3247
    %3774 = vmatprep.subr.bf16.mxu0 %v3260
    %3775 = vmatpush1.bf16.msra.mxu0 %v3259
    %3776 = vmatprep.subr.bf16.mxu0 0
    %3777 = vmatpush1.bf16.msra.mxu0 0
    %3778 = vmatprep.subr.bf16.mxu0 0
    %3779 = vmatpush1.bf16.msra.mxu0 0
    %3780 = vmatprep.subr.bf16.mxu0 0
    %3781 = vmatpush1.bf16.msra.mxu0 0
    %3782 = vmatprep.subr.bf16.mxu0 0
    %3783 = vmatpush1.bf16.msra.mxu0 0
    %3784 = vmatprep.subr.bf16.mxu0 0
    %3785 = vmatpush1.bf16.msra.mxu0 0
    %3786 = vmatprep.subr.bf16.mxu0 0
    %3787 = vmatpush1.bf16.msra.mxu0 0
    %3788 = vmatprep.subr.bf16.mxu0 0
    %3789 = vmatpush1.bf16.msra.mxu0 0
    %3790 = vmatprep.subr.bf16.mxu0 0
    %3791 = vmatpush1.bf16.msra.mxu0 0
    %3792 = vmatprep.mubr.bf16.mxu0 0
    %3793 = vmatmul.mubr.bf16.gmra.mrb[0].mxu0 %v1762
    %v3794 = vpop.f32.mrb[0].mxu0
    %v3795 = vadd.f32 %v3754, %v3794
    %v3796 = vpop.f32.mrb[0].mxu0
    %v3797 = vadd.f32 %v3756, %v3796
    %v3798 = vpop.f32.mrb[0].mxu0
    %v3799 = vpop.f32.mrb[0].mxu0
    %3800 = vdwg.mxu0
    %3801 = vmatprep.subr.bf16.mxu0 %v2986
    %3802 = vmatpush1.bf16.msra.mxu0 %v2985
    %3803 = vmatprep.subr.bf16.mxu0 %v2998
    %3804 = vmatpush1.bf16.msra.mxu0 %v2997
    %3805 = vmatprep.subr.bf16.mxu0 %v3010
    %3806 = vmatpush1.bf16.msra.mxu0 %v3009
    %3807 = vmatprep.subr.bf16.mxu0 %v3022
    %3808 = vmatpush1.bf16.msra.mxu0 %v3021
    %3809 = vmatprep.subr.bf16.mxu0 %v3034
    %3810 = vmatpush1.bf16.msra.mxu0 %v3033
    %3811 = vmatprep.subr.bf16.mxu0 %v3046
    %3812 = vmatpush1.bf16.msra.mxu0 %v3045
    %3813 = vmatprep.subr.bf16.mxu0 %v3058
    %3814 = vmatpush1.bf16.msra.mxu0 %v3057
    %3815 = vmatprep.subr.bf16.mxu0 %v3070
    %3816 = vmatpush1.bf16.msra.mxu0 %v3069
    %3817 = vmatprep.subr.bf16.mxu0 %v3082
    %3818 = vmatpush1.bf16.msra.mxu0 %v3081
    %3819 = vmatprep.subr.bf16.mxu0 %v3094
    %3820 = vmatpush1.bf16.msra.mxu0 %v3093
    %3821 = vmatprep.subr.bf16.mxu0 %v3106
    %3822 = vmatpush1.bf16.msra.mxu0 %v3105
    %3823 = vmatprep.subr.bf16.mxu0 %v3118
    %3824 = vmatpush1.bf16.msra.mxu0 %v3117
    %3825 = vmatprep.subr.bf16.mxu0 %v3130
    %3826 = vmatpush1.bf16.msra.mxu0 %v3129
    %3827 = vmatprep.subr.bf16.mxu0 %v3142
    %3828 = vmatpush1.bf16.msra.mxu0 %v3141
    %3829 = vmatprep.subr.bf16.mxu0 %v3154
    %3830 = vmatpush1.bf16.msra.mxu0 %v3153
    %3831 = vmatprep.subr.bf16.mxu0 %v3166
    %3832 = vmatpush1.bf16.msra.mxu0 %v3165
    %3833 = vmatprep.mubr.bf16.mxu0 %v1761
    %3834 = vmatmul.mubr.bf16.gmra.mrb[0].mxu0 %v1760
    %v3835 = vpop.f32.mrb[0].mxu0
    %v3836 = vadd.f32 %v2082, %v3835
    %v3837 = vpop.f32.mrb[0].mxu0
    %v3838 = vadd.f32 %v2086, %v3837
    %v3839 = vpop.f32.mrb[0].mxu0
    %v3840 = vpop.f32.mrb[0].mxu0
    %3841 = vdwg.mxu0
    %3842 = vmatprep.subr.bf16.mxu0 %v3178
    %3843 = vmatpush1.bf16.msra.mxu0 %v3177
    %3844 = vmatprep.subr.bf16.mxu0 %v3190
    %3845 = vmatpush1.bf16.msra.mxu0 %v3189
    %3846 = vmatprep.subr.bf16.mxu0 %v3202
    %3847 = vmatpush1.bf16.msra.mxu0 %v3201
    %3848 = vmatprep.subr.bf16.mxu0 %v3214
    %3849 = vmatpush1.bf16.msra.mxu0 %v3213
    %3850 = vmatprep.subr.bf16.mxu0 %v3226
    %3851 = vmatpush1.bf16.msra.mxu0 %v3225
    %3852 = vmatprep.subr.bf16.mxu0 %v3238
    %3853 = vmatpush1.bf16.msra.mxu0 %v3237
    %3854 = vmatprep.subr.bf16.mxu0 %v3250
    %3855 = vmatpush1.bf16.msra.mxu0 %v3249
    %3856 = vmatprep.subr.bf16.mxu0 %v3262
    %3857 = vmatpush1.bf16.msra.mxu0 %v3261
    %3858 = vmatprep.subr.bf16.mxu0 0
    %3859 = vmatpush1.bf16.msra.mxu0 0
    %3860 = vmatprep.subr.bf16.mxu0 0
    %3861 = vmatpush1.bf16.msra.mxu0 0
    %3862 = vmatprep.subr.bf16.mxu0 0
    %3863 = vmatpush1.bf16.msra.mxu0 0
    %3864 = vmatprep.subr.bf16.mxu0 0
    %3865 = vmatpush1.bf16.msra.mxu0 0
    %3866 = vmatprep.subr.bf16.mxu0 0
    %3867 = vmatpush1.bf16.msra.mxu0 0
    %3868 = vmatprep.subr.bf16.mxu0 0
    %3869 = vmatpush1.bf16.msra.mxu0 0
    %3870 = vmatprep.subr.bf16.mxu0 0
    %3871 = vmatpush1.bf16.msra.mxu0 0
    %3872 = vmatprep.subr.bf16.mxu0 0
    %3873 = vmatpush1.bf16.msra.mxu0 0
    %3874 = vmatprep.mubr.bf16.mxu0 0
    %3875 = vmatmul.mubr.bf16.gmra.mrb[0].mxu0 %v1762
    %v3876 = vpop.f32.mrb[0].mxu0
    %v3877 = vadd.f32 %v3836, %v3876
    %v3878 = vpop.f32.mrb[0].mxu0
    %v3879 = vadd.f32 %v3838, %v3878
    %v3880 = vpop.f32.mrb[0].mxu0
    %v3881 = vpop.f32.mrb[0].mxu0
    %3882 = vdwg.mxu0
    %3883 = vmatprep.subr.bf16.mxu0 %v2988
    %3884 = vmatpush1.bf16.msra.mxu0 %v2987
    %3885 = vmatprep.subr.bf16.mxu0 %v3000
    %3886 = vmatpush1.bf16.msra.mxu0 %v2999
    %3887 = vmatprep.subr.bf16.mxu0 %v3012
    %3888 = vmatpush1.bf16.msra.mxu0 %v3011
    %3889 = vmatprep.subr.bf16.mxu0 %v3024
    %3890 = vmatpush1.bf16.msra.mxu0 %v3023
    %3891 = vmatprep.subr.bf16.mxu0 %v3036
    %3892 = vmatpush1.bf16.msra.mxu0 %v3035
    %3893 = vmatprep.subr.bf16.mxu0 %v3048
    %3894 = vmatpush1.bf16.msra.mxu0 %v3047
    %3895 = vmatprep.subr.bf16.mxu0 %v3060
    %3896 = vmatpush1.bf16.msra.mxu0 %v3059
    %3897 = vmatprep.subr.bf16.mxu0 %v3072
    %3898 = vmatpush1.bf16.msra.mxu0 %v3071
    %3899 = vmatprep.subr.bf16.mxu0 %v3084
    %3900 = vmatpush1.bf16.msra.mxu0 %v3083
    %3901 = vmatprep.subr.bf16.mxu0 %v3096
    %3902 = vmatpush1.bf16.msra.mxu0 %v3095
    %3903 = vmatprep.subr.bf16.mxu0 %v3108
    %3904 = vmatpush1.bf16.msra.mxu0 %v3107
    %3905 = vmatprep.subr.bf16.mxu0 %v3120
    %3906 = vmatpush1.bf16.msra.mxu0 %v3119
    %3907 = vmatprep.subr.bf16.mxu0 %v3132
    %3908 = vmatpush1.bf16.msra.mxu0 %v3131
    %3909 = vmatprep.subr.bf16.mxu0 %v3144
    %3910 = vmatpush1.bf16.msra.mxu0 %v3143
    %3911 = vmatprep.subr.bf16.mxu0 %v3156
    %3912 = vmatpush1.bf16.msra.mxu0 %v3155
    %3913 = vmatprep.subr.bf16.mxu0 %v3168
    %3914 = vmatpush1.bf16.msra.mxu0 %v3167
    %3915 = vmatprep.mubr.bf16.mxu0 %v1761
    %3916 = vmatmul.mubr.bf16.gmra.mrb[0].mxu0 %v1760
    %v3917 = vpop.f32.mrb[0].mxu0
    %v3918 = vadd.f32 %v2090, %v3917
    %v3919 = vpop.f32.mrb[0].mxu0
    %v3920 = vadd.f32 %v2094, %v3919
    %v3921 = vpop.f32.mrb[0].mxu0
    %v3922 = vpop.f32.mrb[0].mxu0
    %3923 = vdwg.mxu0
    %3924 = vmatprep.subr.bf16.mxu0 %v3180
    %3925 = vmatpush1.bf16.msra.mxu0 %v3179
    %3926 = vmatprep.subr.bf16.mxu0 %v3192
    %3927 = vmatpush1.bf16.msra.mxu0 %v3191
    %3928 = vmatprep.subr.bf16.mxu0 %v3204
    %3929 = vmatpush1.bf16.msra.mxu0 %v3203
    %3930 = vmatprep.subr.bf16.mxu0 %v3216
    %3931 = vmatpush1.bf16.msra.mxu0 %v3215
    %3932 = vmatprep.subr.bf16.mxu0 %v3228
    %3933 = vmatpush1.bf16.msra.mxu0 %v3227
    %3934 = vmatprep.subr.bf16.mxu0 %v3240
    %3935 = vmatpush1.bf16.msra.mxu0 %v3239
    %3936 = vmatprep.subr.bf16.mxu0 %v3252
    %3937 = vmatpush1.bf16.msra.mxu0 %v3251
    %3938 = vmatprep.subr.bf16.mxu0 %v3264
    %3939 = vmatpush1.bf16.msra.mxu0 %v3263
    %3940 = vmatprep.subr.bf16.mxu0 0
    %3941 = vmatpush1.bf16.msra.mxu0 0
    %3942 = vmatprep.subr.bf16.mxu0 0
    %3943 = vmatpush1.bf16.msra.mxu0 0
    %3944 = vmatprep.subr.bf16.mxu0 0
    %3945 = vmatpush1.bf16.msra.mxu0 0
    %3946 = vmatprep.subr.bf16.mxu0 0
    %3947 = vmatpush1.bf16.msra.mxu0 0
    %3948 = vmatprep.subr.bf16.mxu0 0
    %3949 = vmatpush1.bf16.msra.mxu0 0
    %3950 = vmatprep.subr.bf16.mxu0 0
    %3951 = vmatpush1.bf16.msra.mxu0 0
    %3952 = vmatprep.subr.bf16.mxu0 0
    %3953 = vmatpush1.bf16.msra.mxu0 0
    %3954 = vmatprep.subr.bf16.mxu0 0
    %3955 = vmatpush1.bf16.msra.mxu0 0
    %3956 = vmatprep.mubr.bf16.mxu0 0
    %3957 = vmatmul.mubr.bf16.gmra.mrb[0].mxu0 %v1762
    %v3958 = vpop.f32.mrb[0].mxu0
    %v3959 = vadd.f32 %v3918, %v3958
    %v3960 = vpop.f32.mrb[0].mxu0
    %v3961 = vadd.f32 %v3920, %v3960
    %v3962 = vpop.f32.mrb[0].mxu0
    %v3963 = vpop.f32.mrb[0].mxu0
    %3964 = vdwg.mxu0
    %3965 = vmatprep.subr.bf16.mxu0 %v2990
    %3966 = vmatpush1.bf16.msra.mxu0 %v2989
    %3967 = vmatprep.subr.bf16.mxu0 %v3002
    %3968 = vmatpush1.bf16.msra.mxu0 %v3001
    %3969 = vmatprep.subr.bf16.mxu0 %v3014
    %3970 = vmatpush1.bf16.msra.mxu0 %v3013
    %3971 = vmatprep.subr.bf16.mxu0 %v3026
    %3972 = vmatpush1.bf16.msra.mxu0 %v3025
    %3973 = vmatprep.subr.bf16.mxu0 %v3038
    %3974 = vmatpush1.bf16.msra.mxu0 %v3037
    %3975 = vmatprep.subr.bf16.mxu0 %v3050
    %3976 = vmatpush1.bf16.msra.mxu0 %v3049
    %3977 = vmatprep.subr.bf16.mxu0 %v3062
    %3978 = vmatpush1.bf16.msra.mxu0 %v3061
    %3979 = vmatprep.subr.bf16.mxu0 %v3074
    %3980 = vmatpush1.bf16.msra.mxu0 %v3073
    %3981 = vmatprep.subr.bf16.mxu0 %v3086
    %3982 = vmatpush1.bf16.msra.mxu0 %v3085
    %3983 = vmatprep.subr.bf16.mxu0 %v3098
    %3984 = vmatpush1.bf16.msra.mxu0 %v3097
    %3985 = vmatprep.subr.bf16.mxu0 %v3110
    %3986 = vmatpush1.bf16.msra.mxu0 %v3109
    %3987 = vmatprep.subr.bf16.mxu0 %v3122
    %3988 = vmatpush1.bf16.msra.mxu0 %v3121
    %3989 = vmatprep.subr.bf16.mxu0 %v3134
    %3990 = vmatpush1.bf16.msra.mxu0 %v3133
    %3991 = vmatprep.subr.bf16.mxu0 %v3146
    %3992 = vmatpush1.bf16.msra.mxu0 %v3145
    %3993 = vmatprep.subr.bf16.mxu0 %v3158
    %3994 = vmatpush1.bf16.msra.mxu0 %v3157
    %3995 = vmatprep.subr.bf16.mxu0 %v3170
    %3996 = vmatpush1.bf16.msra.mxu0 %v3169
    %3997 = vmatprep.mubr.bf16.mxu0 %v1761
    %3998 = vmatmul.mubr.bf16.gmra.mrb[0].mxu0 %v1760
    %v3999 = vpop.f32.mrb[0].mxu0
    %v4000 = vadd.f32 %v2098, %v3999
    %v4001 = vpop.f32.mrb[0].mxu0
    %v4002 = vadd.f32 %v2102, %v4001
    %v4003 = vpop.f32.mrb[0].mxu0
    %v4004 = vpop.f32.mrb[0].mxu0
    %4005 = vdwg.mxu0
    %4006 = vmatprep.subr.bf16.mxu0 %v3182
    %4007 = vmatpush1.bf16.msra.mxu0 %v3181
    %4008 = vmatprep.subr.bf16.mxu0 %v3194
    %4009 = vmatpush1.bf16.msra.mxu0 %v3193
    %4010 = vmatprep.subr.bf16.mxu0 %v3206
    %4011 = vmatpush1.bf16.msra.mxu0 %v3205
    %4012 = vmatprep.subr.bf16.mxu0 %v3218
    %4013 = vmatpush1.bf16.msra.mxu0 %v3217
    %4014 = vmatprep.subr.bf16.mxu0 %v3230
    %4015 = vmatpush1.bf16.msra.mxu0 %v3229
    %4016 = vmatprep.subr.bf16.mxu0 %v3242
    %4017 = vmatpush1.bf16.msra.mxu0 %v3241
    %4018 = vmatprep.subr.bf16.mxu0 %v3254
    %4019 = vmatpush1.bf16.msra.mxu0 %v3253
    %4020 = vmatprep.subr.bf16.mxu0 %v3266
    %4021 = vmatpush1.bf16.msra.mxu0 %v3265
    %4022 = vmatprep.subr.bf16.mxu0 0
    %4023 = vmatpush1.bf16.msra.mxu0 0
    %4024 = vmatprep.subr.bf16.mxu0 0
    %4025 = vmatpush1.bf16.msra.mxu0 0
    %4026 = vmatprep.subr.bf16.mxu0 0
    %4027 = vmatpush1.bf16.msra.mxu0 0
    %4028 = vmatprep.subr.bf16.mxu0 0
    %4029 = vmatpush1.bf16.msra.mxu0 0
    %4030 = vmatprep.subr.bf16.mxu0 0
    %4031 = vmatpush1.bf16.msra.mxu0 0
    %4032 = vmatprep.subr.bf16.mxu0 0
    %4033 = vmatpush1.bf16.msra.mxu0 0
    %4034 = vmatprep.subr.bf16.mxu0 0
    %4035 = vmatpush1.bf16.msra.mxu0 0
    %4036 = vmatprep.subr.bf16.mxu0 0
    %4037 = vmatpush1.bf16.msra.mxu0 0
    %4038 = vmatprep.mubr.bf16.mxu0 0
    %4039 = vmatmul.mubr.bf16.gmra.mrb[0].mxu0 %v1762
    %v4040 = vpop.f32.mrb[0].mxu0
    %v4041 = vadd.f32 %v4000, %v4040
    %v4042 = vpop.f32.mrb[0].mxu0
    %v4043 = vadd.f32 %v4002, %v4042
    %v4044 = vpop.f32.mrb[0].mxu0
    %v4045 = vpop.f32.mrb[0].mxu0
    %4046 = vdwg.mxu0
    %v4047 = vmul.f32 %v3631, 0.5
    %v4048 = vmul.f32 %v3633, 0.5
    %v4049 = vmul.f32 %v3713, 0.5
    %v4050 = vmul.f32 %v3715, 0.5
    %v4051 = vtanh.pop %v4047
    %v4052 = vtanh.pop %v4048
    %v4053 = vtanh.pop %v4049
    %v4054 = vtanh.pop %v4050
    %v4055 = vmul.f32 %v4051, 0.5
    %v4056 = vmul.f32 %v4052, 0.5
    %v4057 = vmul.f32 %v4053, 0.5
    %v4058 = vmul.f32 %v4054, 0.5
    %v4059 = vadd.f32 %v4055, 0.5
    %v4060 = vadd.f32 %v4056, 0.5
    %v4061 = vadd.f32 %v4057, 0.5
    %v4062 = vadd.f32 %v4058, 0.5
    %v4063 = vtanh.pop %v3795
    %v4064 = vtanh.pop %v3797
    %v4065 = vtanh.pop %v3877
    %v4066 = vtanh.pop %v3879
    %v4067 = vmul.f32 %v3959, 0.5
    %v4068 = vmul.f32 %v3961, 0.5
    %v4069 = vmul.f32 %v4041, 0.5
    %v4070 = vmul.f32 %v4043, 0.5
    %v4071 = vtanh.pop %v4067
    %v4072 = vtanh.pop %v4068
    %v4073 = vtanh.pop %v4069
    %v4074 = vtanh.pop %v4070
    %v4075 = vmul.f32 %v4071, 0.5
    %v4076 = vmul.f32 %v4072, 0.5
    %v4077 = vmul.f32 %v4073, 0.5
    %v4078 = vmul.f32 %v4074, 0.5
    %v4079 = vadd.f32 %v4075, 0.5
    %v4080 = vadd.f32 %v4076, 0.5
    %v4081 = vadd.f32 %v4077, 0.5
    %v4082 = vadd.f32 %v4078, 0.5
    %v4083 = vmul.f32 %v4059, %v4063
    %v4084 = vmul.f32 %v4060, %v4064
    %v4085 = vmul.f32 %v4061, %v4065
    %v4086 = vmul.f32 %v4062, %v4066
    %v4087 = vtanh.pop %v4083
    %v4088 = vtanh.pop %v4084
    %v4089 = vtanh.pop %v4085
    %v4090 = vtanh.pop %v4086
    %v4091 = vmul.f32 %v4079, %v4087
    %v4092 = vmul.f32 %v4080, %v4088
    %v4093 = vmul.f32 %v4081, %v4089
    %v4094 = vmul.f32 %v4082, %v4090
    %v4095 = vpack.c.bf16 %v4091, %v4091
    %v4096 = vpack.c.bf16 %v4092, %v4092
    %v4097 = vpack.c.bf16 %v4093, %v4093
    %v4098 = vpack.c.bf16 %v4094, %v4094
    %v4099 = vld [vmem:[#allocation14] sm:$0xff]
    %v4100 = vld [vmem:[#allocation14 + $0x8] sm:$0xff]
    %v4101 = vld [vmem:[#allocation14 + $0x10] sm:$0xff]
    %v4102 = vld [vmem:[#allocation14 + $0x18] sm:$0xff]
    %v4103 = vld [vmem:[#allocation14 + $0x20] sm:$0xff]
    %v4104 = vld [vmem:[#allocation14 + $0x28] sm:$0xff]
    %v4105 = vld [vmem:[#allocation14 + $0x30] sm:$0xff]
    %v4106 = vld [vmem:[#allocation14 + $0x38] sm:$0xff]
    %v4107 = vld [vmem:[#allocation14 + $0x40] sm:$0xff]
    %v4108 = vld [vmem:[#allocation14 + $0x48] sm:$0xff]
    %v4109 = vld [vmem:[#allocation14 + $0x50] sm:$0xff]
    %v4110 = vld [vmem:[#allocation14 + $0x58] sm:$0xff]
    %v4111 = vld [vmem:[#allocation14 + $0x60] sm:$0xff]
    %v4112 = vld [vmem:[#allocation14 + $0x68] sm:$0xff]
    %v4113 = vld [vmem:[#allocation14 + $0x70] sm:$0xff]
    %v4114 = vld [vmem:[#allocation14 + $0x78] sm:$0xff]
    %v4115 = vld [vmem:[#allocation14 + $0x80] sm:$0xff]
    %v4116 = vld [vmem:[#allocation14 + $0x88] sm:$0xff]
    %v4117 = vld [vmem:[#allocation14 + $0x90] sm:$0xff]
    %v4118 = vld [vmem:[#allocation14 + $0x98] sm:$0xff]
    %v4119 = vld [vmem:[#allocation14 + $0xa0] sm:$0xff]
    %v4120 = vld [vmem:[#allocation14 + $0xa8] sm:$0xff]
    %v4121 = vld [vmem:[#allocation14 + $0xb0] sm:$0xff]
    %v4122 = vld [vmem:[#allocation14 + $0xb8] sm:$0xff]
    %v4123 = vld [vmem:[#allocation14 + $0xc0] sm:$0xff]
    %v4124 = vld [vmem:[#allocation14 + $0xc8] sm:$0xff]
    %v4125 = vld [vmem:[#allocation14 + $0xd0] sm:$0xff]
    %v4126 = vld [vmem:[#allocation14 + $0xd8] sm:$0xff]
    %v4127 = vld [vmem:[#allocation14 + $0xe0] sm:$0xff]
    %v4128 = vld [vmem:[#allocation14 + $0xe8] sm:$0xff]
    %v4129 = vld [vmem:[#allocation14 + $0xf0] sm:$0xff]
    %v4130 = vld [vmem:[#allocation14 + $0xf8] sm:$0xff]
    %v4131 = vld [vmem:[#allocation14 + $0x100] sm:$0xff]
    %v4132 = vld [vmem:[#allocation14 + $0x108] sm:$0xff]
    %v4133 = vld [vmem:[#allocation14 + $0x110] sm:$0xff]
    %v4134 = vld [vmem:[#allocation14 + $0x118] sm:$0xff]
    %v4135 = vld [vmem:[#allocation14 + $0x120] sm:$0xff]
    %v4136 = vld [vmem:[#allocation14 + $0x128] sm:$0xff]
    %v4137 = vld [vmem:[#allocation14 + $0x130] sm:$0xff]
    %v4138 = vld [vmem:[#allocation14 + $0x138] sm:$0xff]
    %v4139 = vld [vmem:[#allocation14 + $0x140] sm:$0xff]
    %v4140 = vld [vmem:[#allocation14 + $0x148] sm:$0xff]
    %v4141 = vld [vmem:[#allocation14 + $0x150] sm:$0xff]
    %v4142 = vld [vmem:[#allocation14 + $0x158] sm:$0xff]
    %v4143 = vld [vmem:[#allocation14 + $0x160] sm:$0xff]
    %v4144 = vld [vmem:[#allocation14 + $0x168] sm:$0xff]
    %v4145 = vld [vmem:[#allocation14 + $0x170] sm:$0xff]
    %v4146 = vld [vmem:[#allocation14 + $0x178] sm:$0xff]
    %v4147 = vld [vmem:[#allocation14 + $0x180] sm:$0xff]
    %v4148 = vld [vmem:[#allocation14 + $0x188] sm:$0xff]
    %v4149 = vld [vmem:[#allocation14 + $0x190] sm:$0xff]
    %v4150 = vld [vmem:[#allocation14 + $0x198] sm:$0xff]
    %v4151 = vld [vmem:[#allocation14 + $0x1a0] sm:$0xff]
    %v4152 = vld [vmem:[#allocation14 + $0x1a8] sm:$0xff]
    %v4153 = vld [vmem:[#allocation14 + $0x1b0] sm:$0xff]
    %v4154 = vld [vmem:[#allocation14 + $0x1b8] sm:$0xff]
    %v4155 = vld [vmem:[#allocation14 + $0x1c0] sm:$0xff]
    %v4156 = vld [vmem:[#allocation14 + $0x1c8] sm:$0xff]
    %v4157 = vld [vmem:[#allocation14 + $0x1d0] sm:$0xff]
    %v4158 = vld [vmem:[#allocation14 + $0x1d8] sm:$0xff]
    %v4159 = vld [vmem:[#allocation14 + $0x1e0] sm:$0xff]
    %v4160 = vld [vmem:[#allocation14 + $0x1e8] sm:$0xff]
    %v4161 = vld [vmem:[#allocation14 + $0x1f0] sm:$0xff]
    %v4162 = vld [vmem:[#allocation14 + $0x1f8] sm:$0xff]
    %v4163 = vld [vmem:[#allocation14 + $0x200] sm:$0xff]
    %v4164 = vld [vmem:[#allocation14 + $0x208] sm:$0xff]
    %v4165 = vld [vmem:[#allocation14 + $0x210] sm:$0xff]
    %v4166 = vld [vmem:[#allocation14 + $0x218] sm:$0xff]
    %v4167 = vld [vmem:[#allocation14 + $0x220] sm:$0xff]
    %v4168 = vld [vmem:[#allocation14 + $0x228] sm:$0xff]
    %v4169 = vld [vmem:[#allocation14 + $0x230] sm:$0xff]
    %v4170 = vld [vmem:[#allocation14 + $0x238] sm:$0xff]
    %v4171 = vld [vmem:[#allocation14 + $0x240] sm:$0xff]
    %v4172 = vld [vmem:[#allocation14 + $0x248] sm:$0xff]
    %v4173 = vld [vmem:[#allocation14 + $0x250] sm:$0xff]
    %v4174 = vld [vmem:[#allocation14 + $0x258] sm:$0xff]
    %v4175 = vld [vmem:[#allocation14 + $0x260] sm:$0xff]
    %v4176 = vld [vmem:[#allocation14 + $0x268] sm:$0xff]
    %v4177 = vld [vmem:[#allocation14 + $0x270] sm:$0xff]
    %v4178 = vld [vmem:[#allocation14 + $0x278] sm:$0xff]
    %v4179 = vld [vmem:[#allocation14 + $0x280] sm:$0xff]
    %v4180 = vld [vmem:[#allocation14 + $0x288] sm:$0xff]
    %v4181 = vld [vmem:[#allocation14 + $0x290] sm:$0xff]
    %v4182 = vld [vmem:[#allocation14 + $0x298] sm:$0xff]
    %v4183 = vld [vmem:[#allocation14 + $0x2a0] sm:$0xff]
    %v4184 = vld [vmem:[#allocation14 + $0x2a8] sm:$0xff]
    %v4185 = vld [vmem:[#allocation14 + $0x2b0] sm:$0xff]
    %v4186 = vld [vmem:[#allocation14 + $0x2b8] sm:$0xff]
    %v4187 = vld [vmem:[#allocation14 + $0x2c0] sm:$0xff]
    %v4188 = vld [vmem:[#allocation14 + $0x2c8] sm:$0xff]
    %v4189 = vld [vmem:[#allocation14 + $0x2d0] sm:$0xff]
    %v4190 = vld [vmem:[#allocation14 + $0x2d8] sm:$0xff]
    %v4191 = vld [vmem:[#allocation14 + $0x2e0] sm:$0xff]
    %v4192 = vld [vmem:[#allocation14 + $0x2e8] sm:$0xff]
    %v4193 = vld [vmem:[#allocation14 + $0x2f0] sm:$0xff]
    %v4194 = vld [vmem:[#allocation14 + $0x2f8] sm:$0xff]
    %v4195 = vld [vmem:[#allocation14 + $0x300] sm:$0xff]
    %v4196 = vld [vmem:[#allocation14 + $0x308] sm:$0xff]
    %v4197 = vld [vmem:[#allocation14 + $0x310] sm:$0xff]
    %v4198 = vld [vmem:[#allocation14 + $0x318] sm:$0xff]
    %v4199 = vld [vmem:[#allocation14 + $0x320] sm:$0xff]
    %v4200 = vld [vmem:[#allocation14 + $0x328] sm:$0xff]
    %v4201 = vld [vmem:[#allocation14 + $0x330] sm:$0xff]
    %v4202 = vld [vmem:[#allocation14 + $0x338] sm:$0xff]
    %v4203 = vld [vmem:[#allocation14 + $0x340] sm:$0xff]
    %v4204 = vld [vmem:[#allocation14 + $0x348] sm:$0xff]
    %v4205 = vld [vmem:[#allocation14 + $0x350] sm:$0xff]
    %v4206 = vld [vmem:[#allocation14 + $0x358] sm:$0xff]
    %v4207 = vld [vmem:[#allocation14 + $0x360] sm:$0xff]
    %v4208 = vld [vmem:[#allocation14 + $0x368] sm:$0xff]
    %v4209 = vld [vmem:[#allocation14 + $0x370] sm:$0xff]
    %v4210 = vld [vmem:[#allocation14 + $0x378] sm:$0xff]
    %v4211 = vld [vmem:[#allocation14 + $0x380] sm:$0xff]
    %v4212 = vld [vmem:[#allocation14 + $0x388] sm:$0xff]
    %v4213 = vld [vmem:[#allocation14 + $0x390] sm:$0xff]
    %v4214 = vld [vmem:[#allocation14 + $0x398] sm:$0xff]
    %v4215 = vld [vmem:[#allocation14 + $0x3a0] sm:$0xff]
    %v4216 = vld [vmem:[#allocation14 + $0x3a8] sm:$0xff]
    %v4217 = vld [vmem:[#allocation14 + $0x3b0] sm:$0xff]
    %v4218 = vld [vmem:[#allocation14 + $0x3b8] sm:$0xff]
    %v4219 = vld [vmem:[#allocation14 + $0x3c0] sm:$0xff]
    %v4220 = vld [vmem:[#allocation14 + $0x3c8] sm:$0xff]
    %v4221 = vld [vmem:[#allocation14 + $0x3d0] sm:$0xff]
    %v4222 = vld [vmem:[#allocation14 + $0x3d8] sm:$0xff]
    %v4223 = vld [vmem:[#allocation14 + $0x3e0] sm:$0xff]
    %v4224 = vld [vmem:[#allocation14 + $0x3e8] sm:$0xff]
    %v4225 = vld [vmem:[#allocation14 + $0x3f0] sm:$0xff]
    %v4226 = vld [vmem:[#allocation14 + $0x3f8] sm:$0xff]
    %v4227 = vld [vmem:[#allocation16] sm:$0xf]
    %v4229 = vlaneseq
    %v4230 = vshrl.u32 %v4229, 7
    %v4231 = vsub.s32 0, %v4230
    %v4232 = vrot.slane %v4227, %v4231
    %v4233 = vlaneseq
    %v4234 = vshrl.u32 %v4233, 7
    %v4235 = vsub.s32 1, %v4234
    %v4236 = vrot.slane %v4227, %v4235
    %v4237 = vlaneseq
    %v4238 = vshrl.u32 %v4237, 7
    %v4239 = vsub.s32 2, %v4238
    %v4240 = vrot.slane %v4227, %v4239
    %v4241 = vlaneseq
    %v4242 = vshrl.u32 %v4241, 7
    %v4243 = vsub.s32 3, %v4242
    %v4244 = vrot.slane %v4227, %v4243
    %v4377 = vunpack.c.l.b16 %v4099
    %v4378 = vunpack.c.h.b16 %v4099
    %v4379 = vunpack.c.l.b16 %v4100
    %v4380 = vunpack.c.h.b16 %v4100
    %v4381 = vunpack.c.l.b16 %v4101
    %v4382 = vunpack.c.h.b16 %v4101
    %v4383 = vunpack.c.l.b16 %v4102
    %v4384 = vunpack.c.h.b16 %v4102
    %v4385 = vunpack.c.l.b16 %v4103
    %v4386 = vunpack.c.h.b16 %v4103
    %v4387 = vunpack.c.l.b16 %v4104
    %v4388 = vunpack.c.h.b16 %v4104
    %v4389 = vunpack.c.l.b16 %v4105
    %v4390 = vunpack.c.h.b16 %v4105
    %v4391 = vunpack.c.l.b16 %v4106
    %v4392 = vunpack.c.h.b16 %v4106
    %v4393 = vunpack.c.l.b16 %v4107
    %v4394 = vunpack.c.h.b16 %v4107
    %v4395 = vunpack.c.l.b16 %v4108
    %v4396 = vunpack.c.h.b16 %v4108
    %v4397 = vunpack.c.l.b16 %v4109
    %v4398 = vunpack.c.h.b16 %v4109
    %v4399 = vunpack.c.l.b16 %v4110
    %v4400 = vunpack.c.h.b16 %v4110
    %v4401 = vunpack.c.l.b16 %v4111
    %v4402 = vunpack.c.h.b16 %v4111
    %v4403 = vunpack.c.l.b16 %v4112
    %v4404 = vunpack.c.h.b16 %v4112
    %v4405 = vunpack.c.l.b16 %v4113
    %v4406 = vunpack.c.h.b16 %v4113
    %v4407 = vunpack.c.l.b16 %v4114
    %v4408 = vunpack.c.h.b16 %v4114
    %v4409 = vunpack.c.l.b16 %v4115
    %v4410 = vunpack.c.h.b16 %v4115
    %v4411 = vunpack.c.l.b16 %v4116
    %v4412 = vunpack.c.h.b16 %v4116
    %v4413 = vunpack.c.l.b16 %v4117
    %v4414 = vunpack.c.h.b16 %v4117
    %v4415 = vunpack.c.l.b16 %v4118
    %v4416 = vunpack.c.h.b16 %v4118
    %v4417 = vunpack.c.l.b16 %v4119
    %v4418 = vunpack.c.h.b16 %v4119
    %v4419 = vunpack.c.l.b16 %v4120
    %v4420 = vunpack.c.h.b16 %v4120
    %v4421 = vunpack.c.l.b16 %v4121
    %v4422 = vunpack.c.h.b16 %v4121
    %v4423 = vunpack.c.l.b16 %v4122
    %v4424 = vunpack.c.h.b16 %v4122
    %v4425 = vunpack.c.l.b16 %v4123
    %v4426 = vunpack.c.h.b16 %v4123
    %v4427 = vunpack.c.l.b16 %v4124
    %v4428 = vunpack.c.h.b16 %v4124
    %v4429 = vunpack.c.l.b16 %v4125
    %v4430 = vunpack.c.h.b16 %v4125
    %v4431 = vunpack.c.l.b16 %v4126
    %v4432 = vunpack.c.h.b16 %v4126
    %v4433 = vunpack.c.l.b16 %v4127
    %v4434 = vunpack.c.h.b16 %v4127
    %v4435 = vunpack.c.l.b16 %v4128
    %v4436 = vunpack.c.h.b16 %v4128
    %v4437 = vunpack.c.l.b16 %v4129
    %v4438 = vunpack.c.h.b16 %v4129
    %v4439 = vunpack.c.l.b16 %v4130
    %v4440 = vunpack.c.h.b16 %v4130
    %v4441 = vunpack.c.l.b16 %v4131
    %v4442 = vunpack.c.h.b16 %v4131
    %v4443 = vunpack.c.l.b16 %v4132
    %v4444 = vunpack.c.h.b16 %v4132
    %v4445 = vunpack.c.l.b16 %v4133
    %v4446 = vunpack.c.h.b16 %v4133
    %v4447 = vunpack.c.l.b16 %v4134
    %v4448 = vunpack.c.h.b16 %v4134
    %v4449 = vunpack.c.l.b16 %v4135
    %v4450 = vunpack.c.h.b16 %v4135
    %v4451 = vunpack.c.l.b16 %v4136
    %v4452 = vunpack.c.h.b16 %v4136
    %v4453 = vunpack.c.l.b16 %v4137
    %v4454 = vunpack.c.h.b16 %v4137
    %v4455 = vunpack.c.l.b16 %v4138
    %v4456 = vunpack.c.h.b16 %v4138
    %v4457 = vunpack.c.l.b16 %v4139
    %v4458 = vunpack.c.h.b16 %v4139
    %v4459 = vunpack.c.l.b16 %v4140
    %v4460 = vunpack.c.h.b16 %v4140
    %v4461 = vunpack.c.l.b16 %v4141
    %v4462 = vunpack.c.h.b16 %v4141
    %v4463 = vunpack.c.l.b16 %v4142
    %v4464 = vunpack.c.h.b16 %v4142
    %v4465 = vunpack.c.l.b16 %v4143
    %v4466 = vunpack.c.h.b16 %v4143
    %v4467 = vunpack.c.l.b16 %v4144
    %v4468 = vunpack.c.h.b16 %v4144
    %v4469 = vunpack.c.l.b16 %v4145
    %v4470 = vunpack.c.h.b16 %v4145
    %v4471 = vunpack.c.l.b16 %v4146
    %v4472 = vunpack.c.h.b16 %v4146
    %v4473 = vunpack.c.l.b16 %v4147
    %v4474 = vunpack.c.h.b16 %v4147
    %v4475 = vunpack.c.l.b16 %v4148
    %v4476 = vunpack.c.h.b16 %v4148
    %v4477 = vunpack.c.l.b16 %v4149
    %v4478 = vunpack.c.h.b16 %v4149
    %v4479 = vunpack.c.l.b16 %v4150
    %v4480 = vunpack.c.h.b16 %v4150
    %v4481 = vunpack.c.l.b16 %v4151
    %v4482 = vunpack.c.h.b16 %v4151
    %v4483 = vunpack.c.l.b16 %v4152
    %v4484 = vunpack.c.h.b16 %v4152
    %v4485 = vunpack.c.l.b16 %v4153
    %v4486 = vunpack.c.h.b16 %v4153
    %v4487 = vunpack.c.l.b16 %v4154
    %v4488 = vunpack.c.h.b16 %v4154
    %v4489 = vunpack.c.l.b16 %v4155
    %v4490 = vunpack.c.h.b16 %v4155
    %v4491 = vunpack.c.l.b16 %v4156
    %v4492 = vunpack.c.h.b16 %v4156
    %v4493 = vunpack.c.l.b16 %v4157
    %v4494 = vunpack.c.h.b16 %v4157
    %v4495 = vunpack.c.l.b16 %v4158
    %v4496 = vunpack.c.h.b16 %v4158
    %v4497 = vunpack.c.l.b16 %v4159
    %v4498 = vunpack.c.h.b16 %v4159
    %v4499 = vunpack.c.l.b16 %v4160
    %v4500 = vunpack.c.h.b16 %v4160
    %v4501 = vunpack.c.l.b16 %v4161
    %v4502 = vunpack.c.h.b16 %v4161
    %v4503 = vunpack.c.l.b16 %v4162
    %v4504 = vunpack.c.h.b16 %v4162
    %v4505 = vunpack.c.l.b16 %v4163
    %v4506 = vunpack.c.h.b16 %v4163
    %v4507 = vunpack.c.l.b16 %v4164
    %v4508 = vunpack.c.h.b16 %v4164
    %v4509 = vunpack.c.l.b16 %v4165
    %v4510 = vunpack.c.h.b16 %v4165
    %v4511 = vunpack.c.l.b16 %v4166
    %v4512 = vunpack.c.h.b16 %v4166
    %v4513 = vunpack.c.l.b16 %v4167
    %v4514 = vunpack.c.h.b16 %v4167
    %v4515 = vunpack.c.l.b16 %v4168
    %v4516 = vunpack.c.h.b16 %v4168
    %v4517 = vunpack.c.l.b16 %v4169
    %v4518 = vunpack.c.h.b16 %v4169
    %v4519 = vunpack.c.l.b16 %v4170
    %v4520 = vunpack.c.h.b16 %v4170
    %v4521 = vunpack.c.l.b16 %v4171
    %v4522 = vunpack.c.h.b16 %v4171
    %v4523 = vunpack.c.l.b16 %v4172
    %v4524 = vunpack.c.h.b16 %v4172
    %v4525 = vunpack.c.l.b16 %v4173
    %v4526 = vunpack.c.h.b16 %v4173
    %v4527 = vunpack.c.l.b16 %v4174
    %v4528 = vunpack.c.h.b16 %v4174
    %v4529 = vunpack.c.l.b16 %v4175
    %v4530 = vunpack.c.h.b16 %v4175
    %v4531 = vunpack.c.l.b16 %v4176
    %v4532 = vunpack.c.h.b16 %v4176
    %v4533 = vunpack.c.l.b16 %v4177
    %v4534 = vunpack.c.h.b16 %v4177
    %v4535 = vunpack.c.l.b16 %v4178
    %v4536 = vunpack.c.h.b16 %v4178
    %v4537 = vunpack.c.l.b16 %v4179
    %v4538 = vunpack.c.h.b16 %v4179
    %v4539 = vunpack.c.l.b16 %v4180
    %v4540 = vunpack.c.h.b16 %v4180
    %v4541 = vunpack.c.l.b16 %v4181
    %v4542 = vunpack.c.h.b16 %v4181
    %v4543 = vunpack.c.l.b16 %v4182
    %v4544 = vunpack.c.h.b16 %v4182
    %v4545 = vunpack.c.l.b16 %v4183
    %v4546 = vunpack.c.h.b16 %v4183
    %v4547 = vunpack.c.l.b16 %v4184
    %v4548 = vunpack.c.h.b16 %v4184
    %v4549 = vunpack.c.l.b16 %v4185
    %v4550 = vunpack.c.h.b16 %v4185
    %v4551 = vunpack.c.l.b16 %v4186
    %v4552 = vunpack.c.h.b16 %v4186
    %v4553 = vunpack.c.l.b16 %v4187
    %v4554 = vunpack.c.h.b16 %v4187
    %v4555 = vunpack.c.l.b16 %v4188
    %v4556 = vunpack.c.h.b16 %v4188
    %v4557 = vunpack.c.l.b16 %v4189
    %v4558 = vunpack.c.h.b16 %v4189
    %v4559 = vunpack.c.l.b16 %v4190
    %v4560 = vunpack.c.h.b16 %v4190
    %v4561 = vunpack.c.l.b16 %v4191
    %v4562 = vunpack.c.h.b16 %v4191
    %v4563 = vunpack.c.l.b16 %v4192
    %v4564 = vunpack.c.h.b16 %v4192
    %v4565 = vunpack.c.l.b16 %v4193
    %v4566 = vunpack.c.h.b16 %v4193
    %v4567 = vunpack.c.l.b16 %v4194
    %v4568 = vunpack.c.h.b16 %v4194
    %v4569 = vunpack.c.l.b16 %v4195
    %v4570 = vunpack.c.h.b16 %v4195
    %v4571 = vunpack.c.l.b16 %v4196
    %v4572 = vunpack.c.h.b16 %v4196
    %v4573 = vunpack.c.l.b16 %v4197
    %v4574 = vunpack.c.h.b16 %v4197
    %v4575 = vunpack.c.l.b16 %v4198
    %v4576 = vunpack.c.h.b16 %v4198
    %v4577 = vunpack.c.l.b16 %v4199
    %v4578 = vunpack.c.h.b16 %v4199
    %v4579 = vunpack.c.l.b16 %v4200
    %v4580 = vunpack.c.h.b16 %v4200
    %v4581 = vunpack.c.l.b16 %v4201
    %v4582 = vunpack.c.h.b16 %v4201
    %v4583 = vunpack.c.l.b16 %v4202
    %v4584 = vunpack.c.h.b16 %v4202
    %v4585 = vunpack.c.l.b16 %v4203
    %v4586 = vunpack.c.h.b16 %v4203
    %v4587 = vunpack.c.l.b16 %v4204
    %v4588 = vunpack.c.h.b16 %v4204
    %v4589 = vunpack.c.l.b16 %v4205
    %v4590 = vunpack.c.h.b16 %v4205
    %v4591 = vunpack.c.l.b16 %v4206
    %v4592 = vunpack.c.h.b16 %v4206
    %v4593 = vunpack.c.l.b16 %v4207
    %v4594 = vunpack.c.h.b16 %v4207
    %v4595 = vunpack.c.l.b16 %v4208
    %v4596 = vunpack.c.h.b16 %v4208
    %v4597 = vunpack.c.l.b16 %v4209
    %v4598 = vunpack.c.h.b16 %v4209
    %v4599 = vunpack.c.l.b16 %v4210
    %v4600 = vunpack.c.h.b16 %v4210
    %v4601 = vunpack.c.l.b16 %v4211
    %v4602 = vunpack.c.h.b16 %v4211
    %v4603 = vunpack.c.l.b16 %v4212
    %v4604 = vunpack.c.h.b16 %v4212
    %v4605 = vunpack.c.l.b16 %v4213
    %v4606 = vunpack.c.h.b16 %v4213
    %v4607 = vunpack.c.l.b16 %v4214
    %v4608 = vunpack.c.h.b16 %v4214
    %v4609 = vunpack.c.l.b16 %v4215
    %v4610 = vunpack.c.h.b16 %v4215
    %v4611 = vunpack.c.l.b16 %v4216
    %v4612 = vunpack.c.h.b16 %v4216
    %v4613 = vunpack.c.l.b16 %v4217
    %v4614 = vunpack.c.h.b16 %v4217
    %v4615 = vunpack.c.l.b16 %v4218
    %v4616 = vunpack.c.h.b16 %v4218
    %v4617 = vunpack.c.l.b16 %v4219
    %v4618 = vunpack.c.h.b16 %v4219
    %v4619 = vunpack.c.l.b16 %v4220
    %v4620 = vunpack.c.h.b16 %v4220
    %v4621 = vunpack.c.l.b16 %v4221
    %v4622 = vunpack.c.h.b16 %v4221
    %v4623 = vunpack.c.l.b16 %v4222
    %v4624 = vunpack.c.h.b16 %v4222
    %v4625 = vunpack.c.l.b16 %v4223
    %v4626 = vunpack.c.h.b16 %v4223
    %v4627 = vunpack.c.l.b16 %v4224
    %v4628 = vunpack.c.h.b16 %v4224
    %v4629 = vunpack.c.l.b16 %v4225
    %v4630 = vunpack.c.h.b16 %v4225
    %v4631 = vunpack.c.l.b16 %v4226
    %v4632 = vunpack.c.h.b16 %v4226
    %v4633 = vpack.c.b16 %v4381, %v4377
    %v4634 = vpack.c.b16 %v4382, %v4378
    %v4635 = vpack.c.b16 %v4383, %v4379
    %v4636 = vpack.c.b16 %v4384, %v4380
    %v4637 = vpack.c.b16 %v4389, %v4385
    %v4638 = vpack.c.b16 %v4390, %v4386
    %v4639 = vpack.c.b16 %v4391, %v4387
    %v4640 = vpack.c.b16 %v4392, %v4388
    %v4641 = vpack.c.b16 %v4397, %v4393
    %v4642 = vpack.c.b16 %v4398, %v4394
    %v4643 = vpack.c.b16 %v4399, %v4395
    %v4644 = vpack.c.b16 %v4400, %v4396
    %v4645 = vpack.c.b16 %v4405, %v4401
    %v4646 = vpack.c.b16 %v4406, %v4402
    %v4647 = vpack.c.b16 %v4407, %v4403
    %v4648 = vpack.c.b16 %v4408, %v4404
    %v4649 = vpack.c.b16 %v4413, %v4409
    %v4650 = vpack.c.b16 %v4414, %v4410
    %v4651 = vpack.c.b16 %v4415, %v4411
    %v4652 = vpack.c.b16 %v4416, %v4412
    %v4653 = vpack.c.b16 %v4421, %v4417
    %v4654 = vpack.c.b16 %v4422, %v4418
    %v4655 = vpack.c.b16 %v4423, %v4419
    %v4656 = vpack.c.b16 %v4424, %v4420
    %v4657 = vpack.c.b16 %v4429, %v4425
    %v4658 = vpack.c.b16 %v4430, %v4426
    %v4659 = vpack.c.b16 %v4431, %v4427
    %v4660 = vpack.c.b16 %v4432, %v4428
    %v4661 = vpack.c.b16 %v4437, %v4433
    %v4662 = vpack.c.b16 %v4438, %v4434
    %v4663 = vpack.c.b16 %v4439, %v4435
    %v4664 = vpack.c.b16 %v4440, %v4436
    %v4665 = vpack.c.b16 %v4445, %v4441
    %v4666 = vpack.c.b16 %v4446, %v4442
    %v4667 = vpack.c.b16 %v4447, %v4443
    %v4668 = vpack.c.b16 %v4448, %v4444
    %v4669 = vpack.c.b16 %v4453, %v4449
    %v4670 = vpack.c.b16 %v4454, %v4450
    %v4671 = vpack.c.b16 %v4455, %v4451
    %v4672 = vpack.c.b16 %v4456, %v4452
    %v4673 = vpack.c.b16 %v4461, %v4457
    %v4674 = vpack.c.b16 %v4462, %v4458
    %v4675 = vpack.c.b16 %v4463, %v4459
    %v4676 = vpack.c.b16 %v4464, %v4460
    %v4677 = vpack.c.b16 %v4469, %v4465
    %v4678 = vpack.c.b16 %v4470, %v4466
    %v4679 = vpack.c.b16 %v4471, %v4467
    %v4680 = vpack.c.b16 %v4472, %v4468
    %v4681 = vpack.c.b16 %v4477, %v4473
    %v4682 = vpack.c.b16 %v4478, %v4474
    %v4683 = vpack.c.b16 %v4479, %v4475
    %v4684 = vpack.c.b16 %v4480, %v4476
    %v4685 = vpack.c.b16 %v4485, %v4481
    %v4686 = vpack.c.b16 %v4486, %v4482
    %v4687 = vpack.c.b16 %v4487, %v4483
    %v4688 = vpack.c.b16 %v4488, %v4484
    %v4689 = vpack.c.b16 %v4493, %v4489
    %v4690 = vpack.c.b16 %v4494, %v4490
    %v4691 = vpack.c.b16 %v4495, %v4491
    %v4692 = vpack.c.b16 %v4496, %v4492
    %v4693 = vpack.c.b16 %v4501, %v4497
    %v4694 = vpack.c.b16 %v4502, %v4498
    %v4695 = vpack.c.b16 %v4503, %v4499
    %v4696 = vpack.c.b16 %v4504, %v4500
    %v4697 = vpack.c.b16 %v4509, %v4505
    %v4698 = vpack.c.b16 %v4510, %v4506
    %v4699 = vpack.c.b16 %v4511, %v4507
    %v4700 = vpack.c.b16 %v4512, %v4508
    %v4701 = vpack.c.b16 %v4517, %v4513
    %v4702 = vpack.c.b16 %v4518, %v4514
    %v4703 = vpack.c.b16 %v4519, %v4515
    %v4704 = vpack.c.b16 %v4520, %v4516
    %v4705 = vpack.c.b16 %v4525, %v4521
    %v4706 = vpack.c.b16 %v4526, %v4522
    %v4707 = vpack.c.b16 %v4527, %v4523
    %v4708 = vpack.c.b16 %v4528, %v4524
    %v4709 = vpack.c.b16 %v4533, %v4529
    %v4710 = vpack.c.b16 %v4534, %v4530
    %v4711 = vpack.c.b16 %v4535, %v4531
    %v4712 = vpack.c.b16 %v4536, %v4532
    %v4713 = vpack.c.b16 %v4541, %v4537
    %v4714 = vpack.c.b16 %v4542, %v4538
    %v4715 = vpack.c.b16 %v4543, %v4539
    %v4716 = vpack.c.b16 %v4544, %v4540
    %v4717 = vpack.c.b16 %v4549, %v4545
    %v4718 = vpack.c.b16 %v4550, %v4546
    %v4719 = vpack.c.b16 %v4551, %v4547
    %v4720 = vpack.c.b16 %v4552, %v4548
    %v4721 = vpack.c.b16 %v4557, %v4553
    %v4722 = vpack.c.b16 %v4558, %v4554
    %v4723 = vpack.c.b16 %v4559, %v4555
    %v4724 = vpack.c.b16 %v4560, %v4556
    %v4725 = vpack.c.b16 %v4565, %v4561
    %v4726 = vpack.c.b16 %v4566, %v4562
    %v4727 = vpack.c.b16 %v4567, %v4563
    %v4728 = vpack.c.b16 %v4568, %v4564
    %v4729 = vpack.c.b16 %v4573, %v4569
    %v4730 = vpack.c.b16 %v4574, %v4570
    %v4731 = vpack.c.b16 %v4575, %v4571
    %v4732 = vpack.c.b16 %v4576, %v4572
    %v4733 = vpack.c.b16 %v4581, %v4577
    %v4734 = vpack.c.b16 %v4582, %v4578
    %v4735 = vpack.c.b16 %v4583, %v4579
    %v4736 = vpack.c.b16 %v4584, %v4580
    %v4737 = vpack.c.b16 %v4589, %v4585
    %v4738 = vpack.c.b16 %v4590, %v4586
    %v4739 = vpack.c.b16 %v4591, %v4587
    %v4740 = vpack.c.b16 %v4592, %v4588
    %v4741 = vpack.c.b16 %v4597, %v4593
    %v4742 = vpack.c.b16 %v4598, %v4594
    %v4743 = vpack.c.b16 %v4599, %v4595
    %v4744 = vpack.c.b16 %v4600, %v4596
    %v4745 = vpack.c.b16 %v4605, %v4601
    %v4746 = vpack.c.b16 %v4606, %v4602
    %v4747 = vpack.c.b16 %v4607, %v4603
    %v4748 = vpack.c.b16 %v4608, %v4604
    %v4749 = vpack.c.b16 %v4613, %v4609
    %v4750 = vpack.c.b16 %v4614, %v4610
    %v4751 = vpack.c.b16 %v4615, %v4611
    %v4752 = vpack.c.b16 %v4616, %v4612
    %v4753 = vpack.c.b16 %v4621, %v4617
    %v4754 = vpack.c.b16 %v4622, %v4618
    %v4755 = vpack.c.b16 %v4623, %v4619
    %v4756 = vpack.c.b16 %v4624, %v4620
    %v4757 = vpack.c.b16 %v4629, %v4625
    %v4758 = vpack.c.b16 %v4630, %v4626
    %v4759 = vpack.c.b16 %v4631, %v4627
    %v4760 = vpack.c.b16 %v4632, %v4628
    %4889 = vmatprep.subr.bf16.mxu0 %v4634
    %4890 = vmatpush1.bf16.msra.mxu0 %v4633
    %4891 = vmatprep.subr.bf16.mxu0 %v4638
    %4892 = vmatpush1.bf16.msra.mxu0 %v4637
    %4893 = vmatprep.subr.bf16.mxu0 %v4642
    %4894 = vmatpush1.bf16.msra.mxu0 %v4641
    %4895 = vmatprep.subr.bf16.mxu0 %v4646
    %4896 = vmatpush1.bf16.msra.mxu0 %v4645
    %4897 = vmatprep.subr.bf16.mxu0 %v4650
    %4898 = vmatpush1.bf16.msra.mxu0 %v4649
    %4899 = vmatprep.subr.bf16.mxu0 %v4654
    %4900 = vmatpush1.bf16.msra.mxu0 %v4653
    %4901 = vmatprep.subr.bf16.mxu0 %v4658
    %4902 = vmatpush1.bf16.msra.mxu0 %v4657
    %4903 = vmatprep.subr.bf16.mxu0 %v4662
    %4904 = vmatpush1.bf16.msra.mxu0 %v4661
    %4905 = vmatprep.subr.bf16.mxu0 %v4666
    %4906 = vmatpush1.bf16.msra.mxu0 %v4665
    %4907 = vmatprep.subr.bf16.mxu0 %v4670
    %4908 = vmatpush1.bf16.msra.mxu0 %v4669
    %4909 = vmatprep.subr.bf16.mxu0 %v4674
    %4910 = vmatpush1.bf16.msra.mxu0 %v4673
    %4911 = vmatprep.subr.bf16.mxu0 %v4678
    %4912 = vmatpush1.bf16.msra.mxu0 %v4677
    %4913 = vmatprep.subr.bf16.mxu0 %v4682
    %4914 = vmatpush1.bf16.msra.mxu0 %v4681
    %4915 = vmatprep.subr.bf16.mxu0 %v4686
    %4916 = vmatpush1.bf16.msra.mxu0 %v4685
    %4917 = vmatprep.subr.bf16.mxu0 %v4690
    %4918 = vmatpush1.bf16.msra.mxu0 %v4689
    %4919 = vmatprep.subr.bf16.mxu0 %v4694
    %4920 = vmatpush1.bf16.msra.mxu0 %v4693
    %4921 = vmatprep.mubr.bf16.mxu0 %v4096
    %4922 = vmatmul.mubr.bf16.gmra.mrb[0].mxu0 %v4095
    %v4923 = vpop.f32.mrb[0].mxu0
    %v4924 = vadd.f32 %v4232, %v4923
    %v4925 = vpop.f32.mrb[0].mxu0
    %v4926 = vadd.f32 %v4236, %v4925
    %v4927 = vpop.f32.mrb[0].mxu0
    %v4928 = vpop.f32.mrb[0].mxu0
    %4929 = vdwg.mxu0
    %4930 = vmatprep.subr.bf16.mxu0 %v4698
    %4931 = vmatpush1.bf16.msra.mxu0 %v4697
    %4932 = vmatprep.subr.bf16.mxu0 %v4702
    %4933 = vmatpush1.bf16.msra.mxu0 %v4701
    %4934 = vmatprep.subr.bf16.mxu0 %v4706
    %4935 = vmatpush1.bf16.msra.mxu0 %v4705
    %4936 = vmatprep.subr.bf16.mxu0 %v4710
    %4937 = vmatpush1.bf16.msra.mxu0 %v4709
    %4938 = vmatprep.subr.bf16.mxu0 %v4714
    %4939 = vmatpush1.bf16.msra.mxu0 %v4713
    %4940 = vmatprep.subr.bf16.mxu0 %v4718
    %4941 = vmatpush1.bf16.msra.mxu0 %v4717
    %4942 = vmatprep.subr.bf16.mxu0 %v4722
    %4943 = vmatpush1.bf16.msra.mxu0 %v4721
    %4944 = vmatprep.subr.bf16.mxu0 %v4726
    %4945 = vmatpush1.bf16.msra.mxu0 %v4725
    %4946 = vmatprep.subr.bf16.mxu0 %v4730
    %4947 = vmatpush1.bf16.msra.mxu0 %v4729
    %4948 = vmatprep.subr.bf16.mxu0 %v4734
    %4949 = vmatpush1.bf16.msra.mxu0 %v4733
    %4950 = vmatprep.subr.bf16.mxu0 %v4738
    %4951 = vmatpush1.bf16.msra.mxu0 %v4737
    %4952 = vmatprep.subr.bf16.mxu0 %v4742
    %4953 = vmatpush1.bf16.msra.mxu0 %v4741
    %4954 = vmatprep.subr.bf16.mxu0 %v4746
    %4955 = vmatpush1.bf16.msra.mxu0 %v4745
    %4956 = vmatprep.subr.bf16.mxu0 %v4750
    %4957 = vmatpush1.bf16.msra.mxu0 %v4749
    %4958 = vmatprep.subr.bf16.mxu0 %v4754
    %4959 = vmatpush1.bf16.msra.mxu0 %v4753
    %4960 = vmatprep.subr.bf16.mxu0 %v4758
    %4961 = vmatpush1.bf16.msra.mxu0 %v4757
    %4962 = vmatprep.mubr.bf16.mxu0 %v4098
    %4963 = vmatmul.mubr.bf16.gmra.mrb[0].mxu0 %v4097
    %v4964 = vpop.f32.mrb[0].mxu0
    %v4965 = vadd.f32 %v4924, %v4964
    %v4966 = vpop.f32.mrb[0].mxu0
    %v4967 = vadd.f32 %v4926, %v4966
    %v4968 = vpop.f32.mrb[0].mxu0
    %v4969 = vpop.f32.mrb[0].mxu0
    %4970 = vdwg.mxu0
    %4971 = vmatprep.subr.bf16.mxu0 %v4636
    %4972 = vmatpush1.bf16.msra.mxu0 %v4635
    %4973 = vmatprep.subr.bf16.mxu0 %v4640
    %4974 = vmatpush1.bf16.msra.mxu0 %v4639
    %4975 = vmatprep.subr.bf16.mxu0 %v4644
    %4976 = vmatpush1.bf16.msra.mxu0 %v4643
    %4977 = vmatprep.subr.bf16.mxu0 %v4648
    %4978 = vmatpush1.bf16.msra.mxu0 %v4647
    %4979 = vmatprep.subr.bf16.mxu0 %v4652
    %4980 = vmatpush1.bf16.msra.mxu0 %v4651
    %4981 = vmatprep.subr.bf16.mxu0 %v4656
    %4982 = vmatpush1.bf16.msra.mxu0 %v4655
    %4983 = vmatprep.subr.bf16.mxu0 %v4660
    %4984 = vmatpush1.bf16.msra.mxu0 %v4659
    %4985 = vmatprep.subr.bf16.mxu0 %v4664
    %4986 = vmatpush1.bf16.msra.mxu0 %v4663
    %4987 = vmatprep.subr.bf16.mxu0 %v4668
    %4988 = vmatpush1.bf16.msra.mxu0 %v4667
    %4989 = vmatprep.subr.bf16.mxu0 %v4672
    %4990 = vmatpush1.bf16.msra.mxu0 %v4671
    %4991 = vmatprep.subr.bf16.mxu0 %v4676
    %4992 = vmatpush1.bf16.msra.mxu0 %v4675
    %4993 = vmatprep.subr.bf16.mxu0 %v4680
    %4994 = vmatpush1.bf16.msra.mxu0 %v4679
    %4995 = vmatprep.subr.bf16.mxu0 %v4684
    %4996 = vmatpush1.bf16.msra.mxu0 %v4683
    %4997 = vmatprep.subr.bf16.mxu0 %v4688
    %4998 = vmatpush1.bf16.msra.mxu0 %v4687
    %4999 = vmatprep.subr.bf16.mxu0 %v4692
    %5000 = vmatpush1.bf16.msra.mxu0 %v4691
    %5001 = vmatprep.subr.bf16.mxu0 %v4696
    %5002 = vmatpush1.bf16.msra.mxu0 %v4695
    %5003 = vmatprep.mubr.bf16.mxu0 %v4096
    %5004 = vmatmul.mubr.bf16.gmra.mrb[0].mxu0 %v4095
    %v5005 = vpop.f32.mrb[0].mxu0
    %v5006 = vadd.f32 %v4240, %v5005
    %v5007 = vpop.f32.mrb[0].mxu0
    %v5008 = vadd.f32 %v4244, %v5007
    %v5009 = vpop.f32.mrb[0].mxu0
    %v5010 = vpop.f32.mrb[0].mxu0
    %5011 = vdwg.mxu0
    %5012 = vmatprep.subr.bf16.mxu0 %v4700
    %5013 = vmatpush1.bf16.msra.mxu0 %v4699
    %5014 = vmatprep.subr.bf16.mxu0 %v4704
    %5015 = vmatpush1.bf16.msra.mxu0 %v4703
    %5016 = vmatprep.subr.bf16.mxu0 %v4708
    %5017 = vmatpush1.bf16.msra.mxu0 %v4707
    %5018 = vmatprep.subr.bf16.mxu0 %v4712
    %5019 = vmatpush1.bf16.msra.mxu0 %v4711
    %5020 = vmatprep.subr.bf16.mxu0 %v4716
    %5021 = vmatpush1.bf16.msra.mxu0 %v4715
    %5022 = vmatprep.subr.bf16.mxu0 %v4720
    %5023 = vmatpush1.bf16.msra.mxu0 %v4719
    %5024 = vmatprep.subr.bf16.mxu0 %v4724
    %5025 = vmatpush1.bf16.msra.mxu0 %v4723
    %5026 = vmatprep.subr.bf16.mxu0 %v4728
    %5027 = vmatpush1.bf16.msra.mxu0 %v4727
    %5028 = vmatprep.subr.bf16.mxu0 %v4732
    %5029 = vmatpush1.bf16.msra.mxu0 %v4731
    %5030 = vmatprep.subr.bf16.mxu0 %v4736
    %5031 = vmatpush1.bf16.msra.mxu0 %v4735
    %5032 = vmatprep.subr.bf16.mxu0 %v4740
    %5033 = vmatpush1.bf16.msra.mxu0 %v4739
    %5034 = vmatprep.subr.bf16.mxu0 %v4744
    %5035 = vmatpush1.bf16.msra.mxu0 %v4743
    %5036 = vmatprep.subr.bf16.mxu0 %v4748
    %5037 = vmatpush1.bf16.msra.mxu0 %v4747
    %5038 = vmatprep.subr.bf16.mxu0 %v4752
    %5039 = vmatpush1.bf16.msra.mxu0 %v4751
    %5040 = vmatprep.subr.bf16.mxu0 %v4756
    %5041 = vmatpush1.bf16.msra.mxu0 %v4755
    %5042 = vmatprep.subr.bf16.mxu0 %v4760
    %5043 = vmatpush1.bf16.msra.mxu0 %v4759
    %5044 = vmatprep.mubr.bf16.mxu0 %v4098
    %5045 = vmatmul.mubr.bf16.gmra.mrb[0].mxu0 %v4097
    %v5046 = vpop.f32.mrb[0].mxu0
    %v5047 = vadd.f32 %v5006, %v5046
    %v5048 = vpop.f32.mrb[0].mxu0
    %v5049 = vadd.f32 %v5008, %v5048
    %v5050 = vpop.f32.mrb[0].mxu0
    %v5051 = vpop.f32.mrb[0].mxu0
    %5052 = vdwg.mxu0
    %v5053 = vmax.f32 %v4965, 0.0
    %v5054 = vmax.f32 %v4967, 0.0
    %v5055 = vmax.f32 %v5047, 0.0
    %v5056 = vmax.f32 %v5049, 0.0
    %v5057 = vpack.c.bf16 %v5053, %v5053
    %v5058 = vpack.c.bf16 %v5054, %v5054
    %v5059 = vpack.c.bf16 %v5055, %v5055
    %v5060 = vpack.c.bf16 %v5056, %v5056
    %v5061 = vld [vmem:[#allocation17] sm:$0xff]
    %v5062 = vld [vmem:[#allocation17 + $0x8] sm:$0xff]
    %v5063 = vld [vmem:[#allocation17 + $0x10] sm:$0xff]
    %v5064 = vld [vmem:[#allocation17 + $0x18] sm:$0xff]
    %v5065 = vld [vmem:[#allocation17 + $0x20] sm:$0xff]
    %v5066 = vld [vmem:[#allocation17 + $0x28] sm:$0xff]
    %v5067 = vld [vmem:[#allocation17 + $0x30] sm:$0xff]
    %v5068 = vld [vmem:[#allocation17 + $0x38] sm:$0xff]
    %v5069 = vld [vmem:[#allocation17 + $0x40] sm:$0xff]
    %v5070 = vld [vmem:[#allocation17 + $0x48] sm:$0xff]
    %v5071 = vld [vmem:[#allocation17 + $0x50] sm:$0xff]
    %v5072 = vld [vmem:[#allocation17 + $0x58] sm:$0xff]
    %v5073 = vld [vmem:[#allocation17 + $0x60] sm:$0xff]
    %v5074 = vld [vmem:[#allocation17 + $0x68] sm:$0xff]
    %v5075 = vld [vmem:[#allocation17 + $0x70] sm:$0xff]
    %v5076 = vld [vmem:[#allocation17 + $0x78] sm:$0xff]
    %v5077 = vld [vmem:[#allocation17 + $0x80] sm:$0xff]
    %v5078 = vld [vmem:[#allocation17 + $0x88] sm:$0xff]
    %v5079 = vld [vmem:[#allocation17 + $0x90] sm:$0xff]
    %v5080 = vld [vmem:[#allocation17 + $0x98] sm:$0xff]
    %v5081 = vld [vmem:[#allocation17 + $0xa0] sm:$0xff]
    %v5082 = vld [vmem:[#allocation17 + $0xa8] sm:$0xff]
    %v5083 = vld [vmem:[#allocation17 + $0xb0] sm:$0xff]
    %v5084 = vld [vmem:[#allocation17 + $0xb8] sm:$0xff]
    %v5085 = vld [vmem:[#allocation17 + $0xc0] sm:$0xff]
    %v5086 = vld [vmem:[#allocation17 + $0xc8] sm:$0xff]
    %v5087 = vld [vmem:[#allocation17 + $0xd0] sm:$0xff]
    %v5088 = vld [vmem:[#allocation17 + $0xd8] sm:$0xff]
    %v5089 = vld [vmem:[#allocation17 + $0xe0] sm:$0xff]
    %v5090 = vld [vmem:[#allocation17 + $0xe8] sm:$0xff]
    %v5091 = vld [vmem:[#allocation17 + $0xf0] sm:$0xff]
    %v5092 = vld [vmem:[#allocation17 + $0xf8] sm:$0xff]
    %v5093 = vld [vmem:[#allocation17 + $0x100] sm:$0xff]
    %v5094 = vld [vmem:[#allocation17 + $0x108] sm:$0xff]
    %v5095 = vld [vmem:[#allocation17 + $0x110] sm:$0xff]
    %v5096 = vld [vmem:[#allocation17 + $0x118] sm:$0xff]
    %v5097 = vld [vmem:[#allocation17 + $0x120] sm:$0xff]
    %v5098 = vld [vmem:[#allocation17 + $0x128] sm:$0xff]
    %v5099 = vld [vmem:[#allocation17 + $0x130] sm:$0xff]
    %v5100 = vld [vmem:[#allocation17 + $0x138] sm:$0xff]
    %v5101 = vld [vmem:[#allocation17 + $0x140] sm:$0xff]
    %v5102 = vld [vmem:[#allocation17 + $0x148] sm:$0xff]
    %v5103 = vld [vmem:[#allocation17 + $0x150] sm:$0xff]
    %v5104 = vld [vmem:[#allocation17 + $0x158] sm:$0xff]
    %v5105 = vld [vmem:[#allocation17 + $0x160] sm:$0xff]
    %v5106 = vld [vmem:[#allocation17 + $0x168] sm:$0xff]
    %v5107 = vld [vmem:[#allocation17 + $0x170] sm:$0xff]
    %v5108 = vld [vmem:[#allocation17 + $0x178] sm:$0xff]
    %v5109 = vld [vmem:[#allocation17 + $0x180] sm:$0xff]
    %v5110 = vld [vmem:[#allocation17 + $0x188] sm:$0xff]
    %v5111 = vld [vmem:[#allocation17 + $0x190] sm:$0xff]
    %v5112 = vld [vmem:[#allocation17 + $0x198] sm:$0xff]
    %v5113 = vld [vmem:[#allocation17 + $0x1a0] sm:$0xff]
    %v5114 = vld [vmem:[#allocation17 + $0x1a8] sm:$0xff]
    %v5115 = vld [vmem:[#allocation17 + $0x1b0] sm:$0xff]
    %v5116 = vld [vmem:[#allocation17 + $0x1b8] sm:$0xff]
    %v5117 = vld [vmem:[#allocation17 + $0x1c0] sm:$0xff]
    %v5118 = vld [vmem:[#allocation17 + $0x1c8] sm:$0xff]
    %v5119 = vld [vmem:[#allocation17 + $0x1d0] sm:$0xff]
    %v5120 = vld [vmem:[#allocation17 + $0x1d8] sm:$0xff]
    %v5121 = vld [vmem:[#allocation17 + $0x1e0] sm:$0xff]
    %v5122 = vld [vmem:[#allocation17 + $0x1e8] sm:$0xff]
    %v5123 = vld [vmem:[#allocation17 + $0x1f0] sm:$0xff]
    %v5124 = vld [vmem:[#allocation17 + $0x1f8] sm:$0xff]
    %v5125 = vld [vmem:[#allocation19] sm:$0x3]
    %v5127 = vlaneseq
    %v5128 = vshrl.u32 %v5127, 7
    %v5129 = vsub.s32 0, %v5128
    %v5130 = vrot.slane %v5125, %v5129
    %v5131 = vlaneseq
    %v5132 = vshrl.u32 %v5131, 7
    %v5133 = vsub.s32 1, %v5132
    %v5134 = vrot.slane %v5125, %v5133
    %v5201 = vunpack.c.l.b16 %v5061
    %v5202 = vunpack.c.h.b16 %v5061
    %v5203 = vunpack.c.l.b16 %v5062
    %v5204 = vunpack.c.h.b16 %v5062
    %v5205 = vunpack.c.l.b16 %v5063
    %v5206 = vunpack.c.h.b16 %v5063
    %v5207 = vunpack.c.l.b16 %v5064
    %v5208 = vunpack.c.h.b16 %v5064
    %v5209 = vunpack.c.l.b16 %v5065
    %v5210 = vunpack.c.h.b16 %v5065
    %v5211 = vunpack.c.l.b16 %v5066
    %v5212 = vunpack.c.h.b16 %v5066
    %v5213 = vunpack.c.l.b16 %v5067
    %v5214 = vunpack.c.h.b16 %v5067
    %v5215 = vunpack.c.l.b16 %v5068
    %v5216 = vunpack.c.h.b16 %v5068
    %v5217 = vunpack.c.l.b16 %v5069
    %v5218 = vunpack.c.h.b16 %v5069
    %v5219 = vunpack.c.l.b16 %v5070
    %v5220 = vunpack.c.h.b16 %v5070
    %v5221 = vunpack.c.l.b16 %v5071
    %v5222 = vunpack.c.h.b16 %v5071
    %v5223 = vunpack.c.l.b16 %v5072
    %v5224 = vunpack.c.h.b16 %v5072
    %v5225 = vunpack.c.l.b16 %v5073
    %v5226 = vunpack.c.h.b16 %v5073
    %v5227 = vunpack.c.l.b16 %v5074
    %v5228 = vunpack.c.h.b16 %v5074
    %v5229 = vunpack.c.l.b16 %v5075
    %v5230 = vunpack.c.h.b16 %v5075
    %v5231 = vunpack.c.l.b16 %v5076
    %v5232 = vunpack.c.h.b16 %v5076
    %v5233 = vunpack.c.l.b16 %v5077
    %v5234 = vunpack.c.h.b16 %v5077
    %v5235 = vunpack.c.l.b16 %v5078
    %v5236 = vunpack.c.h.b16 %v5078
    %v5237 = vunpack.c.l.b16 %v5079
    %v5238 = vunpack.c.h.b16 %v5079
    %v5239 = vunpack.c.l.b16 %v5080
    %v5240 = vunpack.c.h.b16 %v5080
    %v5241 = vunpack.c.l.b16 %v5081
    %v5242 = vunpack.c.h.b16 %v5081
    %v5243 = vunpack.c.l.b16 %v5082
    %v5244 = vunpack.c.h.b16 %v5082
    %v5245 = vunpack.c.l.b16 %v5083
    %v5246 = vunpack.c.h.b16 %v5083
    %v5247 = vunpack.c.l.b16 %v5084
    %v5248 = vunpack.c.h.b16 %v5084
    %v5249 = vunpack.c.l.b16 %v5085
    %v5250 = vunpack.c.h.b16 %v5085
    %v5251 = vunpack.c.l.b16 %v5086
    %v5252 = vunpack.c.h.b16 %v5086
    %v5253 = vunpack.c.l.b16 %v5087
    %v5254 = vunpack.c.h.b16 %v5087
    %v5255 = vunpack.c.l.b16 %v5088
    %v5256 = vunpack.c.h.b16 %v5088
    %v5257 = vunpack.c.l.b16 %v5089
    %v5258 = vunpack.c.h.b16 %v5089
    %v5259 = vunpack.c.l.b16 %v5090
    %v5260 = vunpack.c.h.b16 %v5090
    %v5261 = vunpack.c.l.b16 %v5091
    %v5262 = vunpack.c.h.b16 %v5091
    %v5263 = vunpack.c.l.b16 %v5092
    %v5264 = vunpack.c.h.b16 %v5092
    %v5265 = vunpack.c.l.b16 %v5093
    %v5266 = vunpack.c.h.b16 %v5093
    %v5267 = vunpack.c.l.b16 %v5094
    %v5268 = vunpack.c.h.b16 %v5094
    %v5269 = vunpack.c.l.b16 %v5095
    %v5270 = vunpack.c.h.b16 %v5095
    %v5271 = vunpack.c.l.b16 %v5096
    %v5272 = vunpack.c.h.b16 %v5096
    %v5273 = vunpack.c.l.b16 %v5097
    %v5274 = vunpack.c.h.b16 %v5097
    %v5275 = vunpack.c.l.b16 %v5098
    %v5276 = vunpack.c.h.b16 %v5098
    %v5277 = vunpack.c.l.b16 %v5099
    %v5278 = vunpack.c.h.b16 %v5099
    %v5279 = vunpack.c.l.b16 %v5100
    %v5280 = vunpack.c.h.b16 %v5100
    %v5281 = vunpack.c.l.b16 %v5101
    %v5282 = vunpack.c.h.b16 %v5101
    %v5283 = vunpack.c.l.b16 %v5102
    %v5284 = vunpack.c.h.b16 %v5102
    %v5285 = vunpack.c.l.b16 %v5103
    %v5286 = vunpack.c.h.b16 %v5103
    %v5287 = vunpack.c.l.b16 %v5104
    %v5288 = vunpack.c.h.b16 %v5104
    %v5289 = vunpack.c.l.b16 %v5105
    %v5290 = vunpack.c.h.b16 %v5105
    %v5291 = vunpack.c.l.b16 %v5106
    %v5292 = vunpack.c.h.b16 %v5106
    %v5293 = vunpack.c.l.b16 %v5107
    %v5294 = vunpack.c.h.b16 %v5107
    %v5295 = vunpack.c.l.b16 %v5108
    %v5296 = vunpack.c.h.b16 %v5108
    %v5297 = vunpack.c.l.b16 %v5109
    %v5298 = vunpack.c.h.b16 %v5109
    %v5299 = vunpack.c.l.b16 %v5110
    %v5300 = vunpack.c.h.b16 %v5110
    %v5301 = vunpack.c.l.b16 %v5111
    %v5302 = vunpack.c.h.b16 %v5111
    %v5303 = vunpack.c.l.b16 %v5112
    %v5304 = vunpack.c.h.b16 %v5112
    %v5305 = vunpack.c.l.b16 %v5113
    %v5306 = vunpack.c.h.b16 %v5113
    %v5307 = vunpack.c.l.b16 %v5114
    %v5308 = vunpack.c.h.b16 %v5114
    %v5309 = vunpack.c.l.b16 %v5115
    %v5310 = vunpack.c.h.b16 %v5115
    %v5311 = vunpack.c.l.b16 %v5116
    %v5312 = vunpack.c.h.b16 %v5116
    %v5313 = vunpack.c.l.b16 %v5117
    %v5314 = vunpack.c.h.b16 %v5117
    %v5315 = vunpack.c.l.b16 %v5118
    %v5316 = vunpack.c.h.b16 %v5118
    %v5317 = vunpack.c.l.b16 %v5119
    %v5318 = vunpack.c.h.b16 %v5119
    %v5319 = vunpack.c.l.b16 %v5120
    %v5320 = vunpack.c.h.b16 %v5120
    %v5321 = vunpack.c.l.b16 %v5121
    %v5322 = vunpack.c.h.b16 %v5121
    %v5323 = vunpack.c.l.b16 %v5122
    %v5324 = vunpack.c.h.b16 %v5122
    %v5325 = vunpack.c.l.b16 %v5123
    %v5326 = vunpack.c.h.b16 %v5123
    %v5327 = vunpack.c.l.b16 %v5124
    %v5328 = vunpack.c.h.b16 %v5124
    %v5329 = vpack.c.b16 %v5203, %v5201
    %v5330 = vpack.c.b16 %v5204, %v5202
    %v5331 = vpack.c.b16 %v5207, %v5205
    %v5332 = vpack.c.b16 %v5208, %v5206
    %v5333 = vpack.c.b16 %v5211, %v5209
    %v5334 = vpack.c.b16 %v5212, %v5210
    %v5335 = vpack.c.b16 %v5215, %v5213
    %v5336 = vpack.c.b16 %v5216, %v5214
    %v5337 = vpack.c.b16 %v5219, %v5217
    %v5338 = vpack.c.b16 %v5220, %v5218
    %v5339 = vpack.c.b16 %v5223, %v5221
    %v5340 = vpack.c.b16 %v5224, %v5222
    %v5341 = vpack.c.b16 %v5227, %v5225
    %v5342 = vpack.c.b16 %v5228, %v5226
    %v5343 = vpack.c.b16 %v5231, %v5229
    %v5344 = vpack.c.b16 %v5232, %v5230
    %v5345 = vpack.c.b16 %v5235, %v5233
    %v5346 = vpack.c.b16 %v5236, %v5234
    %v5347 = vpack.c.b16 %v5239, %v5237
    %v5348 = vpack.c.b16 %v5240, %v5238
    %v5349 = vpack.c.b16 %v5243, %v5241
    %v5350 = vpack.c.b16 %v5244, %v5242
    %v5351 = vpack.c.b16 %v5247, %v5245
    %v5352 = vpack.c.b16 %v5248, %v5246
    %v5353 = vpack.c.b16 %v5251, %v5249
    %v5354 = vpack.c.b16 %v5252, %v5250
    %v5355 = vpack.c.b16 %v5255, %v5253
    %v5356 = vpack.c.b16 %v5256, %v5254
    %v5357 = vpack.c.b16 %v5259, %v5257
    %v5358 = vpack.c.b16 %v5260, %v5258
    %v5359 = vpack.c.b16 %v5263, %v5261
    %v5360 = vpack.c.b16 %v5264, %v5262
    %v5361 = vpack.c.b16 %v5267, %v5265
    %v5362 = vpack.c.b16 %v5268, %v5266
    %v5363 = vpack.c.b16 %v5271, %v5269
    %v5364 = vpack.c.b16 %v5272, %v5270
    %v5365 = vpack.c.b16 %v5275, %v5273
    %v5366 = vpack.c.b16 %v5276, %v5274
    %v5367 = vpack.c.b16 %v5279, %v5277
    %v5368 = vpack.c.b16 %v5280, %v5278
    %v5369 = vpack.c.b16 %v5283, %v5281
    %v5370 = vpack.c.b16 %v5284, %v5282
    %v5371 = vpack.c.b16 %v5287, %v5285
    %v5372 = vpack.c.b16 %v5288, %v5286
    %v5373 = vpack.c.b16 %v5291, %v5289
    %v5374 = vpack.c.b16 %v5292, %v5290
    %v5375 = vpack.c.b16 %v5295, %v5293
    %v5376 = vpack.c.b16 %v5296, %v5294
    %v5377 = vpack.c.b16 %v5299, %v5297
    %v5378 = vpack.c.b16 %v5300, %v5298
    %v5379 = vpack.c.b16 %v5303, %v5301
    %v5380 = vpack.c.b16 %v5304, %v5302
    %v5381 = vpack.c.b16 %v5307, %v5305
    %v5382 = vpack.c.b16 %v5308, %v5306
    %v5383 = vpack.c.b16 %v5311, %v5309
    %v5384 = vpack.c.b16 %v5312, %v5310
    %v5385 = vpack.c.b16 %v5315, %v5313
    %v5386 = vpack.c.b16 %v5316, %v5314
    %v5387 = vpack.c.b16 %v5319, %v5317
    %v5388 = vpack.c.b16 %v5320, %v5318
    %v5389 = vpack.c.b16 %v5323, %v5321
    %v5390 = vpack.c.b16 %v5324, %v5322
    %v5391 = vpack.c.b16 %v5327, %v5325
    %v5392 = vpack.c.b16 %v5328, %v5326
    %5457 = vmatprep.subr.bf16.mxu0 %v5330
    %5458 = vmatpush1.bf16.msra.mxu0 %v5329
    %5459 = vmatprep.subr.bf16.mxu0 %v5332
    %5460 = vmatpush1.bf16.msra.mxu0 %v5331
    %5461 = vmatprep.subr.bf16.mxu0 %v5334
    %5462 = vmatpush1.bf16.msra.mxu0 %v5333
    %5463 = vmatprep.subr.bf16.mxu0 %v5336
    %5464 = vmatpush1.bf16.msra.mxu0 %v5335
    %5465 = vmatprep.subr.bf16.mxu0 %v5338
    %5466 = vmatpush1.bf16.msra.mxu0 %v5337
    %5467 = vmatprep.subr.bf16.mxu0 %v5340
    %5468 = vmatpush1.bf16.msra.mxu0 %v5339
    %5469 = vmatprep.subr.bf16.mxu0 %v5342
    %5470 = vmatpush1.bf16.msra.mxu0 %v5341
    %5471 = vmatprep.subr.bf16.mxu0 %v5344
    %5472 = vmatpush1.bf16.msra.mxu0 %v5343
    %5473 = vmatprep.subr.bf16.mxu0 %v5346
    %5474 = vmatpush1.bf16.msra.mxu0 %v5345
    %5475 = vmatprep.subr.bf16.mxu0 %v5348
    %5476 = vmatpush1.bf16.msra.mxu0 %v5347
    %5477 = vmatprep.subr.bf16.mxu0 %v5350
    %5478 = vmatpush1.bf16.msra.mxu0 %v5349
    %5479 = vmatprep.subr.bf16.mxu0 %v5352
    %5480 = vmatpush1.bf16.msra.mxu0 %v5351
    %5481 = vmatprep.subr.bf16.mxu0 %v5354
    %5482 = vmatpush1.bf16.msra.mxu0 %v5353
    %5483 = vmatprep.subr.bf16.mxu0 %v5356
    %5484 = vmatpush1.bf16.msra.mxu0 %v5355
    %5485 = vmatprep.subr.bf16.mxu0 %v5358
    %5486 = vmatpush1.bf16.msra.mxu0 %v5357
    %5487 = vmatprep.subr.bf16.mxu0 %v5360
    %5488 = vmatpush1.bf16.msra.mxu0 %v5359
    %5489 = vmatprep.mubr.bf16.mxu0 %v5058
    %5490 = vmatmul.mubr.bf16.gmra.mrb[0].mxu0 %v5057
    %v5491 = vpop.f32.mrb[0].mxu0
    %v5492 = vadd.f32 %v5130, %v5491
    %v5493 = vpop.f32.mrb[0].mxu0
    %v5494 = vadd.f32 %v5134, %v5493
    %v5495 = vpop.f32.mrb[0].mxu0
    %v5496 = vpop.f32.mrb[0].mxu0
    %5497 = vdwg.mxu0
    %5498 = vmatprep.subr.bf16.mxu0 %v5362
    %5499 = vmatpush1.bf16.msra.mxu0 %v5361
    %5500 = vmatprep.subr.bf16.mxu0 %v5364
    %5501 = vmatpush1.bf16.msra.mxu0 %v5363
    %5502 = vmatprep.subr.bf16.mxu0 %v5366
    %5503 = vmatpush1.bf16.msra.mxu0 %v5365
    %5504 = vmatprep.subr.bf16.mxu0 %v5368
    %5505 = vmatpush1.bf16.msra.mxu0 %v5367
    %5506 = vmatprep.subr.bf16.mxu0 %v5370
    %5507 = vmatpush1.bf16.msra.mxu0 %v5369
    %5508 = vmatprep.subr.bf16.mxu0 %v5372
    %5509 = vmatpush1.bf16.msra.mxu0 %v5371
    %5510 = vmatprep.subr.bf16.mxu0 %v5374
    %5511 = vmatpush1.bf16.msra.mxu0 %v5373
    %5512 = vmatprep.subr.bf16.mxu0 %v5376
    %5513 = vmatpush1.bf16.msra.mxu0 %v5375
    %5514 = vmatprep.subr.bf16.mxu0 %v5378
    %5515 = vmatpush1.bf16.msra.mxu0 %v5377
    %5516 = vmatprep.subr.bf16.mxu0 %v5380
    %5517 = vmatpush1.bf16.msra.mxu0 %v5379
    %5518 = vmatprep.subr.bf16.mxu0 %v5382
    %5519 = vmatpush1.bf16.msra.mxu0 %v5381
    %5520 = vmatprep.subr.bf16.mxu0 %v5384
    %5521 = vmatpush1.bf16.msra.mxu0 %v5383
    %5522 = vmatprep.subr.bf16.mxu0 %v5386
    %5523 = vmatpush1.bf16.msra.mxu0 %v5385
    %5524 = vmatprep.subr.bf16.mxu0 %v5388
    %5525 = vmatpush1.bf16.msra.mxu0 %v5387
    %5526 = vmatprep.subr.bf16.mxu0 %v5390
    %5527 = vmatpush1.bf16.msra.mxu0 %v5389
    %5528 = vmatprep.subr.bf16.mxu0 %v5392
    %5529 = vmatpush1.bf16.msra.mxu0 %v5391
    %5530 = vmatprep.mubr.bf16.mxu0 %v5060
    %5531 = vmatmul.mubr.bf16.gmra.mrb[0].mxu0 %v5059
    %v5532 = vpop.f32.mrb[0].mxu0
    %v5533 = vadd.f32 %v5492, %v5532
    %v5534 = vpop.f32.mrb[0].mxu0
    %v5535 = vadd.f32 %v5494, %v5534
    %v5536 = vpop.f32.mrb[0].mxu0
    %v5537 = vpop.f32.mrb[0].mxu0
    %5538 = vdwg.mxu0
    %v5539 = vmax.f32 %v5533, 0.0
    %v5540 = vmax.f32 %v5535, 0.0
    %v5541 = vpack.c.bf16 %v5539, %v5539
    %v5542 = vpack.c.bf16 %v5540, %v5540
    %v5543 = vld [vmem:[#allocation20] sm:$0xf]
    %v5544 = vld [vmem:[#allocation20 + $0x4] sm:$0xf]
    %v5545 = vld [vmem:[#allocation20 + $0x8] sm:$0xf]
    %v5546 = vld [vmem:[#allocation20 + $0xc] sm:$0xf]
    %v5547 = vld [vmem:[#allocation20 + $0x10] sm:$0xf]
    %v5548 = vld [vmem:[#allocation20 + $0x14] sm:$0xf]
    %v5549 = vld [vmem:[#allocation20 + $0x18] sm:$0xf]
    %v5550 = vld [vmem:[#allocation20 + $0x1c] sm:$0xf]
    %v5551 = vld [vmem:[#allocation20 + $0x20] sm:$0xf]
    %v5552 = vld [vmem:[#allocation20 + $0x24] sm:$0xf]
    %v5553 = vld [vmem:[#allocation20 + $0x28] sm:$0xf]
    %v5554 = vld [vmem:[#allocation20 + $0x2c] sm:$0xf]
    %v5555 = vld [vmem:[#allocation20 + $0x30] sm:$0xf]
    %v5556 = vld [vmem:[#allocation20 + $0x34] sm:$0xf]
    %v5557 = vld [vmem:[#allocation20 + $0x38] sm:$0xf]
    %v5558 = vld [vmem:[#allocation20 + $0x3c] sm:$0xf]
    %v5559 = vld [vmem:[#allocation20 + $0x40] sm:$0xf]
    %v5560 = vld [vmem:[#allocation20 + $0x44] sm:$0xf]
    %v5561 = vld [vmem:[#allocation20 + $0x48] sm:$0xf]
    %v5562 = vld [vmem:[#allocation20 + $0x4c] sm:$0xf]
    %v5563 = vld [vmem:[#allocation20 + $0x50] sm:$0xf]
    %v5564 = vld [vmem:[#allocation20 + $0x54] sm:$0xf]
    %v5565 = vld [vmem:[#allocation20 + $0x58] sm:$0xf]
    %v5566 = vld [vmem:[#allocation20 + $0x5c] sm:$0xf]
    %v5567 = vld [vmem:[#allocation20 + $0x60] sm:$0xf]
    %v5568 = vld [vmem:[#allocation20 + $0x64] sm:$0xf]
    %v5569 = vld [vmem:[#allocation20 + $0x68] sm:$0xf]
    %v5570 = vld [vmem:[#allocation20 + $0x6c] sm:$0xf]
    %v5571 = vld [vmem:[#allocation20 + $0x70] sm:$0xf]
    %v5572 = vld [vmem:[#allocation20 + $0x74] sm:$0xf]
    %v5573 = vld [vmem:[#allocation20 + $0x78] sm:$0xf]
    %v5574 = vld [vmem:[#allocation20 + $0x7c] sm:$0xf]
    %v5575 = vld [vmem:[#allocation22] sm:$0x1]
    %v5577 = vlaneseq
    %v5578 = vshrl.u32 %v5577, 7
    %v5579 = vsub.s32 0, %v5578
    %v5580 = vrot.slane %v5575, %v5579
    %v5614 = vunpack.c.l.b16 %v5543
    %v5615 = vunpack.c.l.b16 %v5544
    %v5616 = vunpack.c.l.b16 %v5545
    %v5617 = vunpack.c.l.b16 %v5546
    %v5618 = vunpack.c.l.b16 %v5547
    %v5619 = vunpack.c.l.b16 %v5548
    %v5620 = vunpack.c.l.b16 %v5549
    %v5621 = vunpack.c.l.b16 %v5550
    %v5622 = vunpack.c.l.b16 %v5551
    %v5623 = vunpack.c.l.b16 %v5552
    %v5624 = vunpack.c.l.b16 %v5553
    %v5625 = vunpack.c.l.b16 %v5554
    %v5626 = vunpack.c.l.b16 %v5555
    %v5627 = vunpack.c.l.b16 %v5556
    %v5628 = vunpack.c.l.b16 %v5557
    %v5629 = vunpack.c.l.b16 %v5558
    %v5630 = vunpack.c.l.b16 %v5559
    %v5631 = vunpack.c.l.b16 %v5560
    %v5632 = vunpack.c.l.b16 %v5561
    %v5633 = vunpack.c.l.b16 %v5562
    %v5634 = vunpack.c.l.b16 %v5563
    %v5635 = vunpack.c.l.b16 %v5564
    %v5636 = vunpack.c.l.b16 %v5565
    %v5637 = vunpack.c.l.b16 %v5566
    %v5638 = vunpack.c.l.b16 %v5567
    %v5639 = vunpack.c.l.b16 %v5568
    %v5640 = vunpack.c.l.b16 %v5569
    %v5641 = vunpack.c.l.b16 %v5570
    %v5642 = vunpack.c.l.b16 %v5571
    %v5643 = vunpack.c.l.b16 %v5572
    %v5644 = vunpack.c.l.b16 %v5573
    %v5645 = vunpack.c.l.b16 %v5574
    %v5646 = vpack.c.b16 %v5615, %v5614
    %v5647 = vpack.c.b16 %v5617, %v5616
    %v5648 = vpack.c.b16 %v5619, %v5618
    %v5649 = vpack.c.b16 %v5621, %v5620
    %v5650 = vpack.c.b16 %v5623, %v5622
    %v5651 = vpack.c.b16 %v5625, %v5624
    %v5652 = vpack.c.b16 %v5627, %v5626
    %v5653 = vpack.c.b16 %v5629, %v5628
    %v5654 = vpack.c.b16 %v5631, %v5630
    %v5655 = vpack.c.b16 %v5633, %v5632
    %v5656 = vpack.c.b16 %v5635, %v5634
    %v5657 = vpack.c.b16 %v5637, %v5636
    %v5658 = vpack.c.b16 %v5639, %v5638
    %v5659 = vpack.c.b16 %v5641, %v5640
    %v5660 = vpack.c.b16 %v5643, %v5642
    %v5661 = vpack.c.b16 %v5645, %v5644
    %5678 = vmatprep.subr.bf16.mxu0 0
    %5679 = vmatpush1.bf16.msra.mxu0 %v5646
    %5680 = vmatprep.subr.bf16.mxu0 0
    %5681 = vmatpush1.bf16.msra.mxu0 %v5647
    %5682 = vmatprep.subr.bf16.mxu0 0
    %5683 = vmatpush1.bf16.msra.mxu0 %v5648
    %5684 = vmatprep.subr.bf16.mxu0 0
    %5685 = vmatpush1.bf16.msra.mxu0 %v5649
    %5686 = vmatprep.subr.bf16.mxu0 0
    %5687 = vmatpush1.bf16.msra.mxu0 %v5650
    %5688 = vmatprep.subr.bf16.mxu0 0
    %5689 = vmatpush1.bf16.msra.mxu0 %v5651
    %5690 = vmatprep.subr.bf16.mxu0 0
    %5691 = vmatpush1.bf16.msra.mxu0 %v5652
    %5692 = vmatprep.subr.bf16.mxu0 0
    %5693 = vmatpush1.bf16.msra.mxu0 %v5653
    %5694 = vmatprep.subr.bf16.mxu0 0
    %5695 = vmatpush1.bf16.msra.mxu0 %v5654
    %5696 = vmatprep.subr.bf16.mxu0 0
    %5697 = vmatpush1.bf16.msra.mxu0 %v5655
    %5698 = vmatprep.subr.bf16.mxu0 0
    %5699 = vmatpush1.bf16.msra.mxu0 %v5656
    %5700 = vmatprep.subr.bf16.mxu0 0
    %5701 = vmatpush1.bf16.msra.mxu0 %v5657
    %5702 = vmatprep.subr.bf16.mxu0 0
    %5703 = vmatpush1.bf16.msra.mxu0 %v5658
    %5704 = vmatprep.subr.bf16.mxu0 0
    %5705 = vmatpush1.bf16.msra.mxu0 %v5659
    %5706 = vmatprep.subr.bf16.mxu0 0
    %5707 = vmatpush1.bf16.msra.mxu0 %v5660
    %5708 = vmatprep.subr.bf16.mxu0 0
    %5709 = vmatpush1.bf16.msra.mxu0 %v5661
    %5710 = vmatprep.mubr.bf16.mxu0 %v5542
    %5711 = vmatmul.mubr.bf16.gmra.mrb[0].mxu0 %v5541
    %v5712 = vpop.f32.mrb[0].mxu0
    %v5713 = vadd.f32 %v5580, %v5712
    %v5714 = vpop.f32.mrb[0].mxu0
    %v5715 = vpop.f32.mrb[0].mxu0
    %v5716 = vpop.f32.mrb[0].mxu0
    %5717 = vdwg.mxu0
    %v5718 = vmax.f32 %v5713, 0.0
    %v5719 = vpack.c.bf16 %v5718, %v5718
    %v5720 = vld [vmem:[%s13] sm:$0xf]
    %v5721 = vld [vmem:[%s13 + $0x4] sm:$0xf]
    %v5722 = vld [vmem:[%s13 + $0x8] sm:$0xf]
    %v5723 = vld [vmem:[%s13 + $0xc] sm:$0xf]
    %v5724 = vld [vmem:[%s13 + $0x10] sm:$0xf]
    %v5725 = vld [vmem:[%s13 + $0x14] sm:$0xf]
    %v5726 = vld [vmem:[%s13 + $0x18] sm:$0xf]
    %v5727 = vld [vmem:[%s13 + $0x1c] sm:$0xf]
    %v5728 = vld [vmem:[%s13 + $0x20] sm:$0xf]
    %v5729 = vld [vmem:[%s13 + $0x24] sm:$0xf]
    %v5730 = vld [vmem:[%s13 + $0x28] sm:$0xf]
    %v5731 = vld [vmem:[%s13 + $0x2c] sm:$0xf]
    %v5732 = vld [vmem:[%s13 + $0x30] sm:$0xf]
    %v5733 = vld [vmem:[%s13 + $0x34] sm:$0xf]
    %v5734 = vld [vmem:[%s13 + $0x38] sm:$0xf]
    %v5735 = vld [vmem:[%s13 + $0x3c] sm:$0xf]
    %v5736 = vld [vmem:[#allocation23] sm:$0x1]
    %v5738 = vlaneseq
    %v5739 = vshrl.u32 %v5738, 7
    %v5740 = vsub.s32 0, %v5739
    %v5741 = vrot.slane %v5736, %v5740
    %v5759 = vunpack.c.l.b16 %v5720
    %v5760 = vunpack.c.l.b16 %v5721
    %v5761 = vunpack.c.l.b16 %v5722
    %v5762 = vunpack.c.l.b16 %v5723
    %v5763 = vunpack.c.l.b16 %v5724
    %v5764 = vunpack.c.l.b16 %v5725
    %v5765 = vunpack.c.l.b16 %v5726
    %v5766 = vunpack.c.l.b16 %v5727
    %v5767 = vunpack.c.l.b16 %v5728
    %v5768 = vunpack.c.l.b16 %v5729
    %v5769 = vunpack.c.l.b16 %v5730
    %v5770 = vunpack.c.l.b16 %v5731
    %v5771 = vunpack.c.l.b16 %v5732
    %v5772 = vunpack.c.l.b16 %v5733
    %v5773 = vunpack.c.l.b16 %v5734
    %v5774 = vunpack.c.l.b16 %v5735
    %v5775 = vpack.c.b16 %v5760, %v5759
    %v5776 = vpack.c.b16 %v5762, %v5761
    %v5777 = vpack.c.b16 %v5764, %v5763
    %v5778 = vpack.c.b16 %v5766, %v5765
    %v5779 = vpack.c.b16 %v5768, %v5767
    %v5780 = vpack.c.b16 %v5770, %v5769
    %v5781 = vpack.c.b16 %v5772, %v5771
    %v5782 = vpack.c.b16 %v5774, %v5773
    %5791 = vmatprep.subr.bf16.mxu0 0
    %5792 = vmatpush1.bf16.msra.mxu0 %v5775
    %5793 = vmatprep.subr.bf16.mxu0 0
    %5794 = vmatpush1.bf16.msra.mxu0 %v5776
    %5795 = vmatprep.subr.bf16.mxu0 0
    %5796 = vmatpush1.bf16.msra.mxu0 %v5777
    %5797 = vmatprep.subr.bf16.mxu0 0
    %5798 = vmatpush1.bf16.msra.mxu0 %v5778
    %5799 = vmatprep.subr.bf16.mxu0 0
    %5800 = vmatpush1.bf16.msra.mxu0 %v5779
    %5801 = vmatprep.subr.bf16.mxu0 0
    %5802 = vmatpush1.bf16.msra.mxu0 %v5780
    %5803 = vmatprep.subr.bf16.mxu0 0
    %5804 = vmatpush1.bf16.msra.mxu0 %v5781
    %5805 = vmatprep.subr.bf16.mxu0 0
    %5806 = vmatpush1.bf16.msra.mxu0 %v5782
    %5807 = vmatprep.subr.bf16.mxu0 0
    %5808 = vmatpush1.bf16.msra.mxu0 0
    %5809 = vmatprep.subr.bf16.mxu0 0
    %5810 = vmatpush1.bf16.msra.mxu0 0
    %5811 = vmatprep.subr.bf16.mxu0 0
    %5812 = vmatpush1.bf16.msra.mxu0 0
    %5813 = vmatprep.subr.bf16.mxu0 0
    %5814 = vmatpush1.bf16.msra.mxu0 0
    %5815 = vmatprep.subr.bf16.mxu0 0
    %5816 = vmatpush1.bf16.msra.mxu0 0
    %5817 = vmatprep.subr.bf16.mxu0 0
    %5818 = vmatpush1.bf16.msra.mxu0 0
    %5819 = vmatprep.subr.bf16.mxu0 0
    %5820 = vmatpush1.bf16.msra.mxu0 0
    %5821 = vmatprep.subr.bf16.mxu0 0
    %5822 = vmatpush1.bf16.msra.mxu0 0
    %5823 = vmatprep.mubr.bf16.mxu0 0
    %5824 = vmatmul.mubr.bf16.gmra.mrb[0].mxu0 %v5719
    %v5825 = vpop.f32.mrb[0].mxu0
    %v5826 = vadd.f32 %v5741, %v5825
    %v5827 = vpop.f32.mrb[0].mxu0
    %v5828 = vpop.f32.mrb[0].mxu0
    %v5829 = vpop.f32.mrb[0].mxu0
    %5830 = vdwg.mxu0
    %v5831 = vmax.f32 %v5826, 0.0
    %v5832 = vld [vmem:[#allocation25] sm:$0x1]
    %v5834 = vlaneseq
    %v5835 = vshrl.u32 %v5834, 7
    %v5836 = vsub.s32 0, %v5835
    %v5837 = vrot.slane %v5832, %v5836
    %v5839 = vmul.f32 %v5831, %v5837
    %v5840 = vsel %vm422, %v5839, 0.0
    %5841 = vadd.xlane.f32.xlu0 %v5840
    %v5842 = vpop.xlane.xlu0 %5841
    %v5843 = vld [vmem:[#allocation2] sm:$0x1]
    %v5845 = vlaneseq
    %v5846 = vshrl.u32 %v5845, 7
    %v5847 = vsub.s32 0, %v5846
    %v5848 = vrot.slane %v5843, %v5847
    %v5850 = vadd.f32 %v5842, %v5848
    %vm5851 = vcmask 7168
    %5852 = vst.msk [vmem:[%s17] sm:$0xff] %vm5851, %v5850
    // Predicated region
    $region130: #{tpu_custom_call.1} parent=1 // pred_check
      _
    $region131: #{tpu_custom_call.1} parent=1 // pred_check_branch
      %5854 = sbr.rel (0) target = $region133
    $region132: #{tpu_custom_call.1} parent=1 // pred_region
      _
    $region133: #{tpu_custom_call.1} parent=1 // pred_fallthru
      _
    // Predicated region
    $region134: #{tpu_custom_call.1} parent=1 // pred_check
      _
    $region135: #{tpu_custom_call.1} parent=1 // pred_check_branch
      %5856 = sbr.rel (0) target = $region137
    $region136: #{tpu_custom_call.1} parent=1 // pred_region
      _
    $region137: #{tpu_custom_call.1} parent=1 // pred_fallthru
      _
    %5857 = vsyncpa [#allocation4], 1
    %5858 = vsyncpa [#allocation6], 1
    %5859 = vsyncpa [#allocation9], 1
    %5860 = vsyncpa [#allocation12], 1
    %5861 = vsyncpa [#allocation15], 1
    %5862 = vsyncpa [#allocation18], 1
    %5863 = vsyncpa [#allocation21], 1
    %5864 = vsyncpa [#allocation24], 1

</llo_original>
